<compile_context>
chip_gen: v7x
topology: tpu7x:2x2x1
jax: 0.10.0
libtpu: 0.0.40
codegen_flags: <defaults>
</compile_context>

<pallas_src>
import functools

import jax
import jax.numpy as jnp
from jax.experimental import pallas as pl
from jax.experimental.pallas import tpu as pltpu


# ---------------------------------------------------------------------------
# Shared math helpers (pure jnp + optional pl.reciprocal) — used both inside the
# Pallas kernel and in the plain-JAX reference so semantics match exactly.
# ---------------------------------------------------------------------------

def _layernorm(x, g, b, eps=1e-5):
    # x: (R, D); g, b: (1, D). Biased variance, matching nn.LayerNorm.
    mu = jnp.mean(x, axis=-1, keepdims=True)
    var = jnp.mean((x - mu) ** 2, axis=-1, keepdims=True)
    return (x - mu) * jax.lax.rsqrt(var + eps) * g + b


def _split_heads(x, nhead):
    # (R, nhead*dh) -> (nhead, R, dh): static lane slices stacked along a new major axis
    # (cheap; avoids lane-splitting reshapes/transposes inside the kernel).
    r, d = x.shape
    dh = d // nhead
    return jnp.stack([x[:, h * dh:(h + 1) * dh] for h in range(nhead)], axis=0)


def _kv_heads(src, w_kv, b_kv, nhead):
    """Fused K/V projection + head split.

    src: (R, D) f32, w_kv: (D, 2D) bf16, b_kv: (1, 2D) f32
    returns k_h, v_h: (nhead, R, dh) bf16
    """
    d = w_kv.shape[0]
    kv = jnp.dot(src.astype(jnp.bfloat16), w_kv,
                 preferred_element_type=jnp.float32) + b_kv          # (R, 2D) f32
    k_h = _split_heads(kv[:, :d], nhead).astype(jnp.bfloat16)
    v_h = _split_heads(kv[:, d:], nhead).astype(jnp.bfloat16)
    return k_h, v_h


def _attention(x_q, k_h, v_h, w_q, b_q, w_o_heads, b_o, nhead, approx_recip):
    """Multi-head attention with precomputed per-head K/V (PyTorch MHA semantics).

    x_q: (tq, D) f32; k_h/v_h: (nhead, R, dh) bf16
    w_q: (D, D) bf16 (pre-transposed, 1/sqrt(dh) scale already folded in)
    b_q: (1, D) f32 (scale folded in)
    w_o_heads: (nhead, dh, D) bf16 (out_proj split per head), b_o: (1, D) f32
    """
    q = jnp.dot(x_q.astype(jnp.bfloat16), w_q,
                preferred_element_type=jnp.float32) + b_q            # (tq, D) f32
    q_h = _split_heads(q, nhead).astype(jnp.bfloat16)                # (nh, tq, dh)

    # Batched (over heads) scores; contraction on last dims -> no k transpose needed.
    s = jnp.einsum('hqd,hkd->hqk', q_h, k_h,
                   preferred_element_type=jnp.float32)               # (nh, tq, R) f32
    s = s - jnp.max(s, axis=-1, keepdims=True)
    p = jnp.exp(s)
    denom = jnp.sum(p, axis=-1, keepdims=True)
    if approx_recip:
        p = p * pl.reciprocal(denom, approx=True)                    # EUP slot, ~free
    else:
        p = p / denom

    o_h = jnp.einsum('hqk,hkd->hqd', p.astype(jnp.bfloat16), v_h,
                     preferred_element_type=jnp.float32)             # (nh, tq, dh) f32

    # Per-head output projection + sum over heads replaces the lane concatenate.
    o = jnp.einsum('hqd,hde->hqe', o_h.astype(jnp.bfloat16), w_o_heads,
                   preferred_element_type=jnp.float32)               # (nh, tq, D) f32
    return jnp.sum(o, axis=0) + b_o                                  # (tq, D) f32


def _ffn(x, w1, b1, w2, b2):
    h = jnp.dot(x.astype(jnp.bfloat16), w1, preferred_element_type=jnp.float32) + b1
    h = jnp.maximum(h, 0.0)
    return jnp.dot(h.astype(jnp.bfloat16), w2, preferred_element_type=jnp.float32) + b2


# ---------------------------------------------------------------------------
# Pallas kernel: grid = (batch, q-tile). One q tile of one batch element per step.
# K/V projections for both attentions are computed once per batch element (q-tile 0)
# and cached in VMEM scratch (scratch persists across grid steps).
# ---------------------------------------------------------------------------

def decoder_layer_kernel(nhead,
                         xq_ref, tgt_ref, mem_ref,
                         wq_sa_ref, bq_sa_ref, wkv_sa_ref, bkv_sa_ref, wo_sa_ref, bo_sa_ref,
                         wq_ca_ref, bq_ca_ref, wkv_ca_ref, bkv_ca_ref, wo_ca_ref, bo_ca_ref,
                         w1_ref, b1_ref, w2_ref, b2_ref,
                         g1_ref, be1_ref, g2_ref, be2_ref, g3_ref, be3_ref,
                         out_ref,
                         k_sa_sc, v_sa_sc, k_ca_sc, v_ca_sc):
    i = pl.program_id(1)   # q-tile index within the current batch element

    @pl.when(i == 0)
    def _cache_kv():
        # Self-attention K/V from the full (raw) tgt slab; cross-attention K/V from memory.
        k_sa, v_sa = _kv_heads(tgt_ref[...], wkv_sa_ref[...], bkv_sa_ref[...], nhead)
        k_sa_sc[...] = k_sa
        v_sa_sc[...] = v_sa
        k_ca, v_ca = _kv_heads(mem_ref[...], wkv_ca_ref[...], bkv_ca_ref[...], nhead)
        k_ca_sc[...] = k_ca
        v_ca_sc[...] = v_ca

    x = xq_ref[...].astype(jnp.float32)                              # (tq, D)

    # --- self attention + residual + norm1 ---
    sa = _attention(x, k_sa_sc[...], v_sa_sc[...],
                    wq_sa_ref[...], bq_sa_ref[...], wo_sa_ref[...], bo_sa_ref[...],
                    nhead, approx_recip=True)
    x = _layernorm(x + sa, g1_ref[...], be1_ref[...])

    # --- cross attention (memory) + residual + norm2 ---
    ca = _attention(x, k_ca_sc[...], v_ca_sc[...],
                    wq_ca_ref[...], bq_ca_ref[...], wo_ca_ref[...], bo_ca_ref[...],
                    nhead, approx_recip=True)
    x = _layernorm(x + ca, g2_ref[...], be2_ref[...])

    # --- feed-forward + residual + norm3 ---
    ff = _ffn(x, w1_ref[...], b1_ref[...], w2_ref[...], b2_ref[...])
    x = _layernorm(x + ff, g3_ref[...], be3_ref[...])

    out_ref[...] = x.astype(out_ref.dtype)


# ---------------------------------------------------------------------------
# Parameter preprocessing (host side, free): split the combined in_proj into Q and
# fused K/V halves, fold the 1/sqrt(dh) scale into the Q projection, reshape out_proj
# per head, cast matmul weights to bf16.
# ---------------------------------------------------------------------------

def prepare_params(params, nhead):
    d = params['w_out_sa_t'].shape[0]
    dh = d // nhead
    scale = 1.0 / (dh ** 0.5)
    bf = lambda w: w.astype(jnp.bfloat16)
    return {
        # 1/sqrt(dh) folded into Q weight + bias (mathematically identical to scaling q).
        'wq_sa': bf(params['w_in_sa_t'][:, :d] * scale),
        'bq_sa': params['b_in_sa'][:, :d] * scale,
        'wkv_sa': bf(params['w_in_sa_t'][:, d:]),
        'bkv_sa': params['b_in_sa'][:, d:],
        'wo_sa_h': bf(params['w_out_sa_t'].reshape(nhead, dh, d)),
        'bo_sa': params['b_out_sa'],
        'wq_ca': bf(params['w_in_ca_t'][:, :d] * scale),
        'bq_ca': params['b_in_ca'][:, :d] * scale,
        'wkv_ca': bf(params['w_in_ca_t'][:, d:]),
        'bkv_ca': params['b_in_ca'][:, d:],
        'wo_ca_h': bf(params['w_out_ca_t'].reshape(nhead, dh, d)),
        'bo_ca': params['b_out_ca'],
        'w1': bf(params['w1_t']), 'b1': params['b1'],
        'w2': bf(params['w2_t']), 'b2': params['b2'],
        'g1': params['g1'], 'be1': params['be1'],
        'g2': params['g2'], 'be2': params['be2'],
        'g3': params['g3'], 'be3': params['be3'],
    }


# ---------------------------------------------------------------------------
# Wrapper
# ---------------------------------------------------------------------------

def transformer_decoder_layer(tgt, memory, params, nhead, tq=128):
    """tgt: (T, B, D), memory: (S, B, D) — PyTorch seq-first convention."""
    T, B, D = tgt.shape
    S = memory.shape[0]
    dh = D // nhead
    tq = min(tq, T)
    if T % tq != 0:
        tq = T  # fall back to a single full-extent q block (avoids the (8,128) constraint)
    nq = pl.cdiv(T, tq)

    kp = prepare_params(params, nhead)

    # Free (contiguous) 2-D views: batch b occupies columns [b*D, (b+1)*D) — no transposes.
    tgt2d = tgt.reshape(T, B * D)
    mem2d = memory.reshape(S, B * D)

    weight_args = [
        kp['wq_sa'], kp['bq_sa'], kp['wkv_sa'], kp['bkv_sa'], kp['wo_sa_h'], kp['bo_sa'],
        kp['wq_ca'], kp['bq_ca'], kp['wkv_ca'], kp['bkv_ca'], kp['wo_ca_h'], kp['bo_ca'],
        kp['w1'], kp['b1'], kp['w2'], kp['b2'],
        kp['g1'], kp['be1'], kp['g2'], kp['be2'], kp['g3'], kp['be3'],
    ]

    def wspec(w):
        nd = w.ndim
        # Constant block index -> weight stays VMEM-resident across all grid steps.
        return pl.BlockSpec(w.shape, lambda b, i, _nd=nd: (0,) * _nd)

    in_specs = [
        pl.BlockSpec((tq, D), lambda b, i: (i, b)),   # query tile of tgt
        pl.BlockSpec((T, D), lambda b, i: (0, b)),    # full tgt slab (self-attn K/V source)
        pl.BlockSpec((S, D), lambda b, i: (0, b)),    # full memory slab (cross-attn K/V source)
    ] + [wspec(w) for w in weight_args]

    kernel = functools.partial(decoder_layer_kernel, nhead)

    out2d = pl.pallas_call(
        kernel,
        out_shape=jax.ShapeDtypeStruct((T, B * D), tgt.dtype),
        grid=(B, nq),
        in_specs=in_specs,
        out_specs=pl.BlockSpec((tq, D), lambda b, i: (i, b)),
        scratch_shapes=[
            pltpu.VMEM((nhead, T, dh), jnp.bfloat16),   # self-attn K heads
            pltpu.VMEM((nhead, T, dh), jnp.bfloat16),   # self-attn V heads
            pltpu.VMEM((nhead, S, dh), jnp.bfloat16),   # cross-attn K heads
            pltpu.VMEM((nhead, S, dh), jnp.bfloat16),   # cross-attn V heads
        ],
        compiler_params=pltpu.CompilerParams(
            # batch axis independent -> parallel (megacore on v7x);
            # q-tile axis carries the scratch K/V cache -> arbitrary (sequential).
            dimension_semantics=("parallel", "arbitrary")),
    )(tgt2d, tgt2d, mem2d, *weight_args)

    return out2d.reshape(T, B, D)


# ---------------------------------------------------------------------------
# Deterministic parameter init (shapes follow nn.MultiheadAttention / nn.Linear /
# nn.LayerNorm in the reference module; weights stored pre-transposed for x @ W).
# ---------------------------------------------------------------------------

def init_params(key, d_model, nhead, dff):
    keys = jax.random.split(key, 12)

    def w(k, shape, scale=0.1):
        return jax.random.normal(k, shape, jnp.float32) * scale

    return {
        # self_attn: in_proj (3D, D) -> stored as (D, 3D); out_proj (D, D)
        'w_in_sa_t': w(keys[0], (d_model, 3 * d_model)),
        'b_in_sa':   w(keys[1], (1, 3 * d_model)),
        'w_out_sa_t': w(keys[2], (d_model, d_model)),
        'b_out_sa':   w(keys[3], (1, d_model)),
        # multihead_attn (cross): kdim=vdim=None -> same combined in_proj layout
        'w_in_ca_t': w(keys[4], (d_model, 3 * d_model)),
        'b_in_ca':   w(keys[5], (1, 3 * d_model)),
        'w_out_ca_t': w(keys[6], (d_model, d_model)),
        'b_out_ca':   w(keys[7], (1, d_model)),
        # linear1: (dff, D) -> (D, dff); linear2: (D, dff) -> (dff, D)
        'w1_t': w(keys[8], (d_model, dff)),
        'b1':   w(keys[9], (1, dff)),
        'w2_t': w(keys[10], (dff, d_model)),
        'b2':   w(keys[11], (1, d_model)),
        # LayerNorms (affine init: ones / zeros)
        'g1': jnp.ones((1, d_model), jnp.float32), 'be1': jnp.zeros((1, d_model), jnp.float32),
        'g2': jnp.ones((1, d_model), jnp.float32), 'be2': jnp.zeros((1, d_model), jnp.float32),
        'g3': jnp.ones((1, d_model), jnp.float32), 'be3': jnp.zeros((1, d_model), jnp.float32),
    }


# ---------------------------------------------------------------------------
# Pure-JAX reference (same helpers, same bf16 weights, exact softmax reciprocal).
# ---------------------------------------------------------------------------

def reference(tgt, memory, kp, nhead):
    T, B, D = tgt.shape
    outs = []
    for b in range(B):
        x = tgt[:, b, :]
        mem = memory[:, b, :]

        k_sa, v_sa = _kv_heads(x, kp['wkv_sa'], kp['bkv_sa'], nhead)
        sa = _attention(x, k_sa, v_sa, kp['wq_sa'], kp['bq_sa'],
                        kp['wo_sa_h'], kp['bo_sa'], nhead, approx_recip=False)
        x = _layernorm(x + sa, kp['g1'], kp['be1'])

        k_ca, v_ca = _kv_heads(mem, kp['wkv_ca'], kp['bkv_ca'], nhead)
        ca = _attention(x, k_ca, v_ca, kp['wq_ca'], kp['bq_ca'],
                        kp['wo_ca_h'], kp['bo_ca'], nhead, approx_recip=False)
        x = _layernorm(x + ca, kp['g2'], kp['be2'])

        ff = _ffn(x, kp['w1'], kp['b1'], kp['w2'], kp['b2'])
        x = _layernorm(x + ff, kp['g3'], kp['be3'])
        outs.append(x)
    return jnp.stack(outs, axis=1)


if __name__ == "__main__":
    # d_model multiple of 128 keeps the lane dimension dense.
    d_model, nhead, dff = 128, 4, 256
    T, S, B = 32, 24, 2

    key = jax.random.PRNGKey(0)
    k_tgt, k_mem, k_par = jax.random.split(key, 3)
    tgt = jax.random.normal(k_tgt, (T, B, d_model), jnp.float32)
    memory = jax.random.normal(k_mem, (S, B, d_model), jnp.float32)
    params = init_params(k_par, d_model, nhead, dff)

    # tq=16 -> 2 q tiles per batch element, exercising the scratch K/V-cache path.
    out = transformer_decoder_layer(tgt, memory, params, nhead, tq=16)
    jax.block_until_ready(out)

    ref = reference(tgt, memory, prepare_params(params, nhead), nhead)
    assert out.shape == (T, B, d_model)
    err = float(jnp.max(jnp.abs(out - ref)))
    # bf16 matmuls in both paths; residual tolerance covers accumulation order +
    # the approximate softmax reciprocal used inside the kernel.
    assert jnp.allclose(out, ref, atol=2e-2, rtol=2e-2), err

    print("KERNEL_OK")
</pallas_src>

<mosaic_0001>
module attributes {stable_mosaic.version = 11 : i64} {
  func.func @decoder_layer_kernel(%arg0: i32, %arg1: i32, %arg2: memref<16x128xf32, #tpu.memory_space<vmem>>, %arg3: memref<32x128xf32, #tpu.memory_space<vmem>>, %arg4: memref<24x128xf32, #tpu.memory_space<vmem>>, %arg5: memref<128x128xbf16, #tpu.memory_space<vmem>>, %arg6: memref<1x128xf32, #tpu.memory_space<vmem>>, %arg7: memref<128x256xbf16, #tpu.memory_space<vmem>>, %arg8: memref<1x256xf32, #tpu.memory_space<vmem>>, %arg9: memref<4x32x128xbf16, #tpu.memory_space<vmem>>, %arg10: memref<1x128xf32, #tpu.memory_space<vmem>>, %arg11: memref<128x128xbf16, #tpu.memory_space<vmem>>, %arg12: memref<1x128xf32, #tpu.memory_space<vmem>>, %arg13: memref<128x256xbf16, #tpu.memory_space<vmem>>, %arg14: memref<1x256xf32, #tpu.memory_space<vmem>>, %arg15: memref<4x32x128xbf16, #tpu.memory_space<vmem>>, %arg16: memref<1x128xf32, #tpu.memory_space<vmem>>, %arg17: memref<128x256xbf16, #tpu.memory_space<vmem>>, %arg18: memref<1x256xf32, #tpu.memory_space<vmem>>, %arg19: memref<256x128xbf16, #tpu.memory_space<vmem>>, %arg20: memref<1x128xf32, #tpu.memory_space<vmem>>, %arg21: memref<1x128xf32, #tpu.memory_space<vmem>>, %arg22: memref<1x128xf32, #tpu.memory_space<vmem>>, %arg23: memref<1x128xf32, #tpu.memory_space<vmem>>, %arg24: memref<1x128xf32, #tpu.memory_space<vmem>>, %arg25: memref<1x128xf32, #tpu.memory_space<vmem>>, %arg26: memref<1x128xf32, #tpu.memory_space<vmem>>, %arg27: memref<16x128xf32, #tpu.memory_space<vmem>>, %arg28: memref<4x32x32xbf16, #tpu.memory_space<vmem>>, %arg29: memref<4x32x32xbf16, #tpu.memory_space<vmem>>, %arg30: memref<4x24x32xbf16, #tpu.memory_space<vmem>>, %arg31: memref<4x24x32xbf16, #tpu.memory_space<vmem>>) attributes {dimension_semantics = [#tpu.dimension_semantics<parallel>, #tpu.dimension_semantics<arbitrary>], iteration_bounds = array<i64: 2, 2>, scalar_prefetch = 0 : i64, scratch_operands = 4 : i64, tpu.core_type = #tpu.core_type<tc>, window_params = [{transform_indices = @transform_0, window_bounds = array<i64: 16, 128>}, {transform_indices = @transform_1, window_bounds = array<i64: 32, 128>}, {transform_indices = @transform_2, window_bounds = array<i64: 24, 128>}, {pipeline_mode = #tpu.pipeline_mode<synchronous>, transform_indices = @transform_3, window_bounds = array<i64: 128, 128>}, {pipeline_mode = #tpu.pipeline_mode<synchronous>, transform_indices = @transform_4, window_bounds = array<i64: 1, 128>}, {pipeline_mode = #tpu.pipeline_mode<synchronous>, transform_indices = @transform_5, window_bounds = array<i64: 128, 256>}, {pipeline_mode = #tpu.pipeline_mode<synchronous>, transform_indices = @transform_6, window_bounds = array<i64: 1, 256>}, {pipeline_mode = #tpu.pipeline_mode<synchronous>, transform_indices = @transform_7, window_bounds = array<i64: 4, 32, 128>}, {pipeline_mode = #tpu.pipeline_mode<synchronous>, transform_indices = @transform_8, window_bounds = array<i64: 1, 128>}, {pipeline_mode = #tpu.pipeline_mode<synchronous>, transform_indices = @transform_9, window_bounds = array<i64: 128, 128>}, {pipeline_mode = #tpu.pipeline_mode<synchronous>, transform_indices = @transform_10, window_bounds = array<i64: 1, 128>}, {pipeline_mode = #tpu.pipeline_mode<synchronous>, transform_indices = @transform_11, window_bounds = array<i64: 128, 256>}, {pipeline_mode = #tpu.pipeline_mode<synchronous>, transform_indices = @transform_12, window_bounds = array<i64: 1, 256>}, {pipeline_mode = #tpu.pipeline_mode<synchronous>, transform_indices = @transform_13, window_bounds = array<i64: 4, 32, 128>}, {pipeline_mode = #tpu.pipeline_mode<synchronous>, transform_indices = @transform_14, window_bounds = array<i64: 1, 128>}, {pipeline_mode = #tpu.pipeline_mode<synchronous>, transform_indices = @transform_15, window_bounds = array<i64: 128, 256>}, {pipeline_mode = #tpu.pipeline_mode<synchronous>, transform_indices = @transform_16, window_bounds = array<i64: 1, 256>}, {pipeline_mode = #tpu.pipeline_mode<synchronous>, transform_indices = @transform_17, window_bounds = array<i64: 256, 128>}, {pipeline_mode = #tpu.pipeline_mode<synchronous>, transform_indices = @transform_18, window_bounds = array<i64: 1, 128>}, {pipeline_mode = #tpu.pipeline_mode<synchronous>, transform_indices = @transform_19, window_bounds = array<i64: 1, 128>}, {pipeline_mode = #tpu.pipeline_mode<synchronous>, transform_indices = @transform_20, window_bounds = array<i64: 1, 128>}, {pipeline_mode = #tpu.pipeline_mode<synchronous>, transform_indices = @transform_21, window_bounds = array<i64: 1, 128>}, {pipeline_mode = #tpu.pipeline_mode<synchronous>, transform_indices = @transform_22, window_bounds = array<i64: 1, 128>}, {pipeline_mode = #tpu.pipeline_mode<synchronous>, transform_indices = @transform_23, window_bounds = array<i64: 1, 128>}, {pipeline_mode = #tpu.pipeline_mode<synchronous>, transform_indices = @transform_24, window_bounds = array<i64: 1, 128>}, {transform_indices = @transform_25, window_bounds = array<i64: 16, 128>}]} {
    %c0_i32 = arith.constant 0 : i32
    %0 = arith.cmpi eq, %arg1, %c0_i32 : i32
    %1 = arith.extui %0 : i1 to i32
    %c0_i32_0 = arith.constant 0 : i32
    %2 = arith.cmpi ne, %1, %c0_i32_0 : i32
    scf.if %2 {
      %c0_85 = arith.constant 0 : index
      %c0_86 = arith.constant 0 : index
      %170 = vector.load %arg3[%c0_85, %c0_86] : memref<32x128xf32, #tpu.memory_space<vmem>>, vector<32x128xf32>
      %c0_87 = arith.constant 0 : index
      %c0_88 = arith.constant 0 : index
      %171 = vector.load %arg7[%c0_87, %c0_88] : memref<128x256xbf16, #tpu.memory_space<vmem>>, vector<128x256xbf16>
      %c0_89 = arith.constant 0 : index
      %c0_90 = arith.constant 0 : index
      %172 = vector.load %arg8[%c0_89, %c0_90] : memref<1x256xf32, #tpu.memory_space<vmem>>, vector<1x256xf32>
      %173 = arith.truncf %170 : vector<32x128xf32> to vector<32x128xbf16>
      %cst_91 = arith.constant dense<0.000000e+00> : vector<32x256xf32>
      %174 = tpu.matmul %173, %171, %cst_91 {dimension_numbers = #tpu.dot_dimension_numbers<[1], [0], [0], [1], [0, 0, 1, 1], [], []>} : vector<32x128xbf16>, vector<128x256xbf16>, vector<32x256xf32> -> vector<32x256xf32>
      %175 = vector.broadcast %172 : vector<1x256xf32> to vector<32x256xf32>
      %176 = arith.addf %174, %175 : vector<32x256xf32>
      %177 = vector.extract_strided_slice %176 {offsets = [0, 0], sizes = [32, 128], strides = [1, 1]} : vector<32x256xf32> to vector<32x128xf32>
      %178 = vector.extract_strided_slice %177 {offsets = [0, 0], sizes = [32, 32], strides = [1, 1]} : vector<32x128xf32> to vector<32x32xf32>
      %179 = vector.extract_strided_slice %177 {offsets = [0, 32], sizes = [32, 32], strides = [1, 1]} : vector<32x128xf32> to vector<32x32xf32>
      %180 = vector.extract_strided_slice %177 {offsets = [0, 64], sizes = [32, 32], strides = [1, 1]} : vector<32x128xf32> to vector<32x32xf32>
      %181 = vector.extract_strided_slice %177 {offsets = [0, 96], sizes = [32, 32], strides = [1, 1]} : vector<32x128xf32> to vector<32x32xf32>
      %182 = vector.shape_cast %178 : vector<32x32xf32> to vector<1x32x32xf32>
      %183 = vector.shape_cast %179 : vector<32x32xf32> to vector<1x32x32xf32>
      %184 = vector.shape_cast %180 : vector<32x32xf32> to vector<1x32x32xf32>
      %185 = vector.shape_cast %181 : vector<32x32xf32> to vector<1x32x32xf32>
      %186 = tpu.concatenate %182, %183, %184, %185 in 0 : vector<1x32x32xf32>, vector<1x32x32xf32>, vector<1x32x32xf32>, vector<1x32x32xf32> -> vector<4x32x32xf32>
      %187 = arith.truncf %186 : vector<4x32x32xf32> to vector<4x32x32xbf16>
      %188 = vector.extract_strided_slice %176 {offsets = [0, 128], sizes = [32, 128], strides = [1, 1]} : vector<32x256xf32> to vector<32x128xf32>
      %189 = vector.extract_strided_slice %188 {offsets = [0, 0], sizes = [32, 32], strides = [1, 1]} : vector<32x128xf32> to vector<32x32xf32>
      %190 = vector.extract_strided_slice %188 {offsets = [0, 32], sizes = [32, 32], strides = [1, 1]} : vector<32x128xf32> to vector<32x32xf32>
      %191 = vector.extract_strided_slice %188 {offsets = [0, 64], sizes = [32, 32], strides = [1, 1]} : vector<32x128xf32> to vector<32x32xf32>
      %192 = vector.extract_strided_slice %188 {offsets = [0, 96], sizes = [32, 32], strides = [1, 1]} : vector<32x128xf32> to vector<32x32xf32>
      %193 = vector.shape_cast %189 : vector<32x32xf32> to vector<1x32x32xf32>
      %194 = vector.shape_cast %190 : vector<32x32xf32> to vector<1x32x32xf32>
      %195 = vector.shape_cast %191 : vector<32x32xf32> to vector<1x32x32xf32>
      %196 = vector.shape_cast %192 : vector<32x32xf32> to vector<1x32x32xf32>
      %197 = tpu.concatenate %193, %194, %195, %196 in 0 : vector<1x32x32xf32>, vector<1x32x32xf32>, vector<1x32x32xf32>, vector<1x32x32xf32> -> vector<4x32x32xf32>
      %198 = arith.truncf %197 : vector<4x32x32xf32> to vector<4x32x32xbf16>
      %c0_92 = arith.constant 0 : index
      %c0_93 = arith.constant 0 : index
      %c0_94 = arith.constant 0 : index
      %199 = vector.load %arg28[%c0_92, %c0_93, %c0_94] : memref<4x32x32xbf16, #tpu.memory_space<vmem>>, vector<4x32x32xbf16>
      tpu.vector_store %arg28[%c0_92, %c0_93, %c0_94], %187 {strides = array<i32>} : memref<4x32x32xbf16, #tpu.memory_space<vmem>>, vector<4x32x32xbf16>,
      %c0_95 = arith.constant 0 : index
      %c0_96 = arith.constant 0 : index
      %c0_97 = arith.constant 0 : index
      %200 = vector.load %arg29[%c0_95, %c0_96, %c0_97] : memref<4x32x32xbf16, #tpu.memory_space<vmem>>, vector<4x32x32xbf16>
      tpu.vector_store %arg29[%c0_95, %c0_96, %c0_97], %198 {strides = array<i32>} : memref<4x32x32xbf16, #tpu.memory_space<vmem>>, vector<4x32x32xbf16>,
      %c0_98 = arith.constant 0 : index
      %c0_99 = arith.constant 0 : index
      %201 = vector.load %arg4[%c0_98, %c0_99] : memref<24x128xf32, #tpu.memory_space<vmem>>, vector<24x128xf32>
      %c0_100 = arith.constant 0 : index
      %c0_101 = arith.constant 0 : index
      %202 = vector.load %arg13[%c0_100, %c0_101] : memref<128x256xbf16, #tpu.memory_space<vmem>>, vector<128x256xbf16>
      %c0_102 = arith.constant 0 : index
      %c0_103 = arith.constant 0 : index
      %203 = vector.load %arg14[%c0_102, %c0_103] : memref<1x256xf32, #tpu.memory_space<vmem>>, vector<1x256xf32>
      %204 = arith.truncf %201 : vector<24x128xf32> to vector<24x128xbf16>
      %cst_104 = arith.constant dense<0.000000e+00> : vector<24x256xf32>
      %205 = tpu.matmul %204, %202, %cst_104 {dimension_numbers = #tpu.dot_dimension_numbers<[1], [0], [0], [1], [0, 0, 1, 1], [], []>} : vector<24x128xbf16>, vector<128x256xbf16>, vector<24x256xf32> -> vector<24x256xf32>
      %206 = vector.broadcast %203 : vector<1x256xf32> to vector<24x256xf32>
      %207 = arith.addf %205, %206 : vector<24x256xf32>
      %208 = vector.extract_strided_slice %207 {offsets = [0, 0], sizes = [24, 128], strides = [1, 1]} : vector<24x256xf32> to vector<24x128xf32>
      %209 = vector.extract_strided_slice %208 {offsets = [0, 0], sizes = [24, 32], strides = [1, 1]} : vector<24x128xf32> to vector<24x32xf32>
      %210 = vector.extract_strided_slice %208 {offsets = [0, 32], sizes = [24, 32], strides = [1, 1]} : vector<24x128xf32> to vector<24x32xf32>
      %211 = vector.extract_strided_slice %208 {offsets = [0, 64], sizes = [24, 32], strides = [1, 1]} : vector<24x128xf32> to vector<24x32xf32>
      %212 = vector.extract_strided_slice %208 {offsets = [0, 96], sizes = [24, 32], strides = [1, 1]} : vector<24x128xf32> to vector<24x32xf32>
      %213 = vector.shape_cast %209 : vector<24x32xf32> to vector<1x24x32xf32>
      %214 = vector.shape_cast %210 : vector<24x32xf32> to vector<1x24x32xf32>
      %215 = vector.shape_cast %211 : vector<24x32xf32> to vector<1x24x32xf32>
      %216 = vector.shape_cast %212 : vector<24x32xf32> to vector<1x24x32xf32>
      %217 = tpu.concatenate %213, %214, %215, %216 in 0 : vector<1x24x32xf32>, vector<1x24x32xf32>, vector<1x24x32xf32>, vector<1x24x32xf32> -> vector<4x24x32xf32>
      %218 = arith.truncf %217 : vector<4x24x32xf32> to vector<4x24x32xbf16>
      %219 = vector.extract_strided_slice %207 {offsets = [0, 128], sizes = [24, 128], strides = [1, 1]} : vector<24x256xf32> to vector<24x128xf32>
      %220 = vector.extract_strided_slice %219 {offsets = [0, 0], sizes = [24, 32], strides = [1, 1]} : vector<24x128xf32> to vector<24x32xf32>
      %221 = vector.extract_strided_slice %219 {offsets = [0, 32], sizes = [24, 32], strides = [1, 1]} : vector<24x128xf32> to vector<24x32xf32>
      %222 = vector.extract_strided_slice %219 {offsets = [0, 64], sizes = [24, 32], strides = [1, 1]} : vector<24x128xf32> to vector<24x32xf32>
      %223 = vector.extract_strided_slice %219 {offsets = [0, 96], sizes = [24, 32], strides = [1, 1]} : vector<24x128xf32> to vector<24x32xf32>
      %224 = vector.shape_cast %220 : vector<24x32xf32> to vector<1x24x32xf32>
      %225 = vector.shape_cast %221 : vector<24x32xf32> to vector<1x24x32xf32>
      %226 = vector.shape_cast %222 : vector<24x32xf32> to vector<1x24x32xf32>
      %227 = vector.shape_cast %223 : vector<24x32xf32> to vector<1x24x32xf32>
      %228 = tpu.concatenate %224, %225, %226, %227 in 0 : vector<1x24x32xf32>, vector<1x24x32xf32>, vector<1x24x32xf32>, vector<1x24x32xf32> -> vector<4x24x32xf32>
      %229 = arith.truncf %228 : vector<4x24x32xf32> to vector<4x24x32xbf16>
      %c0_105 = arith.constant 0 : index
      %c0_106 = arith.constant 0 : index
      %c0_107 = arith.constant 0 : index
      %230 = vector.load %arg30[%c0_105, %c0_106, %c0_107] : memref<4x24x32xbf16, #tpu.memory_space<vmem>>, vector<4x24x32xbf16>
      tpu.vector_store %arg30[%c0_105, %c0_106, %c0_107], %218 {strides = array<i32>} : memref<4x24x32xbf16, #tpu.memory_space<vmem>>, vector<4x24x32xbf16>,
      %c0_108 = arith.constant 0 : index
      %c0_109 = arith.constant 0 : index
      %c0_110 = arith.constant 0 : index
      %231 = vector.load %arg31[%c0_108, %c0_109, %c0_110] : memref<4x24x32xbf16, #tpu.memory_space<vmem>>, vector<4x24x32xbf16>
      tpu.vector_store %arg31[%c0_108, %c0_109, %c0_110], %229 {strides = array<i32>} : memref<4x24x32xbf16, #tpu.memory_space<vmem>>, vector<4x24x32xbf16>,
    } else {
    }
    %c0 = arith.constant 0 : index
    %c0_1 = arith.constant 0 : index
    %3 = vector.load %arg2[%c0, %c0_1] : memref<16x128xf32, #tpu.memory_space<vmem>>, vector<16x128xf32>
    %c0_2 = arith.constant 0 : index
    %c0_3 = arith.constant 0 : index
    %c0_4 = arith.constant 0 : index
    %4 = vector.load %arg28[%c0_2, %c0_3, %c0_4] : memref<4x32x32xbf16, #tpu.memory_space<vmem>>, vector<4x32x32xbf16>
    %c0_5 = arith.constant 0 : index
    %c0_6 = arith.constant 0 : index
    %c0_7 = arith.constant 0 : index
    %5 = vector.load %arg29[%c0_5, %c0_6, %c0_7] : memref<4x32x32xbf16, #tpu.memory_space<vmem>>, vector<4x32x32xbf16>
    %c0_8 = arith.constant 0 : index
    %c0_9 = arith.constant 0 : index
    %6 = vector.load %arg5[%c0_8, %c0_9] : memref<128x128xbf16, #tpu.memory_space<vmem>>, vector<128x128xbf16>
    %c0_10 = arith.constant 0 : index
    %c0_11 = arith.constant 0 : index
    %7 = vector.load %arg6[%c0_10, %c0_11] : memref<1x128xf32, #tpu.memory_space<vmem>>, vector<1x128xf32>
    %c0_12 = arith.constant 0 : index
    %c0_13 = arith.constant 0 : index
    %c0_14 = arith.constant 0 : index
    %8 = vector.load %arg9[%c0_12, %c0_13, %c0_14] : memref<4x32x128xbf16, #tpu.memory_space<vmem>>, vector<4x32x128xbf16>
    %c0_15 = arith.constant 0 : index
    %c0_16 = arith.constant 0 : index
    %9 = vector.load %arg10[%c0_15, %c0_16] : memref<1x128xf32, #tpu.memory_space<vmem>>, vector<1x128xf32>
    %10 = arith.truncf %3 : vector<16x128xf32> to vector<16x128xbf16>
    %cst = arith.constant dense<0.000000e+00> : vector<16x128xf32>
    %11 = tpu.matmul %10, %6, %cst {dimension_numbers = #tpu.dot_dimension_numbers<[1], [0], [0], [1], [0, 0, 1, 1], [], []>} : vector<16x128xbf16>, vector<128x128xbf16>, vector<16x128xf32> -> vector<16x128xf32>
    %12 = vector.broadcast %7 : vector<1x128xf32> to vector<16x128xf32>
    %13 = arith.addf %11, %12 : vector<16x128xf32>
    %14 = vector.extract_strided_slice %13 {offsets = [0, 0], sizes = [16, 32], strides = [1, 1]} : vector<16x128xf32> to vector<16x32xf32>
    %15 = vector.extract_strided_slice %13 {offsets = [0, 32], sizes = [16, 32], strides = [1, 1]} : vector<16x128xf32> to vector<16x32xf32>
    %16 = vector.extract_strided_slice %13 {offsets = [0, 64], sizes = [16, 32], strides = [1, 1]} : vector<16x128xf32> to vector<16x32xf32>
    %17 = vector.extract_strided_slice %13 {offsets = [0, 96], sizes = [16, 32], strides = [1, 1]} : vector<16x128xf32> to vector<16x32xf32>
    %18 = vector.shape_cast %14 : vector<16x32xf32> to vector<1x16x32xf32>
    %19 = vector.shape_cast %15 : vector<16x32xf32> to vector<1x16x32xf32>
    %20 = vector.shape_cast %16 : vector<16x32xf32> to vector<1x16x32xf32>
    %21 = vector.shape_cast %17 : vector<16x32xf32> to vector<1x16x32xf32>
    %22 = tpu.concatenate %18, %19, %20, %21 in 0 : vector<1x16x32xf32>, vector<1x16x32xf32>, vector<1x16x32xf32>, vector<1x16x32xf32> -> vector<4x16x32xf32>
    %23 = arith.truncf %22 : vector<4x16x32xf32> to vector<4x16x32xbf16>
    "tpu.trace_start"() <{level = 10 : i32, message = "hqd,hkd->hqk"}> : () -> ()
    %cst_17 = arith.constant dense<0.000000e+00> : vector<4x16x32xf32>
    %24 = tpu.matmul %23, %4, %cst_17 {dimension_numbers = #tpu.dot_dimension_numbers<[2], [2], [1], [1], [0, 0, 0, 1, 1, 1], [0], [0]>} : vector<4x16x32xbf16>, vector<4x32x32xbf16>, vector<4x16x32xf32> -> vector<4x16x32xf32>
    "tpu.trace_stop"() : () -> ()
    %cst_18 = arith.constant dense<0xFF800000> : vector<4x16xf32>
    %25 = vector.multi_reduction <maximumf>, %24, %cst_18 [2] : vector<4x16x32xf32> to vector<4x16xf32>
    %26 = vector.shape_cast %25 : vector<4x16xf32> to vector<4x16x1xf32>
    %27 = vector.broadcast %26 : vector<4x16x1xf32> to vector<4x16x32xf32>
    %28 = arith.subf %24, %27 : vector<4x16x32xf32>
    %29 = math.exp %28 : vector<4x16x32xf32>
    %cst_19 = arith.constant dense<0.000000e+00> : vector<4x16xf32>
    %30 = vector.multi_reduction <add>, %29, %cst_19 [2] : vector<4x16x32xf32> to vector<4x16xf32>
    %31 = vector.shape_cast %30 : vector<4x16xf32> to vector<4x16x1xf32>
    %32 = tpu.reciprocal %31 {approx = true} : vector<4x16x1xf32> -> vector<4x16x1xf32>
    %33 = vector.broadcast %32 : vector<4x16x1xf32> to vector<4x16x32xf32>
    %34 = arith.mulf %29, %33 : vector<4x16x32xf32>
    %35 = arith.truncf %34 : vector<4x16x32xf32> to vector<4x16x32xbf16>
    "tpu.trace_start"() <{level = 10 : i32, message = "hqk,hkd->hqd"}> : () -> ()
    %cst_20 = arith.constant dense<0.000000e+00> : vector<4x16x32xf32>
    %36 = tpu.matmul %35, %5, %cst_20 {dimension_numbers = #tpu.dot_dimension_numbers<[2], [1], [1], [2], [0, 0, 0, 1, 1, 2], [0], [0]>} : vector<4x16x32xbf16>, vector<4x32x32xbf16>, vector<4x16x32xf32> -> vector<4x16x32xf32>
    "tpu.trace_stop"() : () -> ()
    %37 = arith.truncf %36 : vector<4x16x32xf32> to vector<4x16x32xbf16>
    "tpu.trace_start"() <{level = 10 : i32, message = "hqd,hde->hqe"}> : () -> ()
    %cst_21 = arith.constant dense<0.000000e+00> : vector<4x16x128xf32>
    %38 = tpu.matmul %37, %8, %cst_21 {dimension_numbers = #tpu.dot_dimension_numbers<[2], [1], [1], [2], [0, 0, 0, 1, 1, 2], [0], [0]>} : vector<4x16x32xbf16>, vector<4x32x128xbf16>, vector<4x16x128xf32> -> vector<4x16x128xf32>
    "tpu.trace_stop"() : () -> ()
    %cst_22 = arith.constant dense<0.000000e+00> : vector<16x128xf32>
    %39 = vector.multi_reduction <add>, %38, %cst_22 [0] : vector<4x16x128xf32> to vector<16x128xf32>
    %40 = vector.broadcast %9 : vector<1x128xf32> to vector<16x128xf32>
    %41 = arith.addf %39, %40 : vector<16x128xf32>
    %42 = arith.addf %3, %41 : vector<16x128xf32>
    %c0_23 = arith.constant 0 : index
    %c0_24 = arith.constant 0 : index
    %43 = vector.load %arg21[%c0_23, %c0_24] : memref<1x128xf32, #tpu.memory_space<vmem>>, vector<1x128xf32>
    %c0_25 = arith.constant 0 : index
    %c0_26 = arith.constant 0 : index
    %44 = vector.load %arg22[%c0_25, %c0_26] : memref<1x128xf32, #tpu.memory_space<vmem>>, vector<1x128xf32>
    %cst_27 = arith.constant dense<0.000000e+00> : vector<16xf32>
    %45 = vector.multi_reduction <add>, %42, %cst_27 [1] : vector<16x128xf32> to vector<16xf32>
    %46 = vector.shape_cast %45 : vector<16xf32> to vector<16x1xf32>
    %cst_28 = arith.constant 1.280000e+02 : f32
    %47 = vector.broadcast %cst_28 : f32 to vector<16x1xf32>
    %48 = arith.divf %46, %47 : vector<16x1xf32>
    %49 = vector.broadcast %48 : vector<16x1xf32> to vector<16x128xf32>
    %50 = arith.subf %42, %49 : vector<16x128xf32>
    %51 = arith.mulf %50, %50 : vector<16x128xf32>
    %cst_29 = arith.constant dense<0.000000e+00> : vector<16xf32>
    %52 = vector.multi_reduction <add>, %51, %cst_29 [1] : vector<16x128xf32> to vector<16xf32>
    %53 = vector.shape_cast %52 : vector<16xf32> to vector<16x1xf32>
    %cst_30 = arith.constant 1.280000e+02 : f32
    %54 = vector.broadcast %cst_30 : f32 to vector<16x1xf32>
    %55 = arith.divf %53, %54 : vector<16x1xf32>
    %56 = vector.broadcast %48 : vector<16x1xf32> to vector<16x128xf32>
    %57 = arith.subf %42, %56 : vector<16x128xf32>
    %cst_31 = arith.constant 9.99999974E-6 : f32
    %58 = vector.broadcast %cst_31 : f32 to vector<16x1xf32>
    %59 = arith.addf %55, %58 : vector<16x1xf32>
    %60 = math.rsqrt %59 : vector<16x1xf32>
    %61 = vector.broadcast %60 : vector<16x1xf32> to vector<16x128xf32>
    %62 = arith.mulf %57, %61 : vector<16x128xf32>
    %63 = vector.broadcast %43 : vector<1x128xf32> to vector<16x128xf32>
    %64 = arith.mulf %62, %63 : vector<16x128xf32>
    %65 = vector.broadcast %44 : vector<1x128xf32> to vector<16x128xf32>
    %66 = arith.addf %64, %65 : vector<16x128xf32>
    %c0_32 = arith.constant 0 : index
    %c0_33 = arith.constant 0 : index
    %c0_34 = arith.constant 0 : index
    %67 = vector.load %arg30[%c0_32, %c0_33, %c0_34] : memref<4x24x32xbf16, #tpu.memory_space<vmem>>, vector<4x24x32xbf16>
    %c0_35 = arith.constant 0 : index
    %c0_36 = arith.constant 0 : index
    %c0_37 = arith.constant 0 : index
    %68 = vector.load %arg31[%c0_35, %c0_36, %c0_37] : memref<4x24x32xbf16, #tpu.memory_space<vmem>>, vector<4x24x32xbf16>
    %c0_38 = arith.constant 0 : index
    %c0_39 = arith.constant 0 : index
    %69 = vector.load %arg11[%c0_38, %c0_39] : memref<128x128xbf16, #tpu.memory_space<vmem>>, vector<128x128xbf16>
    %c0_40 = arith.constant 0 : index
    %c0_41 = arith.constant 0 : index
    %70 = vector.load %arg12[%c0_40, %c0_41] : memref<1x128xf32, #tpu.memory_space<vmem>>, vector<1x128xf32>
    %c0_42 = arith.constant 0 : index
    %c0_43 = arith.constant 0 : index
    %c0_44 = arith.constant 0 : index
    %71 = vector.load %arg15[%c0_42, %c0_43, %c0_44] : memref<4x32x128xbf16, #tpu.memory_space<vmem>>, vector<4x32x128xbf16>
    %c0_45 = arith.constant 0 : index
    %c0_46 = arith.constant 0 : index
    %72 = vector.load %arg16[%c0_45, %c0_46] : memref<1x128xf32, #tpu.memory_space<vmem>>, vector<1x128xf32>
    %73 = arith.truncf %66 : vector<16x128xf32> to vector<16x128xbf16>
    %cst_47 = arith.constant dense<0.000000e+00> : vector<16x128xf32>
    %74 = tpu.matmul %73, %69, %cst_47 {dimension_numbers = #tpu.dot_dimension_numbers<[1], [0], [0], [1], [0, 0, 1, 1], [], []>} : vector<16x128xbf16>, vector<128x128xbf16>, vector<16x128xf32> -> vector<16x128xf32>
    %75 = vector.broadcast %70 : vector<1x128xf32> to vector<16x128xf32>
    %76 = arith.addf %74, %75 : vector<16x128xf32>
    %77 = vector.extract_strided_slice %76 {offsets = [0, 0], sizes = [16, 32], strides = [1, 1]} : vector<16x128xf32> to vector<16x32xf32>
    %78 = vector.extract_strided_slice %76 {offsets = [0, 32], sizes = [16, 32], strides = [1, 1]} : vector<16x128xf32> to vector<16x32xf32>
    %79 = vector.extract_strided_slice %76 {offsets = [0, 64], sizes = [16, 32], strides = [1, 1]} : vector<16x128xf32> to vector<16x32xf32>
    %80 = vector.extract_strided_slice %76 {offsets = [0, 96], sizes = [16, 32], strides = [1, 1]} : vector<16x128xf32> to vector<16x32xf32>
    %81 = vector.shape_cast %77 : vector<16x32xf32> to vector<1x16x32xf32>
    %82 = vector.shape_cast %78 : vector<16x32xf32> to vector<1x16x32xf32>
    %83 = vector.shape_cast %79 : vector<16x32xf32> to vector<1x16x32xf32>
    %84 = vector.shape_cast %80 : vector<16x32xf32> to vector<1x16x32xf32>
    %85 = tpu.concatenate %81, %82, %83, %84 in 0 : vector<1x16x32xf32>, vector<1x16x32xf32>, vector<1x16x32xf32>, vector<1x16x32xf32> -> vector<4x16x32xf32>
    %86 = arith.truncf %85 : vector<4x16x32xf32> to vector<4x16x32xbf16>
    "tpu.trace_start"() <{level = 10 : i32, message = "hqd,hkd->hqk"}> : () -> ()
    %cst_48 = arith.constant dense<0.000000e+00> : vector<4x16x24xf32>
    %87 = tpu.matmul %86, %67, %cst_48 {dimension_numbers = #tpu.dot_dimension_numbers<[2], [2], [1], [1], [0, 0, 0, 1, 1, 1], [0], [0]>} : vector<4x16x32xbf16>, vector<4x24x32xbf16>, vector<4x16x24xf32> -> vector<4x16x24xf32>
    "tpu.trace_stop"() : () -> ()
    %cst_49 = arith.constant dense<0xFF800000> : vector<4x16xf32>
    %88 = vector.multi_reduction <maximumf>, %87, %cst_49 [2] : vector<4x16x24xf32> to vector<4x16xf32>
    %89 = vector.shape_cast %88 : vector<4x16xf32> to vector<4x16x1xf32>
    %90 = vector.broadcast %89 : vector<4x16x1xf32> to vector<4x16x24xf32>
    %91 = arith.subf %87, %90 : vector<4x16x24xf32>
    %92 = math.exp %91 : vector<4x16x24xf32>
    %cst_50 = arith.constant dense<0.000000e+00> : vector<4x16xf32>
    %93 = vector.multi_reduction <add>, %92, %cst_50 [2] : vector<4x16x24xf32> to vector<4x16xf32>
    %94 = vector.shape_cast %93 : vector<4x16xf32> to vector<4x16x1xf32>
    %95 = tpu.reciprocal %94 {approx = true} : vector<4x16x1xf32> -> vector<4x16x1xf32>
    %96 = vector.broadcast %95 : vector<4x16x1xf32> to vector<4x16x24xf32>
    %97 = arith.mulf %92, %96 : vector<4x16x24xf32>
    %98 = arith.truncf %97 : vector<4x16x24xf32> to vector<4x16x24xbf16>
    "tpu.trace_start"() <{level = 10 : i32, message = "hqk,hkd->hqd"}> : () -> ()
    %cst_51 = arith.constant dense<0.000000e+00> : vector<4x16x32xf32>
    %99 = tpu.matmul %98, %68, %cst_51 {dimension_numbers = #tpu.dot_dimension_numbers<[2], [1], [1], [2], [0, 0, 0, 1, 1, 2], [0], [0]>} : vector<4x16x24xbf16>, vector<4x24x32xbf16>, vector<4x16x32xf32> -> vector<4x16x32xf32>
    "tpu.trace_stop"() : () -> ()
    %100 = arith.truncf %99 : vector<4x16x32xf32> to vector<4x16x32xbf16>
    "tpu.trace_start"() <{level = 10 : i32, message = "hqd,hde->hqe"}> : () -> ()
    %cst_52 = arith.constant dense<0.000000e+00> : vector<4x16x128xf32>
    %101 = tpu.matmul %100, %71, %cst_52 {dimension_numbers = #tpu.dot_dimension_numbers<[2], [1], [1], [2], [0, 0, 0, 1, 1, 2], [0], [0]>} : vector<4x16x32xbf16>, vector<4x32x128xbf16>, vector<4x16x128xf32> -> vector<4x16x128xf32>
    "tpu.trace_stop"() : () -> ()
    %cst_53 = arith.constant dense<0.000000e+00> : vector<16x128xf32>
    %102 = vector.multi_reduction <add>, %101, %cst_53 [0] : vector<4x16x128xf32> to vector<16x128xf32>
    %103 = vector.broadcast %72 : vector<1x128xf32> to vector<16x128xf32>
    %104 = arith.addf %102, %103 : vector<16x128xf32>
    %105 = arith.addf %66, %104 : vector<16x128xf32>
    %c0_54 = arith.constant 0 : index
    %c0_55 = arith.constant 0 : index
    %106 = vector.load %arg23[%c0_54, %c0_55] : memref<1x128xf32, #tpu.memory_space<vmem>>, vector<1x128xf32>
    %c0_56 = arith.constant 0 : index
    %c0_57 = arith.constant 0 : index
    %107 = vector.load %arg24[%c0_56, %c0_57] : memref<1x128xf32, #tpu.memory_space<vmem>>, vector<1x128xf32>
    %cst_58 = arith.constant dense<0.000000e+00> : vector<16xf32>
    %108 = vector.multi_reduction <add>, %105, %cst_58 [1] : vector<16x128xf32> to vector<16xf32>
    %109 = vector.shape_cast %108 : vector<16xf32> to vector<16x1xf32>
    %cst_59 = arith.constant 1.280000e+02 : f32
    %110 = vector.broadcast %cst_59 : f32 to vector<16x1xf32>
    %111 = arith.divf %109, %110 : vector<16x1xf32>
    %112 = vector.broadcast %111 : vector<16x1xf32> to vector<16x128xf32>
    %113 = arith.subf %105, %112 : vector<16x128xf32>
    %114 = arith.mulf %113, %113 : vector<16x128xf32>
    %cst_60 = arith.constant dense<0.000000e+00> : vector<16xf32>
    %115 = vector.multi_reduction <add>, %114, %cst_60 [1] : vector<16x128xf32> to vector<16xf32>
    %116 = vector.shape_cast %115 : vector<16xf32> to vector<16x1xf32>
    %cst_61 = arith.constant 1.280000e+02 : f32
    %117 = vector.broadcast %cst_61 : f32 to vector<16x1xf32>
    %118 = arith.divf %116, %117 : vector<16x1xf32>
    %119 = vector.broadcast %111 : vector<16x1xf32> to vector<16x128xf32>
    %120 = arith.subf %105, %119 : vector<16x128xf32>
    %cst_62 = arith.constant 9.99999974E-6 : f32
    %121 = vector.broadcast %cst_62 : f32 to vector<16x1xf32>
    %122 = arith.addf %118, %121 : vector<16x1xf32>
    %123 = math.rsqrt %122 : vector<16x1xf32>
    %124 = vector.broadcast %123 : vector<16x1xf32> to vector<16x128xf32>
    %125 = arith.mulf %120, %124 : vector<16x128xf32>
    %126 = vector.broadcast %106 : vector<1x128xf32> to vector<16x128xf32>
    %127 = arith.mulf %125, %126 : vector<16x128xf32>
    %128 = vector.broadcast %107 : vector<1x128xf32> to vector<16x128xf32>
    %129 = arith.addf %127, %128 : vector<16x128xf32>
    %c0_63 = arith.constant 0 : index
    %c0_64 = arith.constant 0 : index
    %130 = vector.load %arg17[%c0_63, %c0_64] : memref<128x256xbf16, #tpu.memory_space<vmem>>, vector<128x256xbf16>
    %c0_65 = arith.constant 0 : index
    %c0_66 = arith.constant 0 : index
    %131 = vector.load %arg18[%c0_65, %c0_66] : memref<1x256xf32, #tpu.memory_space<vmem>>, vector<1x256xf32>
    %c0_67 = arith.constant 0 : index
    %c0_68 = arith.constant 0 : index
    %132 = vector.load %arg19[%c0_67, %c0_68] : memref<256x128xbf16, #tpu.memory_space<vmem>>, vector<256x128xbf16>
    %c0_69 = arith.constant 0 : index
    %c0_70 = arith.constant 0 : index
    %133 = vector.load %arg20[%c0_69, %c0_70] : memref<1x128xf32, #tpu.memory_space<vmem>>, vector<1x128xf32>
    %134 = arith.truncf %129 : vector<16x128xf32> to vector<16x128xbf16>
    %cst_71 = arith.constant dense<0.000000e+00> : vector<16x256xf32>
    %135 = tpu.matmul %134, %130, %cst_71 {dimension_numbers = #tpu.dot_dimension_numbers<[1], [0], [0], [1], [0, 0, 1, 1], [], []>} : vector<16x128xbf16>, vector<128x256xbf16>, vector<16x256xf32> -> vector<16x256xf32>
    %136 = vector.broadcast %131 : vector<1x256xf32> to vector<16x256xf32>
    %137 = arith.addf %135, %136 : vector<16x256xf32>
    %cst_72 = arith.constant 0.000000e+00 : f32
    %138 = vector.broadcast %cst_72 : f32 to vector<16x256xf32>
    %139 = arith.maximumf %137, %138 : vector<16x256xf32>
    %140 = arith.truncf %139 : vector<16x256xf32> to vector<16x256xbf16>
    %cst_73 = arith.constant dense<0.000000e+00> : vector<16x128xf32>
    %141 = tpu.matmul %140, %132, %cst_73 {dimension_numbers = #tpu.dot_dimension_numbers<[1], [0], [0], [1], [0, 0, 1, 1], [], []>} : vector<16x256xbf16>, vector<256x128xbf16>, vector<16x128xf32> -> vector<16x128xf32>
    %142 = vector.broadcast %133 : vector<1x128xf32> to vector<16x128xf32>
    %143 = arith.addf %141, %142 : vector<16x128xf32>
    %144 = arith.addf %129, %143 : vector<16x128xf32>
    %c0_74 = arith.constant 0 : index
    %c0_75 = arith.constant 0 : index
    %145 = vector.load %arg25[%c0_74, %c0_75] : memref<1x128xf32, #tpu.memory_space<vmem>>, vector<1x128xf32>
    %c0_76 = arith.constant 0 : index
    %c0_77 = arith.constant 0 : index
    %146 = vector.load %arg26[%c0_76, %c0_77] : memref<1x128xf32, #tpu.memory_space<vmem>>, vector<1x128xf32>
    %cst_78 = arith.constant dense<0.000000e+00> : vector<16xf32>
    %147 = vector.multi_reduction <add>, %144, %cst_78 [1] : vector<16x128xf32> to vector<16xf32>
    %148 = vector.shape_cast %147 : vector<16xf32> to vector<16x1xf32>
    %cst_79 = arith.constant 1.280000e+02 : f32
    %149 = vector.broadcast %cst_79 : f32 to vector<16x1xf32>
    %150 = arith.divf %148, %149 : vector<16x1xf32>
    %151 = vector.broadcast %150 : vector<16x1xf32> to vector<16x128xf32>
    %152 = arith.subf %144, %151 : vector<16x128xf32>
    %153 = arith.mulf %152, %152 : vector<16x128xf32>
    %cst_80 = arith.constant dense<0.000000e+00> : vector<16xf32>
    %154 = vector.multi_reduction <add>, %153, %cst_80 [1] : vector<16x128xf32> to vector<16xf32>
    %155 = vector.shape_cast %154 : vector<16xf32> to vector<16x1xf32>
    %cst_81 = arith.constant 1.280000e+02 : f32
    %156 = vector.broadcast %cst_81 : f32 to vector<16x1xf32>
    %157 = arith.divf %155, %156 : vector<16x1xf32>
    %158 = vector.broadcast %150 : vector<16x1xf32> to vector<16x128xf32>
    %159 = arith.subf %144, %158 : vector<16x128xf32>
    %cst_82 = arith.constant 9.99999974E-6 : f32
    %160 = vector.broadcast %cst_82 : f32 to vector<16x1xf32>
    %161 = arith.addf %157, %160 : vector<16x1xf32>
    %162 = math.rsqrt %161 : vector<16x1xf32>
    %163 = vector.broadcast %162 : vector<16x1xf32> to vector<16x128xf32>
    %164 = arith.mulf %159, %163 : vector<16x128xf32>
    %165 = vector.broadcast %145 : vector<1x128xf32> to vector<16x128xf32>
    %166 = arith.mulf %164, %165 : vector<16x128xf32>
    %167 = vector.broadcast %146 : vector<1x128xf32> to vector<16x128xf32>
    %168 = arith.addf %166, %167 : vector<16x128xf32>
    %c0_83 = arith.constant 0 : index
    %c0_84 = arith.constant 0 : index
    %169 = vector.load %arg27[%c0_83, %c0_84] : memref<16x128xf32, #tpu.memory_space<vmem>>, vector<16x128xf32>
    tpu.vector_store %arg27[%c0_83, %c0_84], %168 {strides = array<i32>} : memref<16x128xf32, #tpu.memory_space<vmem>>, vector<16x128xf32>,
    return
  }
  func.func @transform_0(%arg0: i32, %arg1: i32) -> (i32, i32) {
    %c0_i32 = arith.constant 0 : i32
    return %arg1, %arg0 : i32, i32
  }
  func.func @transform_1(%arg0: i32, %arg1: i32) -> (i32, i32) {
    %c0_i32 = arith.constant 0 : i32
    %c0_i32_0 = arith.constant 0 : i32
    return %c0_i32, %arg0 : i32, i32
  }
  func.func @transform_2(%arg0: i32, %arg1: i32) -> (i32, i32) {
    %c0_i32 = arith.constant 0 : i32
    %c0_i32_0 = arith.constant 0 : i32
    return %c0_i32, %arg0 : i32, i32
  }
  func.func @transform_3(%arg0: i32, %arg1: i32) -> (i32, i32) {
    %c0_i32 = arith.constant 0 : i32
    %c0_i32_0 = arith.constant 0 : i32
    %c0_i32_1 = arith.constant 0 : i32
    return %c0_i32, %c0_i32_0 : i32, i32
  }
  func.func @transform_4(%arg0: i32, %arg1: i32) -> (i32, i32) {
    %c0_i32 = arith.constant 0 : i32
    %c0_i32_0 = arith.constant 0 : i32
    %c0_i32_1 = arith.constant 0 : i32
    return %c0_i32, %c0_i32_0 : i32, i32
  }
  func.func @transform_5(%arg0: i32, %arg1: i32) -> (i32, i32) {
    %c0_i32 = arith.constant 0 : i32
    %c0_i32_0 = arith.constant 0 : i32
    %c0_i32_1 = arith.constant 0 : i32
    return %c0_i32, %c0_i32_0 : i32, i32
  }
  func.func @transform_6(%arg0: i32, %arg1: i32) -> (i32, i32) {
    %c0_i32 = arith.constant 0 : i32
    %c0_i32_0 = arith.constant 0 : i32
    %c0_i32_1 = arith.constant 0 : i32
    return %c0_i32, %c0_i32_0 : i32, i32
  }
  func.func @transform_7(%arg0: i32, %arg1: i32) -> (i32, i32, i32) {
    %c0_i32 = arith.constant 0 : i32
    %c0_i32_0 = arith.constant 0 : i32
    %c0_i32_1 = arith.constant 0 : i32
    %c0_i32_2 = arith.constant 0 : i32
    return %c0_i32, %c0_i32_0, %c0_i32_1 : i32, i32, i32
  }
  func.func @transform_8(%arg0: i32, %arg1: i32) -> (i32, i32) {
    %c0_i32 = arith.constant 0 : i32
    %c0_i32_0 = arith.constant 0 : i32
    %c0_i32_1 = arith.constant 0 : i32
    return %c0_i32, %c0_i32_0 : i32, i32
  }
  func.func @transform_9(%arg0: i32, %arg1: i32) -> (i32, i32) {
    %c0_i32 = arith.constant 0 : i32
    %c0_i32_0 = arith.constant 0 : i32
    %c0_i32_1 = arith.constant 0 : i32
    return %c0_i32, %c0_i32_0 : i32, i32
  }
  func.func @transform_10(%arg0: i32, %arg1: i32) -> (i32, i32) {
    %c0_i32 = arith.constant 0 : i32
    %c0_i32_0 = arith.constant 0 : i32
    %c0_i32_1 = arith.constant 0 : i32
    return %c0_i32, %c0_i32_0 : i32, i32
  }
  func.func @transform_11(%arg0: i32, %arg1: i32) -> (i32, i32) {
    %c0_i32 = arith.constant 0 : i32
    %c0_i32_0 = arith.constant 0 : i32
    %c0_i32_1 = arith.constant 0 : i32
    return %c0_i32, %c0_i32_0 : i32, i32
  }
  func.func @transform_12(%arg0: i32, %arg1: i32) -> (i32, i32) {
    %c0_i32 = arith.constant 0 : i32
    %c0_i32_0 = arith.constant 0 : i32
    %c0_i32_1 = arith.constant 0 : i32
    return %c0_i32, %c0_i32_0 : i32, i32
  }
  func.func @transform_13(%arg0: i32, %arg1: i32) -> (i32, i32, i32) {
    %c0_i32 = arith.constant 0 : i32
    %c0_i32_0 = arith.constant 0 : i32
    %c0_i32_1 = arith.constant 0 : i32
    %c0_i32_2 = arith.constant 0 : i32
    return %c0_i32, %c0_i32_0, %c0_i32_1 : i32, i32, i32
  }
  func.func @transform_14(%arg0: i32, %arg1: i32) -> (i32, i32) {
    %c0_i32 = arith.constant 0 : i32
    %c0_i32_0 = arith.constant 0 : i32
    %c0_i32_1 = arith.constant 0 : i32
    return %c0_i32, %c0_i32_0 : i32, i32
  }
  func.func @transform_15(%arg0: i32, %arg1: i32) -> (i32, i32) {
    %c0_i32 = arith.constant 0 : i32
    %c0_i32_0 = arith.constant 0 : i32
    %c0_i32_1 = arith.constant 0 : i32
    return %c0_i32, %c0_i32_0 : i32, i32
  }
  func.func @transform_16(%arg0: i32, %arg1: i32) -> (i32, i32) {
    %c0_i32 = arith.constant 0 : i32
    %c0_i32_0 = arith.constant 0 : i32
    %c0_i32_1 = arith.constant 0 : i32
    return %c0_i32, %c0_i32_0 : i32, i32
  }
  func.func @transform_17(%arg0: i32, %arg1: i32) -> (i32, i32) {
    %c0_i32 = arith.constant 0 : i32
    %c0_i32_0 = arith.constant 0 : i32
    %c0_i32_1 = arith.constant 0 : i32
    return %c0_i32, %c0_i32_0 : i32, i32
  }
  func.func @transform_18(%arg0: i32, %arg1: i32) -> (i32, i32) {
    %c0_i32 = arith.constant 0 : i32
    %c0_i32_0 = arith.constant 0 : i32
    %c0_i32_1 = arith.constant 0 : i32
    return %c0_i32, %c0_i32_0 : i32, i32
  }
  func.func @transform_19(%arg0: i32, %arg1: i32) -> (i32, i32) {
    %c0_i32 = arith.constant 0 : i32
    %c0_i32_0 = arith.constant 0 : i32
    %c0_i32_1 = arith.constant 0 : i32
    return %c0_i32, %c0_i32_0 : i32, i32
  }
  func.func @transform_20(%arg0: i32, %arg1: i32) -> (i32, i32) {
    %c0_i32 = arith.constant 0 : i32
    %c0_i32_0 = arith.constant 0 : i32
    %c0_i32_1 = arith.constant 0 : i32
    return %c0_i32, %c0_i32_0 : i32, i32
  }
  func.func @transform_21(%arg0: i32, %arg1: i32) -> (i32, i32) {
    %c0_i32 = arith.constant 0 : i32
    %c0_i32_0 = arith.constant 0 : i32
    %c0_i32_1 = arith.constant 0 : i32
    return %c0_i32, %c0_i32_0 : i32, i32
  }
  func.func @transform_22(%arg0: i32, %arg1: i32) -> (i32, i32) {
    %c0_i32 = arith.constant 0 : i32
    %c0_i32_0 = arith.constant 0 : i32
    %c0_i32_1 = arith.constant 0 : i32
    return %c0_i32, %c0_i32_0 : i32, i32
  }
  func.func @transform_23(%arg0: i32, %arg1: i32) -> (i32, i32) {
    %c0_i32 = arith.constant 0 : i32
    %c0_i32_0 = arith.constant 0 : i32
    %c0_i32_1 = arith.constant 0 : i32
    return %c0_i32, %c0_i32_0 : i32, i32
  }
  func.func @transform_24(%arg0: i32, %arg1: i32) -> (i32, i32) {
    %c0_i32 = arith.constant 0 : i32
    %c0_i32_0 = arith.constant 0 : i32
    %c0_i32_1 = arith.constant 0 : i32
    return %c0_i32, %c0_i32_0 : i32, i32
  }
  func.func @transform_25(%arg0: i32, %arg1: i32) -> (i32, i32) {
    %c0_i32 = arith.constant 0 : i32
    return %arg1, %arg0 : i32, i32
  }
}

</mosaic_0001>

<llo_original>
// kernel: tpu_custom_call.1
$region0: #{tpu_custom_call.1}
  #allocation0 [shape = 'u32[]', space=smem, size = 0x4, offset = 0x4, fixed_abs, tag = 'smem constant byte address 0x4 - core index']
  #allocation1 [shape = 'u32[144,128]{1,0:T(1,128)}', space=vmem, size = 0x12000, scoped, tag = 'internal scratch']
  #allocation2 [shape = 'bf16[4,32,32]{2,1,0:T(16,128)(2,1)}', space=vmem, size = 0x8000, scoped, tag = 'scratch operand']
  #allocation3 [shape = 'bf16[4,32,32]{2,1,0:T(16,128)(2,1)}', space=vmem, size = 0x8000, scoped, tag = 'scratch operand']
  #allocation4 [shape = 'bf16[4,24,32]{2,1,0:T(8,128)(2,1)}', space=vmem, size = 0x6000, scoped, tag = 'scratch operand']
  #allocation5 [shape = 'bf16[4,24,32]{2,1,0:T(8,128)(2,1)}', space=vmem, size = 0x6000, scoped, tag = 'scratch operand']
  %s0 = inlined_call_operand.hbm [shape: f32[32,256], index: 0, kind: input, shape index: {}]
  %s1 = inlined_call_operand.hbm [shape: f32[32,256], index: 1, kind: input, shape index: {}]
  %s2 = inlined_call_operand.hbm [shape: f32[24,256], index: 2, kind: input, shape index: {}]
  %s3 = inlined_call_operand.hbm [shape: bf16[128,128], index: 3, kind: input, shape index: {}]
  %s4 = inlined_call_operand.vmem [shape: f32[1,128], index: 4, kind: input, shape index: {}]
  %s5 = inlined_call_operand.hbm [shape: bf16[128,256], index: 5, kind: input, shape index: {}]
  %s6 = inlined_call_operand.vmem [shape: f32[1,256], index: 6, kind: input, shape index: {}]
  %s7 = inlined_call_operand.hbm [shape: bf16[4,32,128], index: 7, kind: input, shape index: {}]
  %s8 = inlined_call_operand.vmem [shape: f32[1,128], index: 8, kind: input, shape index: {}]
  %s9 = inlined_call_operand.hbm [shape: bf16[128,128], index: 9, kind: input, shape index: {}]
  %s10 = inlined_call_operand.vmem [shape: f32[1,128], index: 10, kind: input, shape index: {}]
  %s11 = inlined_call_operand.hbm [shape: bf16[128,256], index: 11, kind: input, shape index: {}]
  %s12 = inlined_call_operand.vmem [shape: f32[1,256], index: 12, kind: input, shape index: {}]
  %s13 = inlined_call_operand.hbm [shape: bf16[4,32,128], index: 13, kind: input, shape index: {}]
  %s14 = inlined_call_operand.vmem [shape: f32[1,128], index: 14, kind: input, shape index: {}]
  %s15 = inlined_call_operand.hbm [shape: bf16[128,256], index: 15, kind: input, shape index: {}]
  %s16 = inlined_call_operand.vmem [shape: f32[1,256], index: 16, kind: input, shape index: {}]
  %s17 = inlined_call_operand.hbm [shape: bf16[256,128], index: 17, kind: input, shape index: {}]
  %s18 = inlined_call_operand.vmem [shape: f32[1,128], index: 18, kind: input, shape index: {}]
  %s19 = inlined_call_operand.vmem [shape: f32[1,128], index: 19, kind: input, shape index: {}]
  %s20 = inlined_call_operand.vmem [shape: f32[1,128], index: 20, kind: input, shape index: {}]
  %s21 = inlined_call_operand.vmem [shape: f32[1,128], index: 21, kind: input, shape index: {}]
  %s22 = inlined_call_operand.vmem [shape: f32[1,128], index: 22, kind: input, shape index: {}]
  %s23 = inlined_call_operand.vmem [shape: f32[1,128], index: 23, kind: input, shape index: {}]
  %s24 = inlined_call_operand.vmem [shape: f32[1,128], index: 24, kind: input, shape index: {}]
  %s25 = inlined_call_operand.hbm [shape: f32[32,256], index: 25, kind: output, shape index: {}]
  %s26 = sld [smem:[#allocation0]]
  $region181: #{tpu_custom_call.1} parent=0
    _
  %s28 = ssub.s32 1, %s26
  %s29 = scalar_select 0, %s28, %s26
  $region1: #{tpu_custom_call.1} parent=0
    #allocation6 [shape = 'u8[16384]{0}', space=vmem, size = 0x4000, scoped, tag = 'input window, operand 0']
    #allocation7 [shape = 's32[2]{0}', space=sflag, size = 0x8, scoped, tag = 'scoped memory for tpu_custom_call.1']
    #allocation8 [shape = 's32[2]{0}', space=sflag, size = 0x8, scoped, tag = 'scoped memory for tpu_custom_call.1']
    #allocation9 [shape = 'u8[32768]{0}', space=vmem, size = 0x8000, scoped, tag = 'input window, operand 1']
    #allocation10 [shape = 's32[2]{0}', space=sflag, size = 0x8, scoped, tag = 'scoped memory for tpu_custom_call.1']
    #allocation11 [shape = 'u8[24576]{0}', space=vmem, size = 0x6000, scoped, tag = 'input window, operand 2']
    #allocation12 [shape = 'u8[32768]{0}', space=vmem, size = 0x8000, scoped, tag = 'input window, operand 3, single buffered']
    #allocation13 [shape = 's32[1]{0}', space=sflag, size = 0x4, scoped, tag = 'scoped memory for tpu_custom_call.1']
    #allocation14 [shape = 'u8[65536]{0}', space=vmem, size = 0x10000, scoped, tag = 'input window, operand 5, single buffered']
    #allocation15 [shape = 'u8[32768]{0}', space=vmem, size = 0x8000, scoped, tag = 'input window, operand 7, single buffered']
    #allocation16 [shape = 's32[1]{0}', space=sflag, size = 0x4, scoped, tag = 'scoped memory for tpu_custom_call.1']
    #allocation17 [shape = 'u8[32768]{0}', space=vmem, size = 0x8000, scoped, tag = 'input window, operand 9, single buffered']
    #allocation18 [shape = 'u8[65536]{0}', space=vmem, size = 0x10000, scoped, tag = 'input window, operand 11, single buffered']
    #allocation19 [shape = 's32[1]{0}', space=sflag, size = 0x4, scoped, tag = 'scoped memory for tpu_custom_call.1']
    #allocation20 [shape = 'u8[32768]{0}', space=vmem, size = 0x8000, scoped, tag = 'input window, operand 13, single buffered']
    #allocation21 [shape = 'u8[65536]{0}', space=vmem, size = 0x10000, scoped, tag = 'input window, operand 15, single buffered']
    #allocation22 [shape = 's32[1]{0}', space=sflag, size = 0x4, scoped, tag = 'scoped memory for tpu_custom_call.1']
    #allocation23 [shape = 'u8[65536]{0}', space=vmem, size = 0x10000, scoped, tag = 'input window, operand 17, single buffered']
    #allocation24 [shape = 'u8[16384]{0}', space=vmem, size = 0x4000, scoped, tag = 'output window, operand 0']
    %30 = vsyncpa [#allocation7], 0
    %s31 = scalar_lea.sflag [#allocation7], 1
    %32 = vsyncpa %s31, 0
    %33 = vsyncpa [#allocation10], 0
    %s34 = scalar_lea.sflag [#allocation10], 1
    %35 = vsyncpa %s34, 0
    %36 = vsyncpa [#allocation13], 0
    %37 = vsyncpa [#allocation16], 0
    %38 = vsyncpa [#allocation19], 0
    %39 = vsyncpa [#allocation22], 0
    %40 = vsyncpa [#allocation8], 0
    %s41 = scalar_lea.sflag [#allocation8], 1
    %42 = vsyncpa %s41, 0
    loop: start=0, step=1, limit=6
    $region2: #{tpu_custom_call.1} parent=1 // loop_pre_header
      _
    $region3: #{tpu_custom_call.1} parent=1 // loop_header
      %s44 = sphi 0, %s48
      %p45 = scmp.ge.s32.totalorder %s44, 6
      %s51 = sphi 0, %s63
      %s52 = sphi 0, %s59
      %s53 = sphi 0, %s51
      %s54 = sphi 0, %s52
      %s55 = sphi 0, %s53
      %s56 = sphi 0, %s54
      %s68 = sphi 0, %s70
      %s71 = sphi 0, %s68
      %s72 = sphi 0, %s71
      %s88 = sphi 0, %s72
      %s94 = sphi 0, %s96
      %s97 = sphi 0, %s94
      %s98 = sphi 0, %s97
      %s114 = sphi 0, %s98
      %s120 = sphi 0, %s122
      %s123 = sphi 0, %s120
      %s124 = sphi 0, %s123
      %s140 = sphi 0, %s124
      %s144 = sphi 0, %s144
      %s146 = sphi 0, %s144
      %s147 = sphi 0, %s146
      %s161 = sphi 0, %s147
      %s165 = sphi 0, %s165
      %s167 = sphi 0, %s165
      %s168 = sphi 0, %s167
      %s182 = sphi 0, %s168
      %s186 = sphi 0, %s186
      %s188 = sphi 0, %s186
      %s189 = sphi 0, %s188
      %s203 = sphi 0, %s189
      %s207 = sphi 0, %s207
      %s209 = sphi 0, %s207
      %s210 = sphi 0, %s209
      %s224 = sphi 0, %s210
      %s228 = sphi 0, %s228
      %s230 = sphi 0, %s228
      %s231 = sphi 0, %s230
      %s245 = sphi 0, %s231
      %s249 = sphi 0, %s249
      %s251 = sphi 0, %s249
      %s252 = sphi 0, %s251
      %s266 = sphi 0, %s252
      %s270 = sphi 0, %s270
      %s272 = sphi 0, %s270
      %s273 = sphi 0, %s272
      %s287 = sphi 0, %s273
      %s291 = sphi 0, %s291
      %s293 = sphi 0, %s291
      %s294 = sphi 0, %s293
      %s308 = sphi 0, %s294
      %s312 = sphi 0, %s312
      %s314 = sphi 0, %s312
      %s315 = sphi 0, %s314
      %s329 = sphi 0, %s315
      %s333 = sphi 0, %s333
      %s335 = sphi 0, %s333
      %s336 = sphi 0, %s335
      %s350 = sphi 0, %s336
      %s354 = sphi 0, %s354
      %s356 = sphi 0, %s354
      %s357 = sphi 0, %s356
      %s371 = sphi 0, %s357
      %s375 = sphi 0, %s375
      %s377 = sphi 0, %s375
      %s378 = sphi 0, %s377
      %s392 = sphi 0, %s378
      %s396 = sphi 0, %s396
      %s398 = sphi 0, %s396
      %s399 = sphi 0, %s398
      %s413 = sphi 0, %s399
      %s417 = sphi 0, %s417
      %s419 = sphi 0, %s417
      %s420 = sphi 0, %s419
      %s434 = sphi 0, %s420
      %s438 = sphi 0, %s438
      %s440 = sphi 0, %s438
      %s441 = sphi 0, %s440
      %s455 = sphi 0, %s441
      %s459 = sphi 0, %s459
      %s461 = sphi 0, %s459
      %s462 = sphi 0, %s461
      %s476 = sphi 0, %s462
      %s480 = sphi 0, %s480
      %s482 = sphi 0, %s480
      %s483 = sphi 0, %s482
      %s497 = sphi 0, %s483
      %s501 = sphi 0, %s501
      %s503 = sphi 0, %s501
      %s504 = sphi 0, %s503
      %s518 = sphi 0, %s504
      %s522 = sphi 0, %s522
      %s524 = sphi 0, %s522
      %s525 = sphi 0, %s524
      %s539 = sphi 0, %s525
      %s543 = sphi 0, %s543
      %s545 = sphi 0, %s543
      %s546 = sphi 0, %s545
      %s560 = sphi 0, %s546
      %s564 = sphi 0, %s564
      %s566 = sphi 0, %s564
      %s567 = sphi 0, %s566
      %s581 = sphi 0, %s567
      %s585 = sphi 0, %s585
      %s587 = sphi 0, %s585
      %s588 = sphi 0, %s587
      %s602 = sphi 0, %s588
      %s610 = sphi 0, %s612
      %s613 = sphi 0, %s610
      %s614 = sphi 0, %s613
      %s630 = sphi 0, %s614
    $region4: #{tpu_custom_call.1} parent=1 // loop_header_branch
      %47 = sbr.rel (%p45) target = $region8
    $region5: #{tpu_custom_call.1} parent=1 // loop_body
      %s49 = ssub.s32 %s44, 1
      %s50 = ssub.s32 %s44, 2
      %s57 = sadd.s32 1, %s52
      %p58 = scmp.ge.s32.totalorder %s57, 2
      %s59 = scalar_select %p58, 0, %s57
      %s60 = sadd.s32 1, %s51
      %s61 = scalar_select %p58, %s60, %s51
      %p62 = scmp.ge.s32.totalorder %s61, 2
      %s63 = scalar_select %p62, 0, %s61
      %s64 = ssub.s32 %s52, %s59
      %s65 = ssub.s32 %s51, %s63
      %s66 = sor.u32 %s64, %s65
      %p67 = scmp.eq.s32.totalorder %s66, 0
      %s69 = sadd.s32 %s68, 1
      %s70 = scalar_select %p67, %s68, %s69
      %p73 = pneg %p67
      %p74 = scmp.eq.s32.totalorder %s44, 3
      %p75 = por %p73, %p74
      %p76 = scmp.ne.s32.totalorder %s68, %s71
      %p77 = scmp.eq.s32.totalorder %s44, 0
      %p78 = por %p76, %p77
      %p79 = scmp.ne.s32.totalorder %s68, %s71
      %p80 = scmp.eq.s32.totalorder %s49, 3
      %p81 = por %p79, %p80
      %p82 = scmp.ne.s32.totalorder %s71, %s72
      %p83 = scmp.eq.s32.totalorder %s49, 0
      %p84 = por %p82, %p83
      %p85 = scmp.ne.s32.totalorder %s71, %s72
      %p86 = scmp.eq.s32.totalorder %s50, 3
      %p87 = por %p85, %p86
      %p89 = scmp.ne.s32.totalorder %s72, %s88
      %p90 = scmp.eq.s32.totalorder %s50, 0
      %p91 = por %p89, %p90
      %s92 = ssub.s32 %s51, %s63
      %p93 = scmp.eq.s32.totalorder %s92, 0
      %s95 = sadd.s32 %s94, 1
      %s96 = scalar_select %p93, %s94, %s95
      %p99 = pneg %p93
      %p100 = scmp.eq.s32.totalorder %s44, 3
      %p101 = por %p99, %p100
      %p102 = scmp.ne.s32.totalorder %s94, %s97
      %p103 = scmp.eq.s32.totalorder %s44, 0
      %p104 = por %p102, %p103
      %p105 = scmp.ne.s32.totalorder %s94, %s97
      %p106 = scmp.eq.s32.totalorder %s49, 3
      %p107 = por %p105, %p106
      %p108 = scmp.ne.s32.totalorder %s97, %s98
      %p109 = scmp.eq.s32.totalorder %s49, 0
      %p110 = por %p108, %p109
      %p111 = scmp.ne.s32.totalorder %s97, %s98
      %p112 = scmp.eq.s32.totalorder %s50, 3
      %p113 = por %p111, %p112
      %p115 = scmp.ne.s32.totalorder %s98, %s114
      %p116 = scmp.eq.s32.totalorder %s50, 0
      %p117 = por %p115, %p116
      %s118 = ssub.s32 %s51, %s63
      %p119 = scmp.eq.s32.totalorder %s118, 0
      %s121 = sadd.s32 %s120, 1
      %s122 = scalar_select %p119, %s120, %s121
      %p125 = pneg %p119
      %p126 = scmp.eq.s32.totalorder %s44, 3
      %p127 = por %p125, %p126
      %p128 = scmp.ne.s32.totalorder %s120, %s123
      %p129 = scmp.eq.s32.totalorder %s44, 0
      %p130 = por %p128, %p129
      %p131 = scmp.ne.s32.totalorder %s120, %s123
      %p132 = scmp.eq.s32.totalorder %s49, 3
      %p133 = por %p131, %p132
      %p134 = scmp.ne.s32.totalorder %s123, %s124
      %p135 = scmp.eq.s32.totalorder %s49, 0
      %p136 = por %p134, %p135
      %p137 = scmp.ne.s32.totalorder %s123, %s124
      %p138 = scmp.eq.s32.totalorder %s50, 3
      %p139 = por %p137, %p138
      %p141 = scmp.ne.s32.totalorder %s124, %s140
      %p142 = scmp.eq.s32.totalorder %s50, 0
      %p143 = por %p141, %p142
      %s145 = sadd.s32 %s144, 1
      %p148 = scmp.eq.s32.totalorder %s44, 3
      %p149 = scmp.ne.s32.totalorder %s144, %s146
      %p150 = scmp.eq.s32.totalorder %s44, 0
      %p151 = por %p149, %p150
      %p152 = scmp.ne.s32.totalorder %s144, %s146
      %p153 = scmp.eq.s32.totalorder %s49, 3
      %p154 = por %p152, %p153
      %p155 = scmp.ne.s32.totalorder %s146, %s147
      %p156 = scmp.eq.s32.totalorder %s49, 0
      %p157 = por %p155, %p156
      %p158 = scmp.ne.s32.totalorder %s146, %s147
      %p159 = scmp.eq.s32.totalorder %s50, 3
      %p160 = por %p158, %p159
      %p162 = scmp.ne.s32.totalorder %s147, %s161
      %p163 = scmp.eq.s32.totalorder %s50, 0
      %p164 = por %p162, %p163
      %s166 = sadd.s32 %s165, 1
      %p169 = scmp.eq.s32.totalorder %s44, 3
      %p170 = scmp.ne.s32.totalorder %s165, %s167
      %p171 = scmp.eq.s32.totalorder %s44, 0
      %p172 = por %p170, %p171
      %p173 = scmp.ne.s32.totalorder %s165, %s167
      %p174 = scmp.eq.s32.totalorder %s49, 3
      %p175 = por %p173, %p174
      %p176 = scmp.ne.s32.totalorder %s167, %s168
      %p177 = scmp.eq.s32.totalorder %s49, 0
      %p178 = por %p176, %p177
      %p179 = scmp.ne.s32.totalorder %s167, %s168
      %p180 = scmp.eq.s32.totalorder %s50, 3
      %p181 = por %p179, %p180
      %p183 = scmp.ne.s32.totalorder %s168, %s182
      %p184 = scmp.eq.s32.totalorder %s50, 0
      %p185 = por %p183, %p184
      %s187 = sadd.s32 %s186, 1
      %p190 = scmp.eq.s32.totalorder %s44, 3
      %p191 = scmp.ne.s32.totalorder %s186, %s188
      %p192 = scmp.eq.s32.totalorder %s44, 0
      %p193 = por %p191, %p192
      %p194 = scmp.ne.s32.totalorder %s186, %s188
      %p195 = scmp.eq.s32.totalorder %s49, 3
      %p196 = por %p194, %p195
      %p197 = scmp.ne.s32.totalorder %s188, %s189
      %p198 = scmp.eq.s32.totalorder %s49, 0
      %p199 = por %p197, %p198
      %p200 = scmp.ne.s32.totalorder %s188, %s189
      %p201 = scmp.eq.s32.totalorder %s50, 3
      %p202 = por %p200, %p201
      %p204 = scmp.ne.s32.totalorder %s189, %s203
      %p205 = scmp.eq.s32.totalorder %s50, 0
      %p206 = por %p204, %p205
      %s208 = sadd.s32 %s207, 1
      %p211 = scmp.eq.s32.totalorder %s44, 3
      %p212 = scmp.ne.s32.totalorder %s207, %s209
      %p213 = scmp.eq.s32.totalorder %s44, 0
      %p214 = por %p212, %p213
      %p215 = scmp.ne.s32.totalorder %s207, %s209
      %p216 = scmp.eq.s32.totalorder %s49, 3
      %p217 = por %p215, %p216
      %p218 = scmp.ne.s32.totalorder %s209, %s210
      %p219 = scmp.eq.s32.totalorder %s49, 0
      %p220 = por %p218, %p219
      %p221 = scmp.ne.s32.totalorder %s209, %s210
      %p222 = scmp.eq.s32.totalorder %s50, 3
      %p223 = por %p221, %p222
      %p225 = scmp.ne.s32.totalorder %s210, %s224
      %p226 = scmp.eq.s32.totalorder %s50, 0
      %p227 = por %p225, %p226
      %s229 = sadd.s32 %s228, 1
      %p232 = scmp.eq.s32.totalorder %s44, 3
      %p233 = scmp.ne.s32.totalorder %s228, %s230
      %p234 = scmp.eq.s32.totalorder %s44, 0
      %p235 = por %p233, %p234
      %p236 = scmp.ne.s32.totalorder %s228, %s230
      %p237 = scmp.eq.s32.totalorder %s49, 3
      %p238 = por %p236, %p237
      %p239 = scmp.ne.s32.totalorder %s230, %s231
      %p240 = scmp.eq.s32.totalorder %s49, 0
      %p241 = por %p239, %p240
      %p242 = scmp.ne.s32.totalorder %s230, %s231
      %p243 = scmp.eq.s32.totalorder %s50, 3
      %p244 = por %p242, %p243
      %p246 = scmp.ne.s32.totalorder %s231, %s245
      %p247 = scmp.eq.s32.totalorder %s50, 0
      %p248 = por %p246, %p247
      %s250 = sadd.s32 %s249, 1
      %p253 = scmp.eq.s32.totalorder %s44, 3
      %p254 = scmp.ne.s32.totalorder %s249, %s251
      %p255 = scmp.eq.s32.totalorder %s44, 0
      %p256 = por %p254, %p255
      %p257 = scmp.ne.s32.totalorder %s249, %s251
      %p258 = scmp.eq.s32.totalorder %s49, 3
      %p259 = por %p257, %p258
      %p260 = scmp.ne.s32.totalorder %s251, %s252
      %p261 = scmp.eq.s32.totalorder %s49, 0
      %p262 = por %p260, %p261
      %p263 = scmp.ne.s32.totalorder %s251, %s252
      %p264 = scmp.eq.s32.totalorder %s50, 3
      %p265 = por %p263, %p264
      %p267 = scmp.ne.s32.totalorder %s252, %s266
      %p268 = scmp.eq.s32.totalorder %s50, 0
      %p269 = por %p267, %p268
      %s271 = sadd.s32 %s270, 1
      %p274 = scmp.eq.s32.totalorder %s44, 3
      %p275 = scmp.ne.s32.totalorder %s270, %s272
      %p276 = scmp.eq.s32.totalorder %s44, 0
      %p277 = por %p275, %p276
      %p278 = scmp.ne.s32.totalorder %s270, %s272
      %p279 = scmp.eq.s32.totalorder %s49, 3
      %p280 = por %p278, %p279
      %p281 = scmp.ne.s32.totalorder %s272, %s273
      %p282 = scmp.eq.s32.totalorder %s49, 0
      %p283 = por %p281, %p282
      %p284 = scmp.ne.s32.totalorder %s272, %s273
      %p285 = scmp.eq.s32.totalorder %s50, 3
      %p286 = por %p284, %p285
      %p288 = scmp.ne.s32.totalorder %s273, %s287
      %p289 = scmp.eq.s32.totalorder %s50, 0
      %p290 = por %p288, %p289
      %s292 = sadd.s32 %s291, 1
      %p295 = scmp.eq.s32.totalorder %s44, 3
      %p296 = scmp.ne.s32.totalorder %s291, %s293
      %p297 = scmp.eq.s32.totalorder %s44, 0
      %p298 = por %p296, %p297
      %p299 = scmp.ne.s32.totalorder %s291, %s293
      %p300 = scmp.eq.s32.totalorder %s49, 3
      %p301 = por %p299, %p300
      %p302 = scmp.ne.s32.totalorder %s293, %s294
      %p303 = scmp.eq.s32.totalorder %s49, 0
      %p304 = por %p302, %p303
      %p305 = scmp.ne.s32.totalorder %s293, %s294
      %p306 = scmp.eq.s32.totalorder %s50, 3
      %p307 = por %p305, %p306
      %p309 = scmp.ne.s32.totalorder %s294, %s308
      %p310 = scmp.eq.s32.totalorder %s50, 0
      %p311 = por %p309, %p310
      %s313 = sadd.s32 %s312, 1
      %p316 = scmp.eq.s32.totalorder %s44, 3
      %p317 = scmp.ne.s32.totalorder %s312, %s314
      %p318 = scmp.eq.s32.totalorder %s44, 0
      %p319 = por %p317, %p318
      %p320 = scmp.ne.s32.totalorder %s312, %s314
      %p321 = scmp.eq.s32.totalorder %s49, 3
      %p322 = por %p320, %p321
      %p323 = scmp.ne.s32.totalorder %s314, %s315
      %p324 = scmp.eq.s32.totalorder %s49, 0
      %p325 = por %p323, %p324
      %p326 = scmp.ne.s32.totalorder %s314, %s315
      %p327 = scmp.eq.s32.totalorder %s50, 3
      %p328 = por %p326, %p327
      %p330 = scmp.ne.s32.totalorder %s315, %s329
      %p331 = scmp.eq.s32.totalorder %s50, 0
      %p332 = por %p330, %p331
      %s334 = sadd.s32 %s333, 1
      %p337 = scmp.eq.s32.totalorder %s44, 3
      %p338 = scmp.ne.s32.totalorder %s333, %s335
      %p339 = scmp.eq.s32.totalorder %s44, 0
      %p340 = por %p338, %p339
      %p341 = scmp.ne.s32.totalorder %s333, %s335
      %p342 = scmp.eq.s32.totalorder %s49, 3
      %p343 = por %p341, %p342
      %p344 = scmp.ne.s32.totalorder %s335, %s336
      %p345 = scmp.eq.s32.totalorder %s49, 0
      %p346 = por %p344, %p345
      %p347 = scmp.ne.s32.totalorder %s335, %s336
      %p348 = scmp.eq.s32.totalorder %s50, 3
      %p349 = por %p347, %p348
      %p351 = scmp.ne.s32.totalorder %s336, %s350
      %p352 = scmp.eq.s32.totalorder %s50, 0
      %p353 = por %p351, %p352
      %s355 = sadd.s32 %s354, 1
      %p358 = scmp.eq.s32.totalorder %s44, 3
      %p359 = scmp.ne.s32.totalorder %s354, %s356
      %p360 = scmp.eq.s32.totalorder %s44, 0
      %p361 = por %p359, %p360
      %p362 = scmp.ne.s32.totalorder %s354, %s356
      %p363 = scmp.eq.s32.totalorder %s49, 3
      %p364 = por %p362, %p363
      %p365 = scmp.ne.s32.totalorder %s356, %s357
      %p366 = scmp.eq.s32.totalorder %s49, 0
      %p367 = por %p365, %p366
      %p368 = scmp.ne.s32.totalorder %s356, %s357
      %p369 = scmp.eq.s32.totalorder %s50, 3
      %p370 = por %p368, %p369
      %p372 = scmp.ne.s32.totalorder %s357, %s371
      %p373 = scmp.eq.s32.totalorder %s50, 0
      %p374 = por %p372, %p373
      %s376 = sadd.s32 %s375, 1
      %p379 = scmp.eq.s32.totalorder %s44, 3
      %p380 = scmp.ne.s32.totalorder %s375, %s377
      %p381 = scmp.eq.s32.totalorder %s44, 0
      %p382 = por %p380, %p381
      %p383 = scmp.ne.s32.totalorder %s375, %s377
      %p384 = scmp.eq.s32.totalorder %s49, 3
      %p385 = por %p383, %p384
      %p386 = scmp.ne.s32.totalorder %s377, %s378
      %p387 = scmp.eq.s32.totalorder %s49, 0
      %p388 = por %p386, %p387
      %p389 = scmp.ne.s32.totalorder %s377, %s378
      %p390 = scmp.eq.s32.totalorder %s50, 3
      %p391 = por %p389, %p390
      %p393 = scmp.ne.s32.totalorder %s378, %s392
      %p394 = scmp.eq.s32.totalorder %s50, 0
      %p395 = por %p393, %p394
      %s397 = sadd.s32 %s396, 1
      %p400 = scmp.eq.s32.totalorder %s44, 3
      %p401 = scmp.ne.s32.totalorder %s396, %s398
      %p402 = scmp.eq.s32.totalorder %s44, 0
      %p403 = por %p401, %p402
      %p404 = scmp.ne.s32.totalorder %s396, %s398
      %p405 = scmp.eq.s32.totalorder %s49, 3
      %p406 = por %p404, %p405
      %p407 = scmp.ne.s32.totalorder %s398, %s399
      %p408 = scmp.eq.s32.totalorder %s49, 0
      %p409 = por %p407, %p408
      %p410 = scmp.ne.s32.totalorder %s398, %s399
      %p411 = scmp.eq.s32.totalorder %s50, 3
      %p412 = por %p410, %p411
      %p414 = scmp.ne.s32.totalorder %s399, %s413
      %p415 = scmp.eq.s32.totalorder %s50, 0
      %p416 = por %p414, %p415
      %s418 = sadd.s32 %s417, 1
      %p421 = scmp.eq.s32.totalorder %s44, 3
      %p422 = scmp.ne.s32.totalorder %s417, %s419
      %p423 = scmp.eq.s32.totalorder %s44, 0
      %p424 = por %p422, %p423
      %p425 = scmp.ne.s32.totalorder %s417, %s419
      %p426 = scmp.eq.s32.totalorder %s49, 3
      %p427 = por %p425, %p426
      %p428 = scmp.ne.s32.totalorder %s419, %s420
      %p429 = scmp.eq.s32.totalorder %s49, 0
      %p430 = por %p428, %p429
      %p431 = scmp.ne.s32.totalorder %s419, %s420
      %p432 = scmp.eq.s32.totalorder %s50, 3
      %p433 = por %p431, %p432
      %p435 = scmp.ne.s32.totalorder %s420, %s434
      %p436 = scmp.eq.s32.totalorder %s50, 0
      %p437 = por %p435, %p436
      %s439 = sadd.s32 %s438, 1
      %p442 = scmp.eq.s32.totalorder %s44, 3
      %p443 = scmp.ne.s32.totalorder %s438, %s440
      %p444 = scmp.eq.s32.totalorder %s44, 0
      %p445 = por %p443, %p444
      %p446 = scmp.ne.s32.totalorder %s438, %s440
      %p447 = scmp.eq.s32.totalorder %s49, 3
      %p448 = por %p446, %p447
      %p449 = scmp.ne.s32.totalorder %s440, %s441
      %p450 = scmp.eq.s32.totalorder %s49, 0
      %p451 = por %p449, %p450
      %p452 = scmp.ne.s32.totalorder %s440, %s441
      %p453 = scmp.eq.s32.totalorder %s50, 3
      %p454 = por %p452, %p453
      %p456 = scmp.ne.s32.totalorder %s441, %s455
      %p457 = scmp.eq.s32.totalorder %s50, 0
      %p458 = por %p456, %p457
      %s460 = sadd.s32 %s459, 1
      %p463 = scmp.eq.s32.totalorder %s44, 3
      %p464 = scmp.ne.s32.totalorder %s459, %s461
      %p465 = scmp.eq.s32.totalorder %s44, 0
      %p466 = por %p464, %p465
      %p467 = scmp.ne.s32.totalorder %s459, %s461
      %p468 = scmp.eq.s32.totalorder %s49, 3
      %p469 = por %p467, %p468
      %p470 = scmp.ne.s32.totalorder %s461, %s462
      %p471 = scmp.eq.s32.totalorder %s49, 0
      %p472 = por %p470, %p471
      %p473 = scmp.ne.s32.totalorder %s461, %s462
      %p474 = scmp.eq.s32.totalorder %s50, 3
      %p475 = por %p473, %p474
      %p477 = scmp.ne.s32.totalorder %s462, %s476
      %p478 = scmp.eq.s32.totalorder %s50, 0
      %p479 = por %p477, %p478
      %s481 = sadd.s32 %s480, 1
      %p484 = scmp.eq.s32.totalorder %s44, 3
      %p485 = scmp.ne.s32.totalorder %s480, %s482
      %p486 = scmp.eq.s32.totalorder %s44, 0
      %p487 = por %p485, %p486
      %p488 = scmp.ne.s32.totalorder %s480, %s482
      %p489 = scmp.eq.s32.totalorder %s49, 3
      %p490 = por %p488, %p489
      %p491 = scmp.ne.s32.totalorder %s482, %s483
      %p492 = scmp.eq.s32.totalorder %s49, 0
      %p493 = por %p491, %p492
      %p494 = scmp.ne.s32.totalorder %s482, %s483
      %p495 = scmp.eq.s32.totalorder %s50, 3
      %p496 = por %p494, %p495
      %p498 = scmp.ne.s32.totalorder %s483, %s497
      %p499 = scmp.eq.s32.totalorder %s50, 0
      %p500 = por %p498, %p499
      %s502 = sadd.s32 %s501, 1
      %p505 = scmp.eq.s32.totalorder %s44, 3
      %p506 = scmp.ne.s32.totalorder %s501, %s503
      %p507 = scmp.eq.s32.totalorder %s44, 0
      %p508 = por %p506, %p507
      %p509 = scmp.ne.s32.totalorder %s501, %s503
      %p510 = scmp.eq.s32.totalorder %s49, 3
      %p511 = por %p509, %p510
      %p512 = scmp.ne.s32.totalorder %s503, %s504
      %p513 = scmp.eq.s32.totalorder %s49, 0
      %p514 = por %p512, %p513
      %p515 = scmp.ne.s32.totalorder %s503, %s504
      %p516 = scmp.eq.s32.totalorder %s50, 3
      %p517 = por %p515, %p516
      %p519 = scmp.ne.s32.totalorder %s504, %s518
      %p520 = scmp.eq.s32.totalorder %s50, 0
      %p521 = por %p519, %p520
      %s523 = sadd.s32 %s522, 1
      %p526 = scmp.eq.s32.totalorder %s44, 3
      %p527 = scmp.ne.s32.totalorder %s522, %s524
      %p528 = scmp.eq.s32.totalorder %s44, 0
      %p529 = por %p527, %p528
      %p530 = scmp.ne.s32.totalorder %s522, %s524
      %p531 = scmp.eq.s32.totalorder %s49, 3
      %p532 = por %p530, %p531
      %p533 = scmp.ne.s32.totalorder %s524, %s525
      %p534 = scmp.eq.s32.totalorder %s49, 0
      %p535 = por %p533, %p534
      %p536 = scmp.ne.s32.totalorder %s524, %s525
      %p537 = scmp.eq.s32.totalorder %s50, 3
      %p538 = por %p536, %p537
      %p540 = scmp.ne.s32.totalorder %s525, %s539
      %p541 = scmp.eq.s32.totalorder %s50, 0
      %p542 = por %p540, %p541
      %s544 = sadd.s32 %s543, 1
      %p547 = scmp.eq.s32.totalorder %s44, 3
      %p548 = scmp.ne.s32.totalorder %s543, %s545
      %p549 = scmp.eq.s32.totalorder %s44, 0
      %p550 = por %p548, %p549
      %p551 = scmp.ne.s32.totalorder %s543, %s545
      %p552 = scmp.eq.s32.totalorder %s49, 3
      %p553 = por %p551, %p552
      %p554 = scmp.ne.s32.totalorder %s545, %s546
      %p555 = scmp.eq.s32.totalorder %s49, 0
      %p556 = por %p554, %p555
      %p557 = scmp.ne.s32.totalorder %s545, %s546
      %p558 = scmp.eq.s32.totalorder %s50, 3
      %p559 = por %p557, %p558
      %p561 = scmp.ne.s32.totalorder %s546, %s560
      %p562 = scmp.eq.s32.totalorder %s50, 0
      %p563 = por %p561, %p562
      %s565 = sadd.s32 %s564, 1
      %p568 = scmp.eq.s32.totalorder %s44, 3
      %p569 = scmp.ne.s32.totalorder %s564, %s566
      %p570 = scmp.eq.s32.totalorder %s44, 0
      %p571 = por %p569, %p570
      %p572 = scmp.ne.s32.totalorder %s564, %s566
      %p573 = scmp.eq.s32.totalorder %s49, 3
      %p574 = por %p572, %p573
      %p575 = scmp.ne.s32.totalorder %s566, %s567
      %p576 = scmp.eq.s32.totalorder %s49, 0
      %p577 = por %p575, %p576
      %p578 = scmp.ne.s32.totalorder %s566, %s567
      %p579 = scmp.eq.s32.totalorder %s50, 3
      %p580 = por %p578, %p579
      %p582 = scmp.ne.s32.totalorder %s567, %s581
      %p583 = scmp.eq.s32.totalorder %s50, 0
      %p584 = por %p582, %p583
      %s586 = sadd.s32 %s585, 1
      %p589 = scmp.eq.s32.totalorder %s44, 3
      %p590 = scmp.ne.s32.totalorder %s585, %s587
      %p591 = scmp.eq.s32.totalorder %s44, 0
      %p592 = por %p590, %p591
      %p593 = scmp.ne.s32.totalorder %s585, %s587
      %p594 = scmp.eq.s32.totalorder %s49, 3
      %p595 = por %p593, %p594
      %p596 = scmp.ne.s32.totalorder %s587, %s588
      %p597 = scmp.eq.s32.totalorder %s49, 0
      %p598 = por %p596, %p597
      %p599 = scmp.ne.s32.totalorder %s587, %s588
      %p600 = scmp.eq.s32.totalorder %s50, 3
      %p601 = por %p599, %p600
      %p603 = scmp.ne.s32.totalorder %s588, %s602
      %p604 = scmp.eq.s32.totalorder %s50, 0
      %p605 = por %p603, %p604
      %s606 = ssub.s32 %s52, %s59
      %s607 = ssub.s32 %s51, %s63
      %s608 = sor.u32 %s606, %s607
      %p609 = scmp.eq.s32.totalorder %s608, 0
      %s611 = sadd.s32 %s610, 1
      %s612 = scalar_select %p609, %s610, %s611
      %p615 = pneg %p609
      %p616 = scmp.eq.s32.totalorder %s44, 3
      %p617 = por %p615, %p616
      %p618 = scmp.ne.s32.totalorder %s610, %s613
      %p619 = scmp.eq.s32.totalorder %s44, 0
      %p620 = por %p618, %p619
      %p621 = scmp.ne.s32.totalorder %s610, %s613
      %p622 = scmp.eq.s32.totalorder %s49, 3
      %p623 = por %p621, %p622
      %p624 = scmp.ne.s32.totalorder %s613, %s614
      %p625 = scmp.eq.s32.totalorder %s49, 0
      %p626 = por %p624, %p625
      %p627 = scmp.ne.s32.totalorder %s613, %s614
      %p628 = scmp.eq.s32.totalorder %s50, 3
      %p629 = por %p627, %p628
      %p631 = scmp.ne.s32.totalorder %s614, %s630
      %p632 = scmp.eq.s32.totalorder %s50, 0
      %p633 = por %p631, %p632
      %p634 = scmp.le.s32.totalorder 1, %s44
      %p635 = scmp.lt.s32.totalorder %s44, 5
      %p636 = pnand %p634, %p635
      %p637 = pneg %p636
      // Predicated region
      $region9: #{tpu_custom_call.1} parent=5 // pred_check
        _
      $region10: #{tpu_custom_call.1} parent=5 // pred_check_branch
        %639 = sbr.rel (%p636) target = $region12
      $region11: #{tpu_custom_call.1} parent=5 // pred_region
        %s640 = ssub.s32 %s44, 1
        // Predicated region
        $region13: #{tpu_custom_call.1} parent=11 // pred_check
          %p641 = pneg %p157
        $region14: #{tpu_custom_call.1} parent=11 // pred_check_branch
          %643 = sbr.rel (%p641) target = $region16
        $region15: #{tpu_custom_call.1} parent=11 // pred_region
          %s645 = ssub.s32 1024, 1024
          %646 = vsyncadd [#allocation13], %s645
          %s647 = sshll.u32 [#allocation12], 4
          %s648 = int_to_ptr.vmem [resolvable:$true] %s647
          %653 = dma.hbm_to_vmem [thread:$0]  %s3, 1024, %s648, [#allocation13], 64, 64, 4
        $region16: #{tpu_custom_call.1} parent=11 // pred_fallthru
          _
        // Predicated region
        $region17: #{tpu_custom_call.1} parent=11 // pred_check
          %p654 = pneg %p178
        $region18: #{tpu_custom_call.1} parent=11 // pred_check_branch
          %656 = sbr.rel (%p654) target = $region20
        $region19: #{tpu_custom_call.1} parent=11 // pred_region
          _
        $region20: #{tpu_custom_call.1} parent=11 // pred_fallthru
          _
        // Predicated region
        $region21: #{tpu_custom_call.1} parent=11 // pred_check
          %p657 = pneg %p199
        $region22: #{tpu_custom_call.1} parent=11 // pred_check_branch
          %659 = sbr.rel (%p657) target = $region24
        $region23: #{tpu_custom_call.1} parent=11 // pred_region
          %s661 = ssub.s32 2048, 2048
          %662 = vsyncadd [#allocation13], %s661
          %s663 = sshll.u32 [#allocation14], 4
          %s664 = int_to_ptr.vmem [resolvable:$true] %s663
          %669 = dma.hbm_to_vmem [thread:$0]  %s5, 2048, %s664, [#allocation13], 128, 128, 8
        $region24: #{tpu_custom_call.1} parent=11 // pred_fallthru
          _
        // Predicated region
        $region25: #{tpu_custom_call.1} parent=11 // pred_check
          %p670 = pneg %p220
        $region26: #{tpu_custom_call.1} parent=11 // pred_check_branch
          %672 = sbr.rel (%p670) target = $region28
        $region27: #{tpu_custom_call.1} parent=11 // pred_region
          _
        $region28: #{tpu_custom_call.1} parent=11 // pred_fallthru
          _
        // Predicated region
        $region29: #{tpu_custom_call.1} parent=11 // pred_check
          %p673 = pneg %p241
        $region30: #{tpu_custom_call.1} parent=11 // pred_check_branch
          %675 = sbr.rel (%p673) target = $region32
        $region31: #{tpu_custom_call.1} parent=11 // pred_region
          %s677 = ssub.s32 1024, 1024
          %678 = vsyncadd [#allocation16], %s677
          %s679 = sshll.u32 [#allocation15], 4
          %s680 = int_to_ptr.vmem [resolvable:$true] %s679
          %685 = dma.hbm_to_vmem [thread:$0]  %s7, 1024, %s680, [#allocation16], 64, 64, 4
        $region32: #{tpu_custom_call.1} parent=11 // pred_fallthru
          _
        // Predicated region
        $region33: #{tpu_custom_call.1} parent=11 // pred_check
          %p686 = pneg %p262
        $region34: #{tpu_custom_call.1} parent=11 // pred_check_branch
          %688 = sbr.rel (%p686) target = $region36
        $region35: #{tpu_custom_call.1} parent=11 // pred_region
          _
        $region36: #{tpu_custom_call.1} parent=11 // pred_fallthru
          _
        // Predicated region
        $region37: #{tpu_custom_call.1} parent=11 // pred_check
          %p689 = pneg %p283
        $region38: #{tpu_custom_call.1} parent=11 // pred_check_branch
          %691 = sbr.rel (%p689) target = $region40
        $region39: #{tpu_custom_call.1} parent=11 // pred_region
          %s693 = ssub.s32 1024, 1024
          %694 = vsyncadd [#allocation16], %s693
          %s695 = sshll.u32 [#allocation17], 4
          %s696 = int_to_ptr.vmem [resolvable:$true] %s695
          %701 = dma.hbm_to_vmem [thread:$0]  %s9, 1024, %s696, [#allocation16], 64, 64, 4
        $region40: #{tpu_custom_call.1} parent=11 // pred_fallthru
          _
        // Predicated region
        $region41: #{tpu_custom_call.1} parent=11 // pred_check
          %p702 = pneg %p304
        $region42: #{tpu_custom_call.1} parent=11 // pred_check_branch
          %704 = sbr.rel (%p702) target = $region44
        $region43: #{tpu_custom_call.1} parent=11 // pred_region
          _
        $region44: #{tpu_custom_call.1} parent=11 // pred_fallthru
          _
        // Predicated region
        $region45: #{tpu_custom_call.1} parent=11 // pred_check
          %p705 = pneg %p325
        $region46: #{tpu_custom_call.1} parent=11 // pred_check_branch
          %707 = sbr.rel (%p705) target = $region48
        $region47: #{tpu_custom_call.1} parent=11 // pred_region
          %s709 = ssub.s32 2048, 2048
          %710 = vsyncadd [#allocation19], %s709
          %s711 = sshll.u32 [#allocation18], 4
          %s712 = int_to_ptr.vmem [resolvable:$true] %s711
          %717 = dma.hbm_to_vmem [thread:$0]  %s11, 2048, %s712, [#allocation19], 128, 128, 8
        $region48: #{tpu_custom_call.1} parent=11 // pred_fallthru
          _
        // Predicated region
        $region49: #{tpu_custom_call.1} parent=11 // pred_check
          %p718 = pneg %p346
        $region50: #{tpu_custom_call.1} parent=11 // pred_check_branch
          %720 = sbr.rel (%p718) target = $region52
        $region51: #{tpu_custom_call.1} parent=11 // pred_region
          _
        $region52: #{tpu_custom_call.1} parent=11 // pred_fallthru
          _
        // Predicated region
        $region53: #{tpu_custom_call.1} parent=11 // pred_check
          %p721 = pneg %p367
        $region54: #{tpu_custom_call.1} parent=11 // pred_check_branch
          %723 = sbr.rel (%p721) target = $region56
        $region55: #{tpu_custom_call.1} parent=11 // pred_region
          %s725 = ssub.s32 1024, 1024
          %726 = vsyncadd [#allocation19], %s725
          %s727 = sshll.u32 [#allocation20], 4
          %s728 = int_to_ptr.vmem [resolvable:$true] %s727
          %733 = dma.hbm_to_vmem [thread:$0]  %s13, 1024, %s728, [#allocation19], 64, 64, 4
        $region56: #{tpu_custom_call.1} parent=11 // pred_fallthru
          _
        // Predicated region
        $region57: #{tpu_custom_call.1} parent=11 // pred_check
          %p734 = pneg %p388
        $region58: #{tpu_custom_call.1} parent=11 // pred_check_branch
          %736 = sbr.rel (%p734) target = $region60
        $region59: #{tpu_custom_call.1} parent=11 // pred_region
          _
        $region60: #{tpu_custom_call.1} parent=11 // pred_fallthru
          _
        // Predicated region
        $region61: #{tpu_custom_call.1} parent=11 // pred_check
          %p737 = pneg %p409
        $region62: #{tpu_custom_call.1} parent=11 // pred_check_branch
          %739 = sbr.rel (%p737) target = $region64
        $region63: #{tpu_custom_call.1} parent=11 // pred_region
          %s741 = ssub.s32 2048, 2048
          %742 = vsyncadd [#allocation22], %s741
          %s743 = sshll.u32 [#allocation21], 4
          %s744 = int_to_ptr.vmem [resolvable:$true] %s743
          %749 = dma.hbm_to_vmem [thread:$0]  %s15, 2048, %s744, [#allocation22], 128, 128, 8
        $region64: #{tpu_custom_call.1} parent=11 // pred_fallthru
          _
        // Predicated region
        $region65: #{tpu_custom_call.1} parent=11 // pred_check
          %p750 = pneg %p430
        $region66: #{tpu_custom_call.1} parent=11 // pred_check_branch
          %752 = sbr.rel (%p750) target = $region68
        $region67: #{tpu_custom_call.1} parent=11 // pred_region
          _
        $region68: #{tpu_custom_call.1} parent=11 // pred_fallthru
          _
        // Predicated region
        $region69: #{tpu_custom_call.1} parent=11 // pred_check
          %p753 = pneg %p451
        $region70: #{tpu_custom_call.1} parent=11 // pred_check_branch
          %755 = sbr.rel (%p753) target = $region72
        $region71: #{tpu_custom_call.1} parent=11 // pred_region
          %s757 = ssub.s32 2048, 2048
          %758 = vsyncadd [#allocation22], %s757
          %s759 = sshll.u32 [#allocation23], 4
          %s760 = int_to_ptr.vmem [resolvable:$true] %s759
          %765 = dma.hbm_to_vmem [thread:$0]  %s17, 2048, %s760, [#allocation22], 64, 64, 4
        $region72: #{tpu_custom_call.1} parent=11 // pred_fallthru
          _
        // Predicated region
        $region73: #{tpu_custom_call.1} parent=11 // pred_check
          %p766 = pneg %p472
        $region74: #{tpu_custom_call.1} parent=11 // pred_check_branch
          %768 = sbr.rel (%p766) target = $region76
        $region75: #{tpu_custom_call.1} parent=11 // pred_region
          _
        $region76: #{tpu_custom_call.1} parent=11 // pred_fallthru
          _
        // Predicated region
        $region77: #{tpu_custom_call.1} parent=11 // pred_check
          %p769 = pneg %p493
        $region78: #{tpu_custom_call.1} parent=11 // pred_check_branch
          %771 = sbr.rel (%p769) target = $region80
        $region79: #{tpu_custom_call.1} parent=11 // pred_region
          _
        $region80: #{tpu_custom_call.1} parent=11 // pred_fallthru
          _
        // Predicated region
        $region81: #{tpu_custom_call.1} parent=11 // pred_check
          %p772 = pneg %p514
        $region82: #{tpu_custom_call.1} parent=11 // pred_check_branch
          %774 = sbr.rel (%p772) target = $region84
        $region83: #{tpu_custom_call.1} parent=11 // pred_region
          _
        $region84: #{tpu_custom_call.1} parent=11 // pred_fallthru
          _
        // Predicated region
        $region85: #{tpu_custom_call.1} parent=11 // pred_check
          %p775 = pneg %p535
        $region86: #{tpu_custom_call.1} parent=11 // pred_check_branch
          %777 = sbr.rel (%p775) target = $region88
        $region87: #{tpu_custom_call.1} parent=11 // pred_region
          _
        $region88: #{tpu_custom_call.1} parent=11 // pred_fallthru
          _
        // Predicated region
        $region89: #{tpu_custom_call.1} parent=11 // pred_check
          %p778 = pneg %p556
        $region90: #{tpu_custom_call.1} parent=11 // pred_check_branch
          %780 = sbr.rel (%p778) target = $region92
        $region91: #{tpu_custom_call.1} parent=11 // pred_region
          _
        $region92: #{tpu_custom_call.1} parent=11 // pred_fallthru
          _
        // Predicated region
        $region93: #{tpu_custom_call.1} parent=11 // pred_check
          %p781 = pneg %p577
        $region94: #{tpu_custom_call.1} parent=11 // pred_check_branch
          %783 = sbr.rel (%p781) target = $region96
        $region95: #{tpu_custom_call.1} parent=11 // pred_region
          _
        $region96: #{tpu_custom_call.1} parent=11 // pred_fallthru
          _
        // Predicated region
        $region97: #{tpu_custom_call.1} parent=11 // pred_check
          %p784 = pneg %p598
        $region98: #{tpu_custom_call.1} parent=11 // pred_check_branch
          %786 = sbr.rel (%p784) target = $region100
        $region99: #{tpu_custom_call.1} parent=11 // pred_region
          _
        $region100: #{tpu_custom_call.1} parent=11 // pred_fallthru
          _
      $region12: #{tpu_custom_call.1} parent=5 // pred_fallthru
        _
      %p787 = scmp.lt.s32.totalorder %s44, 4
      // Predicated region
      $region101: #{tpu_custom_call.1} parent=5 // pred_check
        %p788 = pneg %p787
      $region102: #{tpu_custom_call.1} parent=5 // pred_check_branch
        %790 = sbr.rel (%p788) target = $region104
      $region103: #{tpu_custom_call.1} parent=5 // pred_region
        // Predicated region
        $region105: #{tpu_custom_call.1} parent=103 // pred_check
          %p791 = pneg %p78
        $region106: #{tpu_custom_call.1} parent=103 // pred_check_branch
          %793 = sbr.rel (%p791) target = $region108
        $region107: #{tpu_custom_call.1} parent=103 // pred_region
          %s794 = sand.u32 %s68, 1
          %s795 = scalar_lea.sflag [#allocation7], %s794
          %s796 = sand.u32 %s68, 1
          %s797 = smul.addr %s796, 16
          %s798 = scalar_lea.vmem [#allocation6], %s797
          %s799 = smul.u32 2, %s52
          %s801 = ssub.s32 256, 256
          %802 = vsyncadd %s795, %s801
          %s803 = smul.addr %s799, 2
          %s804 = sadd.s32 %s51, %s803
          %s805 = smul.addr %s804, 128
          %s806 = scalar_lea.hbm %s0, %s805
          %s807 = sshll.u32 %s798, 4
          %s808 = int_to_ptr.vmem [resolvable:$true] %s807
          %813 = dma.hbm_to_vmem [thread:$0]  %s806, 256, %s808, %s795, 256, 128, 8
        $region108: #{tpu_custom_call.1} parent=103 // pred_fallthru
          _
        // Predicated region
        $region109: #{tpu_custom_call.1} parent=103 // pred_check
          %p814 = pneg %p104
        $region110: #{tpu_custom_call.1} parent=103 // pred_check_branch
          %816 = sbr.rel (%p814) target = $region112
        $region111: #{tpu_custom_call.1} parent=103 // pred_region
          %s817 = sand.u32 %s44, 1
          %s818 = scalar_lea.sflag [#allocation10], %s817
          %s819 = sand.u32 %s94, 1
          %s820 = smul.addr %s819, 32
          %s821 = scalar_lea.vmem [#allocation9], %s820
          %s823 = ssub.s32 512, 512
          %824 = vsyncadd %s818, %s823
          %s825 = smul.addr %s51, 128
          %s826 = scalar_lea.hbm %s1, %s825
          %s827 = sshll.u32 %s821, 4
          %s828 = int_to_ptr.vmem [resolvable:$true] %s827
          %833 = dma.hbm_to_vmem [thread:$0]  %s826, 512, %s828, %s818, 256, 128, 8
        $region112: #{tpu_custom_call.1} parent=103 // pred_fallthru
          _
        // Predicated region
        $region113: #{tpu_custom_call.1} parent=103 // pred_check
          %p834 = pneg %p130
        $region114: #{tpu_custom_call.1} parent=103 // pred_check_branch
          %836 = sbr.rel (%p834) target = $region116
        $region115: #{tpu_custom_call.1} parent=103 // pred_region
          %s837 = sand.u32 %s44, 1
          %s838 = scalar_lea.sflag [#allocation10], %s837
          %s839 = sand.u32 %s120, 1
          %s840 = smul.addr %s839, 24
          %s841 = scalar_lea.vmem [#allocation11], %s840
          %s843 = ssub.s32 384, 384
          %844 = vsyncadd %s838, %s843
          %s845 = smul.addr %s51, 128
          %s846 = scalar_lea.hbm %s2, %s845
          %s847 = sshll.u32 %s841, 4
          %s848 = int_to_ptr.vmem [resolvable:$true] %s847
          %853 = dma.hbm_to_vmem [thread:$0]  %s846, 384, %s848, %s838, 256, 128, 8
        $region116: #{tpu_custom_call.1} parent=103 // pred_fallthru
          _
      $region104: #{tpu_custom_call.1} parent=5 // pred_fallthru
        _
      %p854 = scmp.le.s32.totalorder 1, %s44
      %p855 = scmp.lt.s32.totalorder %s44, 5
      %p856 = pnand %p854, %p855
      %p857 = pneg %p856
      // Predicated region
      $region117: #{tpu_custom_call.1} parent=5 // pred_check
        _
      $region118: #{tpu_custom_call.1} parent=5 // pred_check_branch
        %859 = sbr.rel (%p856) target = $region120
      $region119: #{tpu_custom_call.1} parent=5 // pred_region
        %s860 = ssub.s32 %s44, 1
        %s861 = sand.u32 %s71, 1
        %s862 = scalar_lea.sflag [#allocation7], %s861
        %s863 = sand.u32 %s71, 1
        %s864 = smul.addr %s863, 16
        %s865 = scalar_lea.vmem [#allocation6], %s864
        // Predicated region
        $region121: #{tpu_custom_call.1} parent=119 // pred_check
          %p866 = pneg %p84
        $region122: #{tpu_custom_call.1} parent=119 // pred_check_branch
          %868 = sbr.rel (%p866) target = $region124
        $region123: #{tpu_custom_call.1} parent=119 // pred_region
          %869 = dma.done %s862, 256
        $region124: #{tpu_custom_call.1} parent=119 // pred_fallthru
          _
        %s870 = sand.u32 %s49, 1
        %s871 = scalar_lea.sflag [#allocation10], %s870
        %s872 = sand.u32 %s97, 1
        %s873 = smul.addr %s872, 32
        %s874 = scalar_lea.vmem [#allocation9], %s873
        // Predicated region
        $region125: #{tpu_custom_call.1} parent=119 // pred_check
          %p875 = pneg %p110
        $region126: #{tpu_custom_call.1} parent=119 // pred_check_branch
          %877 = sbr.rel (%p875) target = $region128
        $region127: #{tpu_custom_call.1} parent=119 // pred_region
          %878 = dma.done %s871, 512
        $region128: #{tpu_custom_call.1} parent=119 // pred_fallthru
          _
        %s879 = sand.u32 %s49, 1
        %s880 = scalar_lea.sflag [#allocation10], %s879
        %s881 = sand.u32 %s123, 1
        %s882 = smul.addr %s881, 24
        %s883 = scalar_lea.vmem [#allocation11], %s882
        // Predicated region
        $region129: #{tpu_custom_call.1} parent=119 // pred_check
          %p884 = pneg %p136
        $region130: #{tpu_custom_call.1} parent=119 // pred_check_branch
          %886 = sbr.rel (%p884) target = $region132
        $region131: #{tpu_custom_call.1} parent=119 // pred_region
          %887 = dma.done %s880, 384
        $region132: #{tpu_custom_call.1} parent=119 // pred_fallthru
          _
        // Predicated region
        $region133: #{tpu_custom_call.1} parent=119 // pred_check
          %p888 = pneg %p157
        $region134: #{tpu_custom_call.1} parent=119 // pred_check_branch
          %890 = sbr.rel (%p888) target = $region136
        $region135: #{tpu_custom_call.1} parent=119 // pred_region
          %891 = dma.done [#allocation13], 1024
        $region136: #{tpu_custom_call.1} parent=119 // pred_fallthru
          _
        // Predicated region
        $region137: #{tpu_custom_call.1} parent=119 // pred_check
          %p892 = pneg %p199
        $region138: #{tpu_custom_call.1} parent=119 // pred_check_branch
          %894 = sbr.rel (%p892) target = $region140
        $region139: #{tpu_custom_call.1} parent=119 // pred_region
          %895 = dma.done [#allocation13], 2048
        $region140: #{tpu_custom_call.1} parent=119 // pred_fallthru
          _
        // Predicated region
        $region141: #{tpu_custom_call.1} parent=119 // pred_check
          %p896 = pneg %p241
        $region142: #{tpu_custom_call.1} parent=119 // pred_check_branch
          %898 = sbr.rel (%p896) target = $region144
        $region143: #{tpu_custom_call.1} parent=119 // pred_region
          %899 = dma.done [#allocation16], 1024
        $region144: #{tpu_custom_call.1} parent=119 // pred_fallthru
          _
        // Predicated region
        $region145: #{tpu_custom_call.1} parent=119 // pred_check
          %p900 = pneg %p283
        $region146: #{tpu_custom_call.1} parent=119 // pred_check_branch
          %902 = sbr.rel (%p900) target = $region148
        $region147: #{tpu_custom_call.1} parent=119 // pred_region
          %903 = dma.done [#allocation16], 1024
        $region148: #{tpu_custom_call.1} parent=119 // pred_fallthru
          _
        // Predicated region
        $region149: #{tpu_custom_call.1} parent=119 // pred_check
          %p904 = pneg %p325
        $region150: #{tpu_custom_call.1} parent=119 // pred_check_branch
          %906 = sbr.rel (%p904) target = $region152
        $region151: #{tpu_custom_call.1} parent=119 // pred_region
          %907 = dma.done [#allocation19], 2048
        $region152: #{tpu_custom_call.1} parent=119 // pred_fallthru
          _
        // Predicated region
        $region153: #{tpu_custom_call.1} parent=119 // pred_check
          %p908 = pneg %p367
        $region154: #{tpu_custom_call.1} parent=119 // pred_check_branch
          %910 = sbr.rel (%p908) target = $region156
        $region155: #{tpu_custom_call.1} parent=119 // pred_region
          %911 = dma.done [#allocation19], 1024
        $region156: #{tpu_custom_call.1} parent=119 // pred_fallthru
          _
        // Predicated region
        $region157: #{tpu_custom_call.1} parent=119 // pred_check
          %p912 = pneg %p409
        $region158: #{tpu_custom_call.1} parent=119 // pred_check_branch
          %914 = sbr.rel (%p912) target = $region160
        $region159: #{tpu_custom_call.1} parent=119 // pred_region
          %915 = dma.done [#allocation22], 2048
        $region160: #{tpu_custom_call.1} parent=119 // pred_fallthru
          _
        // Predicated region
        $region161: #{tpu_custom_call.1} parent=119 // pred_check
          %p916 = pneg %p451
        $region162: #{tpu_custom_call.1} parent=119 // pred_check_branch
          %918 = sbr.rel (%p916) target = $region164
        $region163: #{tpu_custom_call.1} parent=119 // pred_region
          %919 = dma.done [#allocation22], 2048
        $region164: #{tpu_custom_call.1} parent=119 // pred_fallthru
          _
        %s920 = sand.u32 %s71, 1
        %s921 = scalar_lea.sflag [#allocation7], %s920
        %s922 = sand.u32 %s71, 1
        %s923 = smul.addr %s922, 16
        %s924 = scalar_lea.vmem [#allocation6], %s923
        %p925 = pneg %p84
        %p926 = pneg %p81
        %s927 = sand.u32 %s49, 1
        %s928 = scalar_lea.sflag [#allocation10], %s927
        %s929 = sand.u32 %s97, 1
        %s930 = smul.addr %s929, 32
        %s931 = scalar_lea.vmem [#allocation9], %s930
        %p932 = pneg %p110
        %p933 = pneg %p107
        %s934 = sand.u32 %s49, 1
        %s935 = scalar_lea.sflag [#allocation10], %s934
        %s936 = sand.u32 %s123, 1
        %s937 = smul.addr %s936, 24
        %s938 = scalar_lea.vmem [#allocation11], %s937
        %p939 = pneg %p136
        %p940 = pneg %p133
        %p941 = pneg %p157
        %p942 = pneg %p154
        %p943 = pneg %p178
        %p944 = pneg %p175
        %p945 = pneg %p199
        %p946 = pneg %p196
        %p947 = pneg %p220
        %p948 = pneg %p217
        %p949 = pneg %p241
        %p950 = pneg %p238
        %p951 = pneg %p262
        %p952 = pneg %p259
        %p953 = pneg %p283
        %p954 = pneg %p280
        %p955 = pneg %p304
        %p956 = pneg %p301
        %p957 = pneg %p325
        %p958 = pneg %p322
        %p959 = pneg %p346
        %p960 = pneg %p343
        %p961 = pneg %p367
        %p962 = pneg %p364
        %p963 = pneg %p388
        %p964 = pneg %p385
        %p965 = pneg %p409
        %p966 = pneg %p406
        %p967 = pneg %p430
        %p968 = pneg %p427
        %p969 = pneg %p451
        %p970 = pneg %p448
        %p971 = pneg %p472
        %p972 = pneg %p469
        %p973 = pneg %p493
        %p974 = pneg %p490
        %p975 = pneg %p514
        %p976 = pneg %p511
        %p977 = pneg %p535
        %p978 = pneg %p532
        %p979 = pneg %p556
        %p980 = pneg %p553
        %p981 = pneg %p577
        %p982 = pneg %p574
        %p983 = pneg %p598
        %p984 = pneg %p595
        %p985 = pneg %p626
        %p986 = pneg %p623
        %s987 = sand.u32 %s613, 1
        %s988 = scalar_lea.sflag [#allocation8], %s987
        %s989 = sand.u32 %s613, 1
        %s990 = smul.addr %s989, 16
        %s991 = scalar_lea.vmem [#allocation24], %s990
        %s992 = smul.u32 2, %s54
        %s993 = smul.u32 2, %s54
        %p995 = scmp.eq.s32.totalorder %s54, 0
        // Predicated region
        $region165: #{tpu_custom_call.1} parent=119 // pred_check
          %p996 = pneg %p995
        $region166: #{tpu_custom_call.1} parent=119 // pred_check_branch
          %998 = sbr.rel (%p996) target = $region168
        $region167: #{tpu_custom_call.1} parent=119 // pred_region
          %v999 = vld [vmem:[%s874] sm:$0xff]
          %v1000 = vld [vmem:[%s874 + $0x8] sm:$0xff]
          %v1001 = vld [vmem:[%s874 + $0x10] sm:$0xff]
          %v1002 = vld [vmem:[%s874 + $0x18] sm:$0xff]
          %v1003 = vld [vmem:[#allocation14] sm:$0xff]
          %v1004 = vld [vmem:[#allocation14 + $0x8] sm:$0xff]
          %v1005 = vld [vmem:[#allocation14 + $0x10] sm:$0xff]
          %v1006 = vld [vmem:[#allocation14 + $0x18] sm:$0xff]
          %v1007 = vld [vmem:[#allocation14 + $0x20] sm:$0xff]
          %v1008 = vld [vmem:[#allocation14 + $0x28] sm:$0xff]
          %v1009 = vld [vmem:[#allocation14 + $0x30] sm:$0xff]
          %v1010 = vld [vmem:[#allocation14 + $0x38] sm:$0xff]
          %v1011 = vld [vmem:[#allocation14 + $0x40] sm:$0xff]
          %v1012 = vld [vmem:[#allocation14 + $0x48] sm:$0xff]
          %v1013 = vld [vmem:[#allocation14 + $0x50] sm:$0xff]
          %v1014 = vld [vmem:[#allocation14 + $0x58] sm:$0xff]
          %v1015 = vld [vmem:[#allocation14 + $0x60] sm:$0xff]
          %v1016 = vld [vmem:[#allocation14 + $0x68] sm:$0xff]
          %v1017 = vld [vmem:[#allocation14 + $0x70] sm:$0xff]
          %v1018 = vld [vmem:[#allocation14 + $0x78] sm:$0xff]
          %v1019 = vld [vmem:[%s6] sm:$0x3]
          %v1020 = vpack.c.bf16 %v1000, %v999
          %v1021 = vpack.c.bf16 %v1002, %v1001
          %v1023 = vlaneseq
          %v1024 = vshrl.u32 %v1023, 7
          %v1025 = vsub.s32 0, %v1024
          %v1026 = vrot.slane %v1019, %v1025
          %v1027 = vlaneseq
          %v1028 = vshrl.u32 %v1027, 7
          %v1029 = vsub.s32 1, %v1028
          %v1030 = vrot.slane %v1019, %v1029
          %v1049 = vunpack.c.l.b16 %v1003
          %v1050 = vunpack.c.h.b16 %v1003
          %v1051 = vunpack.c.l.b16 %v1004
          %v1052 = vunpack.c.h.b16 %v1004
          %v1053 = vunpack.c.l.b16 %v1005
          %v1054 = vunpack.c.h.b16 %v1005
          %v1055 = vunpack.c.l.b16 %v1006
          %v1056 = vunpack.c.h.b16 %v1006
          %v1057 = vunpack.c.l.b16 %v1007
          %v1058 = vunpack.c.h.b16 %v1007
          %v1059 = vunpack.c.l.b16 %v1008
          %v1060 = vunpack.c.h.b16 %v1008
          %v1061 = vunpack.c.l.b16 %v1009
          %v1062 = vunpack.c.h.b16 %v1009
          %v1063 = vunpack.c.l.b16 %v1010
          %v1064 = vunpack.c.h.b16 %v1010
          %v1065 = vunpack.c.l.b16 %v1011
          %v1066 = vunpack.c.h.b16 %v1011
          %v1067 = vunpack.c.l.b16 %v1012
          %v1068 = vunpack.c.h.b16 %v1012
          %v1069 = vunpack.c.l.b16 %v1013
          %v1070 = vunpack.c.h.b16 %v1013
          %v1071 = vunpack.c.l.b16 %v1014
          %v1072 = vunpack.c.h.b16 %v1014
          %v1073 = vunpack.c.l.b16 %v1015
          %v1074 = vunpack.c.h.b16 %v1015
          %v1075 = vunpack.c.l.b16 %v1016
          %v1076 = vunpack.c.h.b16 %v1016
          %v1077 = vunpack.c.l.b16 %v1017
          %v1078 = vunpack.c.h.b16 %v1017
          %v1079 = vunpack.c.l.b16 %v1018
          %v1080 = vunpack.c.h.b16 %v1018
          %v1081 = vpack.c.b16 %v1051, %v1049
          %v1082 = vpack.c.b16 %v1052, %v1050
          %v1083 = vpack.c.b16 %v1055, %v1053
          %v1084 = vpack.c.b16 %v1056, %v1054
          %v1085 = vpack.c.b16 %v1059, %v1057
          %v1086 = vpack.c.b16 %v1060, %v1058
          %v1087 = vpack.c.b16 %v1063, %v1061
          %v1088 = vpack.c.b16 %v1064, %v1062
          %v1089 = vpack.c.b16 %v1067, %v1065
          %v1090 = vpack.c.b16 %v1068, %v1066
          %v1091 = vpack.c.b16 %v1071, %v1069
          %v1092 = vpack.c.b16 %v1072, %v1070
          %v1093 = vpack.c.b16 %v1075, %v1073
          %v1094 = vpack.c.b16 %v1076, %v1074
          %v1095 = vpack.c.b16 %v1079, %v1077
          %v1096 = vpack.c.b16 %v1080, %v1078
          %1113 = vmatprep.subr.bf16.mxu0 %v1082
          %1114 = vmatpush1.bf16.msra.mxu0 %v1081
          %1115 = vmatprep.subr.bf16.mxu0 %v1084
          %1116 = vmatpush1.bf16.msra.mxu0 %v1083
          %1117 = vmatprep.subr.bf16.mxu0 %v1086
          %1118 = vmatpush1.bf16.msra.mxu0 %v1085
          %1119 = vmatprep.subr.bf16.mxu0 %v1088
          %1120 = vmatpush1.bf16.msra.mxu0 %v1087
          %1121 = vmatprep.subr.bf16.mxu0 %v1090
          %1122 = vmatpush1.bf16.msra.mxu0 %v1089
          %1123 = vmatprep.subr.bf16.mxu0 %v1092
          %1124 = vmatpush1.bf16.msra.mxu0 %v1091
          %1125 = vmatprep.subr.bf16.mxu0 %v1094
          %1126 = vmatpush1.bf16.msra.mxu0 %v1093
          %1127 = vmatprep.subr.bf16.mxu0 %v1096
          %1128 = vmatpush1.bf16.msra.mxu0 %v1095
          %1129 = vmatprep.subr.bf16.mxu0 0
          %1130 = vmatpush1.bf16.msra.mxu0 0
          %1131 = vmatprep.subr.bf16.mxu0 0
          %1132 = vmatpush1.bf16.msra.mxu0 0
          %1133 = vmatprep.subr.bf16.mxu0 0
          %1134 = vmatpush1.bf16.msra.mxu0 0
          %1135 = vmatprep.subr.bf16.mxu0 0
          %1136 = vmatpush1.bf16.msra.mxu0 0
          %1137 = vmatprep.subr.bf16.mxu0 0
          %1138 = vmatpush1.bf16.msra.mxu0 0
          %1139 = vmatprep.subr.bf16.mxu0 0
          %1140 = vmatpush1.bf16.msra.mxu0 0
          %1141 = vmatprep.subr.bf16.mxu0 0
          %1142 = vmatpush1.bf16.msra.mxu0 0
          %1143 = vmatprep.subr.bf16.mxu0 0
          %1144 = vmatpush1.bf16.msra.mxu0 0
          %1145 = vmatprep.mubr.bf16.mxu0 0
          %1146 = vmatmul.mubr.bf16.gmra.mrb[0].mxu0 %v1020
          %v1147 = vpop.f32.mrb[0].mxu0
          %v1148 = vadd.f32 %v1026, %v1147
          %v1149 = vpop.f32.mrb[0].mxu0
          %v1150 = vadd.f32 %v1030, %v1149
          %v1151 = vpop.f32.mrb[0].mxu0
          %v1152 = vadd.f32 %v1026, %v1151
          %v1153 = vpop.f32.mrb[0].mxu0
          %v1154 = vadd.f32 %v1030, %v1153
          %1155 = vmatprep.mubr.bf16.mxu0 0
          %1156 = vmatmul.mubr.bf16.gmra.mrb[0].mxu0 %v1021
          %v1157 = vpop.f32.mrb[0].mxu0
          %v1158 = vadd.f32 %v1026, %v1157
          %v1159 = vpop.f32.mrb[0].mxu0
          %v1160 = vadd.f32 %v1030, %v1159
          %v1161 = vpop.f32.mrb[0].mxu0
          %v1162 = vadd.f32 %v1026, %v1161
          %v1163 = vpop.f32.mrb[0].mxu0
          %v1164 = vadd.f32 %v1030, %v1163
          %1165 = vdwg.mxu0
          %1170 = vrot.lane.b32.xlu0 %v1148, 96
          %v1171 = vpop.permute.xlu0 %1170
          %1172 = vrot.lane.b32.xlu0 %v1152, 96
          %v1173 = vpop.permute.xlu0 %1172
          %1174 = vrot.lane.b32.xlu0 %v1158, 96
          %v1175 = vpop.permute.xlu0 %1174
          %1176 = vrot.lane.b32.xlu0 %v1162, 96
          %v1177 = vpop.permute.xlu0 %1176
          %1182 = vrot.lane.b32.xlu0 %v1148, 64
          %v1183 = vpop.permute.xlu0 %1182
          %1184 = vrot.lane.b32.xlu0 %v1152, 64
          %v1185 = vpop.permute.xlu0 %1184
          %1186 = vrot.lane.b32.xlu0 %v1158, 64
          %v1187 = vpop.permute.xlu0 %1186
          %1188 = vrot.lane.b32.xlu0 %v1162, 64
          %v1189 = vpop.permute.xlu0 %1188
          %1194 = vrot.lane.b32.xlu0 %v1148, 32
          %v1195 = vpop.permute.xlu0 %1194
          %1196 = vrot.lane.b32.xlu0 %v1152, 32
          %v1197 = vpop.permute.xlu0 %1196
          %1198 = vrot.lane.b32.xlu0 %v1158, 32
          %v1199 = vpop.permute.xlu0 %1198
          %1200 = vrot.lane.b32.xlu0 %v1162, 32
          %v1201 = vpop.permute.xlu0 %1200
          %v1206 = vpack.c.bf16 %v1152, %v1148
          %v1207 = vpack.c.bf16 %v1162, %v1158
          %v1208 = vpack.c.bf16 %v1173, %v1171
          %v1209 = vpack.c.bf16 %v1177, %v1175
          %v1210 = vpack.c.bf16 %v1185, %v1183
          %v1211 = vpack.c.bf16 %v1189, %v1187
          %v1212 = vpack.c.bf16 %v1197, %v1195
          %v1213 = vpack.c.bf16 %v1201, %v1199
          %1218 = vrot.lane.b32.xlu0 %v1150, 96
          %v1219 = vpop.permute.xlu0 %1218
          %1220 = vrot.lane.b32.xlu0 %v1154, 96
          %v1221 = vpop.permute.xlu0 %1220
          %1222 = vrot.lane.b32.xlu0 %v1160, 96
          %v1223 = vpop.permute.xlu0 %1222
          %1224 = vrot.lane.b32.xlu0 %v1164, 96
          %v1225 = vpop.permute.xlu0 %1224
          %1230 = vrot.lane.b32.xlu0 %v1150, 64
          %v1231 = vpop.permute.xlu0 %1230
          %1232 = vrot.lane.b32.xlu0 %v1154, 64
          %v1233 = vpop.permute.xlu0 %1232
          %1234 = vrot.lane.b32.xlu0 %v1160, 64
          %v1235 = vpop.permute.xlu0 %1234
          %1236 = vrot.lane.b32.xlu0 %v1164, 64
          %v1237 = vpop.permute.xlu0 %1236
          %1242 = vrot.lane.b32.xlu0 %v1150, 32
          %v1243 = vpop.permute.xlu0 %1242
          %1244 = vrot.lane.b32.xlu0 %v1154, 32
          %v1245 = vpop.permute.xlu0 %1244
          %1246 = vrot.lane.b32.xlu0 %v1160, 32
          %v1247 = vpop.permute.xlu0 %1246
          %1248 = vrot.lane.b32.xlu0 %v1164, 32
          %v1249 = vpop.permute.xlu0 %1248
          %v1254 = vpack.c.bf16 %v1154, %v1150
          %v1255 = vpack.c.bf16 %v1164, %v1160
          %v1256 = vpack.c.bf16 %v1221, %v1219
          %v1257 = vpack.c.bf16 %v1225, %v1223
          %v1258 = vpack.c.bf16 %v1233, %v1231
          %v1259 = vpack.c.bf16 %v1237, %v1235
          %v1260 = vpack.c.bf16 %v1245, %v1243
          %v1261 = vpack.c.bf16 %v1249, %v1247
          %vm1262 = vcmask 261120
          %1263 = vst.msk [vmem:[#allocation2] sm:$0xff] %vm1262, %v1206
          %1264 = vst.msk [vmem:[#allocation2 + $0x8] sm:$0xff] %vm1262, %v1207
          %1265 = vst.msk [vmem:[#allocation2 + $0x10] sm:$0xff] %vm1262, %v1208
          %1266 = vst.msk [vmem:[#allocation2 + $0x18] sm:$0xff] %vm1262, %v1209
          %1267 = vst.msk [vmem:[#allocation2 + $0x20] sm:$0xff] %vm1262, %v1210
          %1268 = vst.msk [vmem:[#allocation2 + $0x28] sm:$0xff] %vm1262, %v1211
          %1269 = vst.msk [vmem:[#allocation2 + $0x30] sm:$0xff] %vm1262, %v1212
          %1270 = vst.msk [vmem:[#allocation2 + $0x38] sm:$0xff] %vm1262, %v1213
          %1271 = vst.msk [vmem:[#allocation3] sm:$0xff] %vm1262, %v1254
          %1272 = vst.msk [vmem:[#allocation3 + $0x8] sm:$0xff] %vm1262, %v1255
          %1273 = vst.msk [vmem:[#allocation3 + $0x10] sm:$0xff] %vm1262, %v1256
          %1274 = vst.msk [vmem:[#allocation3 + $0x18] sm:$0xff] %vm1262, %v1257
          %1275 = vst.msk [vmem:[#allocation3 + $0x20] sm:$0xff] %vm1262, %v1258
          %1276 = vst.msk [vmem:[#allocation3 + $0x28] sm:$0xff] %vm1262, %v1259
          %1277 = vst.msk [vmem:[#allocation3 + $0x30] sm:$0xff] %vm1262, %v1260
          %1278 = vst.msk [vmem:[#allocation3 + $0x38] sm:$0xff] %vm1262, %v1261
          %v1279 = vld [vmem:[%s883] sm:$0xff]
          %v1280 = vld [vmem:[%s883 + $0x8] sm:$0xff]
          %v1281 = vld [vmem:[%s883 + $0x10] sm:$0xff]
          %v1282 = vld [vmem:[#allocation18] sm:$0xff]
          %v1283 = vld [vmem:[#allocation18 + $0x8] sm:$0xff]
          %v1284 = vld [vmem:[#allocation18 + $0x10] sm:$0xff]
          %v1285 = vld [vmem:[#allocation18 + $0x18] sm:$0xff]
          %v1286 = vld [vmem:[#allocation18 + $0x20] sm:$0xff]
          %v1287 = vld [vmem:[#allocation18 + $0x28] sm:$0xff]
          %v1288 = vld [vmem:[#allocation18 + $0x30] sm:$0xff]
          %v1289 = vld [vmem:[#allocation18 + $0x38] sm:$0xff]
          %v1290 = vld [vmem:[#allocation18 + $0x40] sm:$0xff]
          %v1291 = vld [vmem:[#allocation18 + $0x48] sm:$0xff]
          %v1292 = vld [vmem:[#allocation18 + $0x50] sm:$0xff]
          %v1293 = vld [vmem:[#allocation18 + $0x58] sm:$0xff]
          %v1294 = vld [vmem:[#allocation18 + $0x60] sm:$0xff]
          %v1295 = vld [vmem:[#allocation18 + $0x68] sm:$0xff]
          %v1296 = vld [vmem:[#allocation18 + $0x70] sm:$0xff]
          %v1297 = vld [vmem:[#allocation18 + $0x78] sm:$0xff]
          %v1298 = vld [vmem:[%s12] sm:$0x3]
          %v1299 = vpack.c.bf16 %v1280, %v1279
          %v1300 = vpack.c.bf16 %v1281, %v1281
          %v1302 = vlaneseq
          %v1303 = vshrl.u32 %v1302, 7
          %v1304 = vsub.s32 0, %v1303
          %v1305 = vrot.slane %v1298, %v1304
          %v1306 = vlaneseq
          %v1307 = vshrl.u32 %v1306, 7
          %v1308 = vsub.s32 1, %v1307
          %v1309 = vrot.slane %v1298, %v1308
          %v1328 = vunpack.c.l.b16 %v1282
          %v1329 = vunpack.c.h.b16 %v1282
          %v1330 = vunpack.c.l.b16 %v1283
          %v1331 = vunpack.c.h.b16 %v1283
          %v1332 = vunpack.c.l.b16 %v1284
          %v1333 = vunpack.c.h.b16 %v1284
          %v1334 = vunpack.c.l.b16 %v1285
          %v1335 = vunpack.c.h.b16 %v1285
          %v1336 = vunpack.c.l.b16 %v1286
          %v1337 = vunpack.c.h.b16 %v1286
          %v1338 = vunpack.c.l.b16 %v1287
          %v1339 = vunpack.c.h.b16 %v1287
          %v1340 = vunpack.c.l.b16 %v1288
          %v1341 = vunpack.c.h.b16 %v1288
          %v1342 = vunpack.c.l.b16 %v1289
          %v1343 = vunpack.c.h.b16 %v1289
          %v1344 = vunpack.c.l.b16 %v1290
          %v1345 = vunpack.c.h.b16 %v1290
          %v1346 = vunpack.c.l.b16 %v1291
          %v1347 = vunpack.c.h.b16 %v1291
          %v1348 = vunpack.c.l.b16 %v1292
          %v1349 = vunpack.c.h.b16 %v1292
          %v1350 = vunpack.c.l.b16 %v1293
          %v1351 = vunpack.c.h.b16 %v1293
          %v1352 = vunpack.c.l.b16 %v1294
          %v1353 = vunpack.c.h.b16 %v1294
          %v1354 = vunpack.c.l.b16 %v1295
          %v1355 = vunpack.c.h.b16 %v1295
          %v1356 = vunpack.c.l.b16 %v1296
          %v1357 = vunpack.c.h.b16 %v1296
          %v1358 = vunpack.c.l.b16 %v1297
          %v1359 = vunpack.c.h.b16 %v1297
          %v1360 = vpack.c.b16 %v1330, %v1328
          %v1361 = vpack.c.b16 %v1331, %v1329
          %v1362 = vpack.c.b16 %v1334, %v1332
          %v1363 = vpack.c.b16 %v1335, %v1333
          %v1364 = vpack.c.b16 %v1338, %v1336
          %v1365 = vpack.c.b16 %v1339, %v1337
          %v1366 = vpack.c.b16 %v1342, %v1340
          %v1367 = vpack.c.b16 %v1343, %v1341
          %v1368 = vpack.c.b16 %v1346, %v1344
          %v1369 = vpack.c.b16 %v1347, %v1345
          %v1370 = vpack.c.b16 %v1350, %v1348
          %v1371 = vpack.c.b16 %v1351, %v1349
          %v1372 = vpack.c.b16 %v1354, %v1352
          %v1373 = vpack.c.b16 %v1355, %v1353
          %v1374 = vpack.c.b16 %v1358, %v1356
          %v1375 = vpack.c.b16 %v1359, %v1357
          %1392 = vmatprep.subr.bf16.mxu0 %v1361
          %1393 = vmatpush1.bf16.msra.mxu0 %v1360
          %1394 = vmatprep.subr.bf16.mxu0 %v1363
          %1395 = vmatpush1.bf16.msra.mxu0 %v1362
          %1396 = vmatprep.subr.bf16.mxu0 %v1365
          %1397 = vmatpush1.bf16.msra.mxu0 %v1364
          %1398 = vmatprep.subr.bf16.mxu0 %v1367
          %1399 = vmatpush1.bf16.msra.mxu0 %v1366
          %1400 = vmatprep.subr.bf16.mxu0 %v1369
          %1401 = vmatpush1.bf16.msra.mxu0 %v1368
          %1402 = vmatprep.subr.bf16.mxu0 %v1371
          %1403 = vmatpush1.bf16.msra.mxu0 %v1370
          %1404 = vmatprep.subr.bf16.mxu0 %v1373
          %1405 = vmatpush1.bf16.msra.mxu0 %v1372
          %1406 = vmatprep.subr.bf16.mxu0 %v1375
          %1407 = vmatpush1.bf16.msra.mxu0 %v1374
          %1408 = vmatprep.subr.bf16.mxu0 0
          %1409 = vmatpush1.bf16.msra.mxu0 0
          %1410 = vmatprep.subr.bf16.mxu0 0
          %1411 = vmatpush1.bf16.msra.mxu0 0
          %1412 = vmatprep.subr.bf16.mxu0 0
          %1413 = vmatpush1.bf16.msra.mxu0 0
          %1414 = vmatprep.subr.bf16.mxu0 0
          %1415 = vmatpush1.bf16.msra.mxu0 0
          %1416 = vmatprep.subr.bf16.mxu0 0
          %1417 = vmatpush1.bf16.msra.mxu0 0
          %1418 = vmatprep.subr.bf16.mxu0 0
          %1419 = vmatpush1.bf16.msra.mxu0 0
          %1420 = vmatprep.subr.bf16.mxu0 0
          %1421 = vmatpush1.bf16.msra.mxu0 0
          %1422 = vmatprep.subr.bf16.mxu0 0
          %1423 = vmatpush1.bf16.msra.mxu0 0
          %1424 = vmatprep.mubr.bf16.mxu0 0
          %1425 = vmatmul.mubr.bf16.gmra.mrb[0].mxu0 %v1299
          %v1426 = vpop.f32.mrb[0].mxu0
          %v1427 = vadd.f32 %v1305, %v1426
          %v1428 = vpop.f32.mrb[0].mxu0
          %v1429 = vadd.f32 %v1309, %v1428
          %v1430 = vpop.f32.mrb[0].mxu0
          %v1431 = vadd.f32 %v1305, %v1430
          %v1432 = vpop.f32.mrb[0].mxu0
          %v1433 = vadd.f32 %v1309, %v1432
          %1434 = vmatprep.mubr.bf16.mxu0 0
          %1435 = vmatmul.mubr.bf16.gmra.mrb[0].mxu0 %v1300
          %v1436 = vpop.f32.mrb[0].mxu0
          %v1437 = vadd.f32 %v1305, %v1436
          %v1438 = vpop.f32.mrb[0].mxu0
          %v1439 = vadd.f32 %v1309, %v1438
          %v1440 = vpop.f32.mrb[0].mxu0
          %v1441 = vpop.f32.mrb[0].mxu0
          %1442 = vdwg.mxu0
          %1446 = vrot.lane.b32.xlu0 %v1427, 96
          %v1447 = vpop.permute.xlu0 %1446
          %1448 = vrot.lane.b32.xlu0 %v1431, 96
          %v1449 = vpop.permute.xlu0 %1448
          %1450 = vrot.lane.b32.xlu0 %v1437, 96
          %v1451 = vpop.permute.xlu0 %1450
          %1455 = vrot.lane.b32.xlu0 %v1427, 64
          %v1456 = vpop.permute.xlu0 %1455
          %1457 = vrot.lane.b32.xlu0 %v1431, 64
          %v1458 = vpop.permute.xlu0 %1457
          %1459 = vrot.lane.b32.xlu0 %v1437, 64
          %v1460 = vpop.permute.xlu0 %1459
          %1464 = vrot.lane.b32.xlu0 %v1427, 32
          %v1465 = vpop.permute.xlu0 %1464
          %1466 = vrot.lane.b32.xlu0 %v1431, 32
          %v1467 = vpop.permute.xlu0 %1466
          %1468 = vrot.lane.b32.xlu0 %v1437, 32
          %v1469 = vpop.permute.xlu0 %1468
          %v1473 = vpack.c.bf16 %v1431, %v1427
          %v1474 = vpack.c.bf16 %v1437, %v1437
          %v1475 = vpack.c.bf16 %v1449, %v1447
          %v1476 = vpack.c.bf16 %v1451, %v1451
          %v1477 = vpack.c.bf16 %v1458, %v1456
          %v1478 = vpack.c.bf16 %v1460, %v1460
          %v1479 = vpack.c.bf16 %v1467, %v1465
          %v1480 = vpack.c.bf16 %v1469, %v1469
          %1484 = vrot.lane.b32.xlu0 %v1429, 96
          %v1485 = vpop.permute.xlu0 %1484
          %1486 = vrot.lane.b32.xlu0 %v1433, 96
          %v1487 = vpop.permute.xlu0 %1486
          %1488 = vrot.lane.b32.xlu0 %v1439, 96
          %v1489 = vpop.permute.xlu0 %1488
          %1493 = vrot.lane.b32.xlu0 %v1429, 64
          %v1494 = vpop.permute.xlu0 %1493
          %1495 = vrot.lane.b32.xlu0 %v1433, 64
          %v1496 = vpop.permute.xlu0 %1495
          %1497 = vrot.lane.b32.xlu0 %v1439, 64
          %v1498 = vpop.permute.xlu0 %1497
          %1502 = vrot.lane.b32.xlu0 %v1429, 32
          %v1503 = vpop.permute.xlu0 %1502
          %1504 = vrot.lane.b32.xlu0 %v1433, 32
          %v1505 = vpop.permute.xlu0 %1504
          %1506 = vrot.lane.b32.xlu0 %v1439, 32
          %v1507 = vpop.permute.xlu0 %1506
          %v1511 = vpack.c.bf16 %v1433, %v1429
          %v1512 = vpack.c.bf16 %v1439, %v1439
          %v1513 = vpack.c.bf16 %v1487, %v1485
          %v1514 = vpack.c.bf16 %v1489, %v1489
          %v1515 = vpack.c.bf16 %v1496, %v1494
          %v1516 = vpack.c.bf16 %v1498, %v1498
          %v1517 = vpack.c.bf16 %v1505, %v1503
          %v1518 = vpack.c.bf16 %v1507, %v1507
          %v1527 = vunpack.c.l.b16 %v1473
          %v1528 = vunpack.c.h.b16 %v1473
          %v1529 = vunpack.c.l.b16 %v1474
          %v1530 = vunpack.c.l.b16 %v1475
          %v1531 = vunpack.c.h.b16 %v1475
          %v1532 = vunpack.c.l.b16 %v1476
          %v1533 = vunpack.c.l.b16 %v1477
          %v1534 = vunpack.c.h.b16 %v1477
          %v1535 = vunpack.c.l.b16 %v1478
          %v1536 = vunpack.c.l.b16 %v1479
          %v1537 = vunpack.c.h.b16 %v1479
          %v1538 = vunpack.c.l.b16 %v1480
          %v1539 = vpack.c.b16 %v1527, %v1527
          %v1540 = vpack.c.b16 %v1528, %v1528
          %v1541 = vpack.c.b16 %v1529, %v1529
          %v1542 = vpack.c.b16 %v1530, %v1530
          %v1543 = vpack.c.b16 %v1531, %v1531
          %v1544 = vpack.c.b16 %v1532, %v1532
          %v1545 = vpack.c.b16 %v1533, %v1533
          %v1546 = vpack.c.b16 %v1534, %v1534
          %v1547 = vpack.c.b16 %v1535, %v1535
          %v1548 = vpack.c.b16 %v1536, %v1536
          %v1549 = vpack.c.b16 %v1537, %v1537
          %v1550 = vpack.c.b16 %v1538, %v1538
          %vm1563 = vcmask 257024
          %1564 = vst.msk [vmem:[#allocation4] sm:$0xf] %vm1563, %v1539
          %1565 = vst.msk [vmem:[#allocation4 + $0x4] sm:$0xf] %vm1563, %v1540
          %1566 = vst.msk [vmem:[#allocation4 + $0x8] sm:$0xf] %vm1563, %v1541
          %1567 = vst.msk [vmem:[#allocation4 + $0xc] sm:$0xf] %vm1563, %v1542
          %1568 = vst.msk [vmem:[#allocation4 + $0x10] sm:$0xf] %vm1563, %v1543
          %1569 = vst.msk [vmem:[#allocation4 + $0x14] sm:$0xf] %vm1563, %v1544
          %1570 = vst.msk [vmem:[#allocation4 + $0x18] sm:$0xf] %vm1563, %v1545
          %1571 = vst.msk [vmem:[#allocation4 + $0x1c] sm:$0xf] %vm1563, %v1546
          %1572 = vst.msk [vmem:[#allocation4 + $0x20] sm:$0xf] %vm1563, %v1547
          %1573 = vst.msk [vmem:[#allocation4 + $0x24] sm:$0xf] %vm1563, %v1548
          %1574 = vst.msk [vmem:[#allocation4 + $0x28] sm:$0xf] %vm1563, %v1549
          %1575 = vst.msk [vmem:[#allocation4 + $0x2c] sm:$0xf] %vm1563, %v1550
          %v1584 = vunpack.c.l.b16 %v1511
          %v1585 = vunpack.c.h.b16 %v1511
          %v1586 = vunpack.c.l.b16 %v1512
          %v1587 = vunpack.c.l.b16 %v1513
          %v1588 = vunpack.c.h.b16 %v1513
          %v1589 = vunpack.c.l.b16 %v1514
          %v1590 = vunpack.c.l.b16 %v1515
          %v1591 = vunpack.c.h.b16 %v1515
          %v1592 = vunpack.c.l.b16 %v1516
          %v1593 = vunpack.c.l.b16 %v1517
          %v1594 = vunpack.c.h.b16 %v1517
          %v1595 = vunpack.c.l.b16 %v1518
          %v1596 = vpack.c.b16 %v1584, %v1584
          %v1597 = vpack.c.b16 %v1585, %v1585
          %v1598 = vpack.c.b16 %v1586, %v1586
          %v1599 = vpack.c.b16 %v1587, %v1587
          %v1600 = vpack.c.b16 %v1588, %v1588
          %v1601 = vpack.c.b16 %v1589, %v1589
          %v1602 = vpack.c.b16 %v1590, %v1590
          %v1603 = vpack.c.b16 %v1591, %v1591
          %v1604 = vpack.c.b16 %v1592, %v1592
          %v1605 = vpack.c.b16 %v1593, %v1593
          %v1606 = vpack.c.b16 %v1594, %v1594
          %v1607 = vpack.c.b16 %v1595, %v1595
          %1620 = vst.msk [vmem:[#allocation5] sm:$0xf] %vm1563, %v1596
          %1621 = vst.msk [vmem:[#allocation5 + $0x4] sm:$0xf] %vm1563, %v1597
          %1622 = vst.msk [vmem:[#allocation5 + $0x8] sm:$0xf] %vm1563, %v1598
          %1623 = vst.msk [vmem:[#allocation5 + $0xc] sm:$0xf] %vm1563, %v1599
          %1624 = vst.msk [vmem:[#allocation5 + $0x10] sm:$0xf] %vm1563, %v1600
          %1625 = vst.msk [vmem:[#allocation5 + $0x14] sm:$0xf] %vm1563, %v1601
          %1626 = vst.msk [vmem:[#allocation5 + $0x18] sm:$0xf] %vm1563, %v1602
          %1627 = vst.msk [vmem:[#allocation5 + $0x1c] sm:$0xf] %vm1563, %v1603
          %1628 = vst.msk [vmem:[#allocation5 + $0x20] sm:$0xf] %vm1563, %v1604
          %1629 = vst.msk [vmem:[#allocation5 + $0x24] sm:$0xf] %vm1563, %v1605
          %1630 = vst.msk [vmem:[#allocation5 + $0x28] sm:$0xf] %vm1563, %v1606
          %1631 = vst.msk [vmem:[#allocation5 + $0x2c] sm:$0xf] %vm1563, %v1607
        $region168: #{tpu_custom_call.1} parent=119 // pred_fallthru
          _
        %v1632 = vld [vmem:[%s865] sm:$0xff]
        %v1633 = vld [vmem:[%s865 + $0x8] sm:$0xff]
        %v1634 = vld [vmem:[#allocation2] sm:$0xff]
        %v1635 = vld [vmem:[#allocation2 + $0x8] sm:$0xff]
        %v1636 = vld [vmem:[#allocation2 + $0x10] sm:$0xff]
        %v1637 = vld [vmem:[#allocation2 + $0x18] sm:$0xff]
        %v1638 = vld [vmem:[#allocation2 + $0x20] sm:$0xff]
        %v1639 = vld [vmem:[#allocation2 + $0x28] sm:$0xff]
        %v1640 = vld [vmem:[#allocation2 + $0x30] sm:$0xff]
        %v1641 = vld [vmem:[#allocation2 + $0x38] sm:$0xff]
        %v1642 = vld [vmem:[#allocation3] sm:$0xff]
        %v1643 = vld [vmem:[#allocation3 + $0x8] sm:$0xff]
        %v1644 = vld [vmem:[#allocation3 + $0x10] sm:$0xff]
        %v1645 = vld [vmem:[#allocation3 + $0x18] sm:$0xff]
        %v1646 = vld [vmem:[#allocation3 + $0x20] sm:$0xff]
        %v1647 = vld [vmem:[#allocation3 + $0x28] sm:$0xff]
        %v1648 = vld [vmem:[#allocation3 + $0x30] sm:$0xff]
        %v1649 = vld [vmem:[#allocation3 + $0x38] sm:$0xff]
        %v1650 = vld [vmem:[#allocation12] sm:$0xf]
        %v1651 = vld [vmem:[#allocation12 + $0x4] sm:$0xf]
        %v1652 = vld [vmem:[#allocation12 + $0x8] sm:$0xf]
        %v1653 = vld [vmem:[#allocation12 + $0xc] sm:$0xf]
        %v1654 = vld [vmem:[#allocation12 + $0x10] sm:$0xf]
        %v1655 = vld [vmem:[#allocation12 + $0x14] sm:$0xf]
        %v1656 = vld [vmem:[#allocation12 + $0x18] sm:$0xf]
        %v1657 = vld [vmem:[#allocation12 + $0x1c] sm:$0xf]
        %v1658 = vld [vmem:[#allocation12 + $0x20] sm:$0xf]
        %v1659 = vld [vmem:[#allocation12 + $0x24] sm:$0xf]
        %v1660 = vld [vmem:[#allocation12 + $0x28] sm:$0xf]
        %v1661 = vld [vmem:[#allocation12 + $0x2c] sm:$0xf]
        %v1662 = vld [vmem:[#allocation12 + $0x30] sm:$0xf]
        %v1663 = vld [vmem:[#allocation12 + $0x34] sm:$0xf]
        %v1664 = vld [vmem:[#allocation12 + $0x38] sm:$0xf]
        %v1665 = vld [vmem:[#allocation12 + $0x3c] sm:$0xf]
        %v1666 = vld [vmem:[%s4] sm:$0x1]
        %v1667 = vld [vmem:[#allocation15] sm:$0xf]
        %v1668 = vld [vmem:[#allocation15 + $0x4] sm:$0xf]
        %v1669 = vld [vmem:[#allocation15 + $0x8] sm:$0xf]
        %v1670 = vld [vmem:[#allocation15 + $0xc] sm:$0xf]
        %v1671 = vld [vmem:[#allocation15 + $0x10] sm:$0xf]
        %v1672 = vld [vmem:[#allocation15 + $0x14] sm:$0xf]
        %v1673 = vld [vmem:[#allocation15 + $0x18] sm:$0xf]
        %v1674 = vld [vmem:[#allocation15 + $0x1c] sm:$0xf]
        %v1675 = vld [vmem:[#allocation15 + $0x20] sm:$0xf]
        %v1676 = vld [vmem:[#allocation15 + $0x24] sm:$0xf]
        %v1677 = vld [vmem:[#allocation15 + $0x28] sm:$0xf]
        %v1678 = vld [vmem:[#allocation15 + $0x2c] sm:$0xf]
        %v1679 = vld [vmem:[#allocation15 + $0x30] sm:$0xf]
        %v1680 = vld [vmem:[#allocation15 + $0x34] sm:$0xf]
        %v1681 = vld [vmem:[#allocation15 + $0x38] sm:$0xf]
        %v1682 = vld [vmem:[#allocation15 + $0x3c] sm:$0xf]
        %v1683 = vld [vmem:[%s8] sm:$0x1]
        %v1684 = vpack.c.bf16 %v1633, %v1632
        %v1686 = vlaneseq
        %v1687 = vshrl.u32 %v1686, 7
        %v1688 = vsub.s32 0, %v1687
        %v1689 = vrot.slane %v1666, %v1688
        %v1707 = vunpack.c.l.b16 %v1650
        %v1708 = vunpack.c.l.b16 %v1651
        %v1709 = vunpack.c.l.b16 %v1652
        %v1710 = vunpack.c.l.b16 %v1653
        %v1711 = vunpack.c.l.b16 %v1654
        %v1712 = vunpack.c.l.b16 %v1655
        %v1713 = vunpack.c.l.b16 %v1656
        %v1714 = vunpack.c.l.b16 %v1657
        %v1715 = vunpack.c.l.b16 %v1658
        %v1716 = vunpack.c.l.b16 %v1659
        %v1717 = vunpack.c.l.b16 %v1660
        %v1718 = vunpack.c.l.b16 %v1661
        %v1719 = vunpack.c.l.b16 %v1662
        %v1720 = vunpack.c.l.b16 %v1663
        %v1721 = vunpack.c.l.b16 %v1664
        %v1722 = vunpack.c.l.b16 %v1665
        %v1723 = vpack.c.b16 %v1708, %v1707
        %v1724 = vpack.c.b16 %v1710, %v1709
        %v1725 = vpack.c.b16 %v1712, %v1711
        %v1726 = vpack.c.b16 %v1714, %v1713
        %v1727 = vpack.c.b16 %v1716, %v1715
        %v1728 = vpack.c.b16 %v1718, %v1717
        %v1729 = vpack.c.b16 %v1720, %v1719
        %v1730 = vpack.c.b16 %v1722, %v1721
        %1739 = vmatprep.subr.bf16.mxu0 0
        %1740 = vmatpush1.bf16.msra.mxu0 %v1723
        %1741 = vmatprep.subr.bf16.mxu0 0
        %1742 = vmatpush1.bf16.msra.mxu0 %v1724
        %1743 = vmatprep.subr.bf16.mxu0 0
        %1744 = vmatpush1.bf16.msra.mxu0 %v1725
        %1745 = vmatprep.subr.bf16.mxu0 0
        %1746 = vmatpush1.bf16.msra.mxu0 %v1726
        %1747 = vmatprep.subr.bf16.mxu0 0
        %1748 = vmatpush1.bf16.msra.mxu0 %v1727
        %1749 = vmatprep.subr.bf16.mxu0 0
        %1750 = vmatpush1.bf16.msra.mxu0 %v1728
        %1751 = vmatprep.subr.bf16.mxu0 0
        %1752 = vmatpush1.bf16.msra.mxu0 %v1729
        %1753 = vmatprep.subr.bf16.mxu0 0
        %1754 = vmatpush1.bf16.msra.mxu0 %v1730
        %1755 = vmatprep.subr.bf16.mxu0 0
        %1756 = vmatpush1.bf16.msra.mxu0 0
        %1757 = vmatprep.subr.bf16.mxu0 0
        %1758 = vmatpush1.bf16.msra.mxu0 0
        %1759 = vmatprep.subr.bf16.mxu0 0
        %1760 = vmatpush1.bf16.msra.mxu0 0
        %1761 = vmatprep.subr.bf16.mxu0 0
        %1762 = vmatpush1.bf16.msra.mxu0 0
        %1763 = vmatprep.subr.bf16.mxu0 0
        %1764 = vmatpush1.bf16.msra.mxu0 0
        %1765 = vmatprep.subr.bf16.mxu0 0
        %1766 = vmatpush1.bf16.msra.mxu0 0
        %1767 = vmatprep.subr.bf16.mxu0 0
        %1768 = vmatpush1.bf16.msra.mxu0 0
        %1769 = vmatprep.subr.bf16.mxu0 0
        %1770 = vmatpush1.bf16.msra.mxu0 0
        %1771 = vmatprep.mubr.bf16.mxu0 0
        %1772 = vmatmul.mubr.bf16.gmra.mrb[0].mxu0 %v1684
        %v1773 = vpop.f32.mrb[0].mxu0
        %v1774 = vadd.f32 %v1689, %v1773
        %v1775 = vpop.f32.mrb[0].mxu0
        %v1776 = vpop.f32.mrb[0].mxu0
        %v1777 = vadd.f32 %v1689, %v1776
        %v1778 = vpop.f32.mrb[0].mxu0
        %1779 = vdwg.mxu0
        %1782 = vrot.lane.b32.xlu0 %v1774, 96
        %v1783 = vpop.permute.xlu0 %1782
        %1784 = vrot.lane.b32.xlu0 %v1777, 96
        %v1785 = vpop.permute.xlu0 %1784
        %1788 = vrot.lane.b32.xlu0 %v1774, 64
        %v1789 = vpop.permute.xlu0 %1788
        %1790 = vrot.lane.b32.xlu0 %v1777, 64
        %v1791 = vpop.permute.xlu0 %1790
        %1794 = vrot.lane.b32.xlu0 %v1774, 32
        %v1795 = vpop.permute.xlu0 %1794
        %1796 = vrot.lane.b32.xlu0 %v1777, 32
        %v1797 = vpop.permute.xlu0 %1796
        %v1800 = vpack.c.bf16 %v1777, %v1774
        %v1801 = vpack.c.bf16 %v1785, %v1783
        %v1802 = vpack.c.bf16 %v1791, %v1789
        %v1803 = vpack.c.bf16 %v1797, %v1795
        %vm1804 = vcmask 261120
        %v1806 = vsel %vm1804, %v1800, 0
        %v1809 = vsel %vm1804, %v1634, 0
        %v1812 = vsel %vm1804, %v1635, 0
        %1814 = vmatprep.subr.bf16.mxu0 0
        %1815 = vmatpush1.bf16.xpose.msra.mxu0 %v1809
        %1816 = vmatprep.subr.bf16.mxu0 0
        %1817 = vmatpush1.bf16.xpose.msra.mxu0 %v1812
        %1818 = vmatprep.subr.bf16.mxu0 0
        %1819 = vmatpush1.bf16.xpose.msra.mxu0 0
        %1820 = vmatprep.subr.bf16.mxu0 0
        %1821 = vmatpush1.bf16.xpose.msra.mxu0 0
        %1822 = vmatprep.subr.bf16.mxu0 0
        %1823 = vmatpush1.bf16.xpose.msra.mxu0 0
        %1824 = vmatprep.subr.bf16.mxu0 0
        %1825 = vmatpush1.bf16.xpose.msra.mxu0 0
        %1826 = vmatprep.subr.bf16.mxu0 0
        %1827 = vmatpush1.bf16.xpose.msra.mxu0 0
        %1828 = vmatprep.subr.bf16.mxu0 0
        %1829 = vmatpush1.bf16.xpose.msra.mxu0 0
        %1830 = vmatprep.subr.bf16.mxu0 0
        %1831 = vmatpush1.bf16.xpose.msra.mxu0 0
        %1832 = vmatprep.subr.bf16.mxu0 0
        %1833 = vmatpush1.bf16.xpose.msra.mxu0 0
        %1834 = vmatprep.subr.bf16.mxu0 0
        %1835 = vmatpush1.bf16.xpose.msra.mxu0 0
        %1836 = vmatprep.subr.bf16.mxu0 0
        %1837 = vmatpush1.bf16.xpose.msra.mxu0 0
        %1838 = vmatprep.subr.bf16.mxu0 0
        %1839 = vmatpush1.bf16.xpose.msra.mxu0 0
        %1840 = vmatprep.subr.bf16.mxu0 0
        %1841 = vmatpush1.bf16.xpose.msra.mxu0 0
        %1842 = vmatprep.subr.bf16.mxu0 0
        %1843 = vmatpush1.bf16.xpose.msra.mxu0 0
        %1844 = vmatprep.subr.bf16.mxu0 0
        %1845 = vmatpush1.bf16.xpose.msra.mxu0 0
        %1846 = vmatprep.mubr.bf16.mxu0 0
        %1847 = vmatmul.mubr.bf16.gmra.mrb[0].mxu0 %v1806
        %v1848 = vpop.f32.mrb[0].mxu0
        %v1849 = vadd.f32 0.0, %v1848
        %v1850 = vpop.f32.mrb[0].mxu0
        %v1851 = vpop.f32.mrb[0].mxu0
        %v1852 = vadd.f32 0.0, %v1851
        %v1853 = vpop.f32.mrb[0].mxu0
        %1854 = vdwg.mxu0
        %v1856 = vsel %vm1804, %v1801, 0
        %v1859 = vsel %vm1804, %v1636, 0
        %v1862 = vsel %vm1804, %v1637, 0
        %1864 = vmatprep.subr.bf16.mxu0 0
        %1865 = vmatpush1.bf16.xpose.msra.mxu0 %v1859
        %1866 = vmatprep.subr.bf16.mxu0 0
        %1867 = vmatpush1.bf16.xpose.msra.mxu0 %v1862
        %1868 = vmatprep.subr.bf16.mxu0 0
        %1869 = vmatpush1.bf16.xpose.msra.mxu0 0
        %1870 = vmatprep.subr.bf16.mxu0 0
        %1871 = vmatpush1.bf16.xpose.msra.mxu0 0
        %1872 = vmatprep.subr.bf16.mxu0 0
        %1873 = vmatpush1.bf16.xpose.msra.mxu0 0
        %1874 = vmatprep.subr.bf16.mxu0 0
        %1875 = vmatpush1.bf16.xpose.msra.mxu0 0
        %1876 = vmatprep.subr.bf16.mxu0 0
        %1877 = vmatpush1.bf16.xpose.msra.mxu0 0
        %1878 = vmatprep.subr.bf16.mxu0 0
        %1879 = vmatpush1.bf16.xpose.msra.mxu0 0
        %1880 = vmatprep.subr.bf16.mxu0 0
        %1881 = vmatpush1.bf16.xpose.msra.mxu0 0
        %1882 = vmatprep.subr.bf16.mxu0 0
        %1883 = vmatpush1.bf16.xpose.msra.mxu0 0
        %1884 = vmatprep.subr.bf16.mxu0 0
        %1885 = vmatpush1.bf16.xpose.msra.mxu0 0
        %1886 = vmatprep.subr.bf16.mxu0 0
        %1887 = vmatpush1.bf16.xpose.msra.mxu0 0
        %1888 = vmatprep.subr.bf16.mxu0 0
        %1889 = vmatpush1.bf16.xpose.msra.mxu0 0
        %1890 = vmatprep.subr.bf16.mxu0 0
        %1891 = vmatpush1.bf16.xpose.msra.mxu0 0
        %1892 = vmatprep.subr.bf16.mxu0 0
        %1893 = vmatpush1.bf16.xpose.msra.mxu0 0
        %1894 = vmatprep.subr.bf16.mxu0 0
        %1895 = vmatpush1.bf16.xpose.msra.mxu0 0
        %1896 = vmatprep.mubr.bf16.mxu0 0
        %1897 = vmatmul.mubr.bf16.gmra.mrb[0].mxu0 %v1856
        %v1898 = vpop.f32.mrb[0].mxu0
        %v1899 = vadd.f32 0.0, %v1898
        %v1900 = vpop.f32.mrb[0].mxu0
        %v1901 = vpop.f32.mrb[0].mxu0
        %v1902 = vadd.f32 0.0, %v1901
        %v1903 = vpop.f32.mrb[0].mxu0
        %1904 = vdwg.mxu0
        %v1906 = vsel %vm1804, %v1802, 0
        %v1909 = vsel %vm1804, %v1638, 0
        %v1912 = vsel %vm1804, %v1639, 0
        %1914 = vmatprep.subr.bf16.mxu0 0
        %1915 = vmatpush1.bf16.xpose.msra.mxu0 %v1909
        %1916 = vmatprep.subr.bf16.mxu0 0
        %1917 = vmatpush1.bf16.xpose.msra.mxu0 %v1912
        %1918 = vmatprep.subr.bf16.mxu0 0
        %1919 = vmatpush1.bf16.xpose.msra.mxu0 0
        %1920 = vmatprep.subr.bf16.mxu0 0
        %1921 = vmatpush1.bf16.xpose.msra.mxu0 0
        %1922 = vmatprep.subr.bf16.mxu0 0
        %1923 = vmatpush1.bf16.xpose.msra.mxu0 0
        %1924 = vmatprep.subr.bf16.mxu0 0
        %1925 = vmatpush1.bf16.xpose.msra.mxu0 0
        %1926 = vmatprep.subr.bf16.mxu0 0
        %1927 = vmatpush1.bf16.xpose.msra.mxu0 0
        %1928 = vmatprep.subr.bf16.mxu0 0
        %1929 = vmatpush1.bf16.xpose.msra.mxu0 0
        %1930 = vmatprep.subr.bf16.mxu0 0
        %1931 = vmatpush1.bf16.xpose.msra.mxu0 0
        %1932 = vmatprep.subr.bf16.mxu0 0
        %1933 = vmatpush1.bf16.xpose.msra.mxu0 0
        %1934 = vmatprep.subr.bf16.mxu0 0
        %1935 = vmatpush1.bf16.xpose.msra.mxu0 0
        %1936 = vmatprep.subr.bf16.mxu0 0
        %1937 = vmatpush1.bf16.xpose.msra.mxu0 0
        %1938 = vmatprep.subr.bf16.mxu0 0
        %1939 = vmatpush1.bf16.xpose.msra.mxu0 0
        %1940 = vmatprep.subr.bf16.mxu0 0
        %1941 = vmatpush1.bf16.xpose.msra.mxu0 0
        %1942 = vmatprep.subr.bf16.mxu0 0
        %1943 = vmatpush1.bf16.xpose.msra.mxu0 0
        %1944 = vmatprep.subr.bf16.mxu0 0
        %1945 = vmatpush1.bf16.xpose.msra.mxu0 0
        %1946 = vmatprep.mubr.bf16.mxu0 0
        %1947 = vmatmul.mubr.bf16.gmra.mrb[0].mxu0 %v1906
        %v1948 = vpop.f32.mrb[0].mxu0
        %v1949 = vadd.f32 0.0, %v1948
        %v1950 = vpop.f32.mrb[0].mxu0
        %v1951 = vpop.f32.mrb[0].mxu0
        %v1952 = vadd.f32 0.0, %v1951
        %v1953 = vpop.f32.mrb[0].mxu0
        %1954 = vdwg.mxu0
        %v1956 = vsel %vm1804, %v1803, 0
        %v1959 = vsel %vm1804, %v1640, 0
        %v1962 = vsel %vm1804, %v1641, 0
        %1964 = vmatprep.subr.bf16.mxu0 0
        %1965 = vmatpush1.bf16.xpose.msra.mxu0 %v1959
        %1966 = vmatprep.subr.bf16.mxu0 0
        %1967 = vmatpush1.bf16.xpose.msra.mxu0 %v1962
        %1968 = vmatprep.subr.bf16.mxu0 0
        %1969 = vmatpush1.bf16.xpose.msra.mxu0 0
        %1970 = vmatprep.subr.bf16.mxu0 0
        %1971 = vmatpush1.bf16.xpose.msra.mxu0 0
        %1972 = vmatprep.subr.bf16.mxu0 0
        %1973 = vmatpush1.bf16.xpose.msra.mxu0 0
        %1974 = vmatprep.subr.bf16.mxu0 0
        %1975 = vmatpush1.bf16.xpose.msra.mxu0 0
        %1976 = vmatprep.subr.bf16.mxu0 0
        %1977 = vmatpush1.bf16.xpose.msra.mxu0 0
        %1978 = vmatprep.subr.bf16.mxu0 0
        %1979 = vmatpush1.bf16.xpose.msra.mxu0 0
        %1980 = vmatprep.subr.bf16.mxu0 0
        %1981 = vmatpush1.bf16.xpose.msra.mxu0 0
        %1982 = vmatprep.subr.bf16.mxu0 0
        %1983 = vmatpush1.bf16.xpose.msra.mxu0 0
        %1984 = vmatprep.subr.bf16.mxu0 0
        %1985 = vmatpush1.bf16.xpose.msra.mxu0 0
        %1986 = vmatprep.subr.bf16.mxu0 0
        %1987 = vmatpush1.bf16.xpose.msra.mxu0 0
        %1988 = vmatprep.subr.bf16.mxu0 0
        %1989 = vmatpush1.bf16.xpose.msra.mxu0 0
        %1990 = vmatprep.subr.bf16.mxu0 0
        %1991 = vmatpush1.bf16.xpose.msra.mxu0 0
        %1992 = vmatprep.subr.bf16.mxu0 0
        %1993 = vmatpush1.bf16.xpose.msra.mxu0 0
        %1994 = vmatprep.subr.bf16.mxu0 0
        %1995 = vmatpush1.bf16.xpose.msra.mxu0 0
        %1996 = vmatprep.mubr.bf16.mxu0 0
        %1997 = vmatmul.mubr.bf16.gmra.mrb[0].mxu0 %v1956
        %v1998 = vpop.f32.mrb[0].mxu0
        %v1999 = vadd.f32 0.0, %v1998
        %v2000 = vpop.f32.mrb[0].mxu0
        %v2001 = vpop.f32.mrb[0].mxu0
        %v2002 = vadd.f32 0.0, %v2001
        %v2003 = vpop.f32.mrb[0].mxu0
        %2004 = vdwg.mxu0
        %v2005 = vsel %vm1804, %v1849, -inf
        %2006 = vmax.xlane.f32.xlu0 %v2005
        %v2007 = vpop.xlane.xlu0 %2006
        %v2008 = vsel %vm1804, %v1852, -inf
        %2009 = vmax.xlane.f32.xlu0 %v2008
        %v2010 = vpop.xlane.xlu0 %2009
        %v2011 = vsel %vm1804, %v1899, -inf
        %2012 = vmax.xlane.f32.xlu0 %v2011
        %v2013 = vpop.xlane.xlu0 %2012
        %v2014 = vsel %vm1804, %v1902, -inf
        %2015 = vmax.xlane.f32.xlu0 %v2014
        %v2016 = vpop.xlane.xlu0 %2015
        %v2017 = vsel %vm1804, %v1949, -inf
        %2018 = vmax.xlane.f32.xlu0 %v2017
        %v2019 = vpop.xlane.xlu0 %2018
        %v2020 = vsel %vm1804, %v1952, -inf
        %2021 = vmax.xlane.f32.xlu0 %v2020
        %v2022 = vpop.xlane.xlu0 %2021
        %v2023 = vsel %vm1804, %v1999, -inf
        %2024 = vmax.xlane.f32.xlu0 %v2023
        %v2025 = vpop.xlane.xlu0 %2024
        %v2026 = vsel %vm1804, %v2002, -inf
        %2027 = vmax.xlane.f32.xlu0 %v2026
        %v2028 = vpop.xlane.xlu0 %2027
        %v2029 = vsub.f32 %v1849, %v2007
        %v2030 = vsub.f32 %v1852, %v2010
        %v2031 = vsub.f32 %v1899, %v2013
        %v2032 = vsub.f32 %v1902, %v2016
        %v2033 = vsub.f32 %v1949, %v2019
        %v2034 = vsub.f32 %v1952, %v2022
        %v2035 = vsub.f32 %v1999, %v2025
        %v2036 = vsub.f32 %v2002, %v2028
        %v2037 = vmul.f32 %v2029, 1.442695
        %v2038 = vpow.pop %v2037
        %v2039 = vmul.f32 %v2030, 1.442695
        %v2040 = vpow.pop %v2039
        %v2041 = vmul.f32 %v2031, 1.442695
        %v2042 = vpow.pop %v2041
        %v2043 = vmul.f32 %v2032, 1.442695
        %v2044 = vpow.pop %v2043
        %v2045 = vmul.f32 %v2033, 1.442695
        %v2046 = vpow.pop %v2045
        %v2047 = vmul.f32 %v2034, 1.442695
        %v2048 = vpow.pop %v2047
        %v2049 = vmul.f32 %v2035, 1.442695
        %v2050 = vpow.pop %v2049
        %v2051 = vmul.f32 %v2036, 1.442695
        %v2052 = vpow.pop %v2051
        %v2053 = vsel %vm1804, %v2038, 0.0
        %2054 = vadd.xlane.f32.xlu0 %v2053
        %v2055 = vpop.xlane.xlu0 %2054
        %v2056 = vsel %vm1804, %v2040, 0.0
        %2057 = vadd.xlane.f32.xlu0 %v2056
        %v2058 = vpop.xlane.xlu0 %2057
        %v2059 = vsel %vm1804, %v2042, 0.0
        %2060 = vadd.xlane.f32.xlu0 %v2059
        %v2061 = vpop.xlane.xlu0 %2060
        %v2062 = vsel %vm1804, %v2044, 0.0
        %2063 = vadd.xlane.f32.xlu0 %v2062
        %v2064 = vpop.xlane.xlu0 %2063
        %v2065 = vsel %vm1804, %v2046, 0.0
        %2066 = vadd.xlane.f32.xlu0 %v2065
        %v2067 = vpop.xlane.xlu0 %2066
        %v2068 = vsel %vm1804, %v2048, 0.0
        %2069 = vadd.xlane.f32.xlu0 %v2068
        %v2070 = vpop.xlane.xlu0 %2069
        %v2071 = vsel %vm1804, %v2050, 0.0
        %2072 = vadd.xlane.f32.xlu0 %v2071
        %v2073 = vpop.xlane.xlu0 %2072
        %v2074 = vsel %vm1804, %v2052, 0.0
        %2075 = vadd.xlane.f32.xlu0 %v2074
        %v2076 = vpop.xlane.xlu0 %2075
        %v2077 = vrcp.pop %v2055
        %v2078 = vrcp.pop %v2058
        %v2079 = vrcp.pop %v2061
        %v2080 = vrcp.pop %v2064
        %v2081 = vrcp.pop %v2067
        %v2082 = vrcp.pop %v2070
        %v2083 = vrcp.pop %v2073
        %v2084 = vrcp.pop %v2076
        %v2085 = vmul.f32 %v2038, %v2077
        %v2086 = vmul.f32 %v2040, %v2078
        %v2087 = vmul.f32 %v2042, %v2079
        %v2088 = vmul.f32 %v2044, %v2080
        %v2089 = vmul.f32 %v2046, %v2081
        %v2090 = vmul.f32 %v2048, %v2082
        %v2091 = vmul.f32 %v2050, %v2083
        %v2092 = vmul.f32 %v2052, %v2084
        %v2093 = vpack.c.bf16 %v2086, %v2085
        %v2094 = vpack.c.bf16 %v2088, %v2087
        %v2095 = vpack.c.bf16 %v2090, %v2089
        %v2096 = vpack.c.bf16 %v2092, %v2091
        %v2098 = vsel %vm1804, %v2093, 0
        %2100 = vmatprep.subr.bf16.mxu0 0
        %2101 = vmatpush1.bf16.msra.mxu0 %v1642
        %2102 = vmatprep.subr.bf16.mxu0 0
        %2103 = vmatpush1.bf16.msra.mxu0 %v1643
        %2104 = vmatprep.subr.bf16.mxu0 0
        %2105 = vmatpush1.bf16.msra.mxu0 0
        %2106 = vmatprep.subr.bf16.mxu0 0
        %2107 = vmatpush1.bf16.msra.mxu0 0
        %2108 = vmatprep.subr.bf16.mxu0 0
        %2109 = vmatpush1.bf16.msra.mxu0 0
        %2110 = vmatprep.subr.bf16.mxu0 0
        %2111 = vmatpush1.bf16.msra.mxu0 0
        %2112 = vmatprep.subr.bf16.mxu0 0
        %2113 = vmatpush1.bf16.msra.mxu0 0
        %2114 = vmatprep.subr.bf16.mxu0 0
        %2115 = vmatpush1.bf16.msra.mxu0 0
        %2116 = vmatprep.subr.bf16.mxu0 0
        %2117 = vmatpush1.bf16.msra.mxu0 0
        %2118 = vmatprep.subr.bf16.mxu0 0
        %2119 = vmatpush1.bf16.msra.mxu0 0
        %2120 = vmatprep.subr.bf16.mxu0 0
        %2121 = vmatpush1.bf16.msra.mxu0 0
        %2122 = vmatprep.subr.bf16.mxu0 0
        %2123 = vmatpush1.bf16.msra.mxu0 0
        %2124 = vmatprep.subr.bf16.mxu0 0
        %2125 = vmatpush1.bf16.msra.mxu0 0
        %2126 = vmatprep.subr.bf16.mxu0 0
        %2127 = vmatpush1.bf16.msra.mxu0 0
        %2128 = vmatprep.subr.bf16.mxu0 0
        %2129 = vmatpush1.bf16.msra.mxu0 0
        %2130 = vmatprep.subr.bf16.mxu0 0
        %2131 = vmatpush1.bf16.msra.mxu0 0
        %2132 = vmatprep.mubr.bf16.mxu0 0
        %2133 = vmatmul.mubr.bf16.gmra.mrb[0].mxu0 %v2098
        %v2134 = vpop.f32.mrb[0].mxu0
        %v2135 = vadd.f32 0.0, %v2134
        %v2136 = vpop.f32.mrb[0].mxu0
        %v2137 = vpop.f32.mrb[0].mxu0
        %v2138 = vadd.f32 0.0, %v2137
        %v2139 = vpop.f32.mrb[0].mxu0
        %2140 = vdwg.mxu0
        %v2142 = vsel %vm1804, %v2094, 0
        %2144 = vmatprep.subr.bf16.mxu0 0
        %2145 = vmatpush1.bf16.msra.mxu0 %v1644
        %2146 = vmatprep.subr.bf16.mxu0 0
        %2147 = vmatpush1.bf16.msra.mxu0 %v1645
        %2148 = vmatprep.subr.bf16.mxu0 0
        %2149 = vmatpush1.bf16.msra.mxu0 0
        %2150 = vmatprep.subr.bf16.mxu0 0
        %2151 = vmatpush1.bf16.msra.mxu0 0
        %2152 = vmatprep.subr.bf16.mxu0 0
        %2153 = vmatpush1.bf16.msra.mxu0 0
        %2154 = vmatprep.subr.bf16.mxu0 0
        %2155 = vmatpush1.bf16.msra.mxu0 0
        %2156 = vmatprep.subr.bf16.mxu0 0
        %2157 = vmatpush1.bf16.msra.mxu0 0
        %2158 = vmatprep.subr.bf16.mxu0 0
        %2159 = vmatpush1.bf16.msra.mxu0 0
        %2160 = vmatprep.subr.bf16.mxu0 0
        %2161 = vmatpush1.bf16.msra.mxu0 0
        %2162 = vmatprep.subr.bf16.mxu0 0
        %2163 = vmatpush1.bf16.msra.mxu0 0
        %2164 = vmatprep.subr.bf16.mxu0 0
        %2165 = vmatpush1.bf16.msra.mxu0 0
        %2166 = vmatprep.subr.bf16.mxu0 0
        %2167 = vmatpush1.bf16.msra.mxu0 0
        %2168 = vmatprep.subr.bf16.mxu0 0
        %2169 = vmatpush1.bf16.msra.mxu0 0
        %2170 = vmatprep.subr.bf16.mxu0 0
        %2171 = vmatpush1.bf16.msra.mxu0 0
        %2172 = vmatprep.subr.bf16.mxu0 0
        %2173 = vmatpush1.bf16.msra.mxu0 0
        %2174 = vmatprep.subr.bf16.mxu0 0
        %2175 = vmatpush1.bf16.msra.mxu0 0
        %2176 = vmatprep.mubr.bf16.mxu0 0
        %2177 = vmatmul.mubr.bf16.gmra.mrb[0].mxu0 %v2142
        %v2178 = vpop.f32.mrb[0].mxu0
        %v2179 = vadd.f32 0.0, %v2178
        %v2180 = vpop.f32.mrb[0].mxu0
        %v2181 = vpop.f32.mrb[0].mxu0
        %v2182 = vadd.f32 0.0, %v2181
        %v2183 = vpop.f32.mrb[0].mxu0
        %2184 = vdwg.mxu0
        %v2186 = vsel %vm1804, %v2095, 0
        %2188 = vmatprep.subr.bf16.mxu0 0
        %2189 = vmatpush1.bf16.msra.mxu0 %v1646
        %2190 = vmatprep.subr.bf16.mxu0 0
        %2191 = vmatpush1.bf16.msra.mxu0 %v1647
        %2192 = vmatprep.subr.bf16.mxu0 0
        %2193 = vmatpush1.bf16.msra.mxu0 0
        %2194 = vmatprep.subr.bf16.mxu0 0
        %2195 = vmatpush1.bf16.msra.mxu0 0
        %2196 = vmatprep.subr.bf16.mxu0 0
        %2197 = vmatpush1.bf16.msra.mxu0 0
        %2198 = vmatprep.subr.bf16.mxu0 0
        %2199 = vmatpush1.bf16.msra.mxu0 0
        %2200 = vmatprep.subr.bf16.mxu0 0
        %2201 = vmatpush1.bf16.msra.mxu0 0
        %2202 = vmatprep.subr.bf16.mxu0 0
        %2203 = vmatpush1.bf16.msra.mxu0 0
        %2204 = vmatprep.subr.bf16.mxu0 0
        %2205 = vmatpush1.bf16.msra.mxu0 0
        %2206 = vmatprep.subr.bf16.mxu0 0
        %2207 = vmatpush1.bf16.msra.mxu0 0
        %2208 = vmatprep.subr.bf16.mxu0 0
        %2209 = vmatpush1.bf16.msra.mxu0 0
        %2210 = vmatprep.subr.bf16.mxu0 0
        %2211 = vmatpush1.bf16.msra.mxu0 0
        %2212 = vmatprep.subr.bf16.mxu0 0
        %2213 = vmatpush1.bf16.msra.mxu0 0
        %2214 = vmatprep.subr.bf16.mxu0 0
        %2215 = vmatpush1.bf16.msra.mxu0 0
        %2216 = vmatprep.subr.bf16.mxu0 0
        %2217 = vmatpush1.bf16.msra.mxu0 0
        %2218 = vmatprep.subr.bf16.mxu0 0
        %2219 = vmatpush1.bf16.msra.mxu0 0
        %2220 = vmatprep.mubr.bf16.mxu0 0
        %2221 = vmatmul.mubr.bf16.gmra.mrb[0].mxu0 %v2186
        %v2222 = vpop.f32.mrb[0].mxu0
        %v2223 = vadd.f32 0.0, %v2222
        %v2224 = vpop.f32.mrb[0].mxu0
        %v2225 = vpop.f32.mrb[0].mxu0
        %v2226 = vadd.f32 0.0, %v2225
        %v2227 = vpop.f32.mrb[0].mxu0
        %2228 = vdwg.mxu0
        %v2230 = vsel %vm1804, %v2096, 0
        %2232 = vmatprep.subr.bf16.mxu0 0
        %2233 = vmatpush1.bf16.msra.mxu0 %v1648
        %2234 = vmatprep.subr.bf16.mxu0 0
        %2235 = vmatpush1.bf16.msra.mxu0 %v1649
        %2236 = vmatprep.subr.bf16.mxu0 0
        %2237 = vmatpush1.bf16.msra.mxu0 0
        %2238 = vmatprep.subr.bf16.mxu0 0
        %2239 = vmatpush1.bf16.msra.mxu0 0
        %2240 = vmatprep.subr.bf16.mxu0 0
        %2241 = vmatpush1.bf16.msra.mxu0 0
        %2242 = vmatprep.subr.bf16.mxu0 0
        %2243 = vmatpush1.bf16.msra.mxu0 0
        %2244 = vmatprep.subr.bf16.mxu0 0
        %2245 = vmatpush1.bf16.msra.mxu0 0
        %2246 = vmatprep.subr.bf16.mxu0 0
        %2247 = vmatpush1.bf16.msra.mxu0 0
        %2248 = vmatprep.subr.bf16.mxu0 0
        %2249 = vmatpush1.bf16.msra.mxu0 0
        %2250 = vmatprep.subr.bf16.mxu0 0
        %2251 = vmatpush1.bf16.msra.mxu0 0
        %2252 = vmatprep.subr.bf16.mxu0 0
        %2253 = vmatpush1.bf16.msra.mxu0 0
        %2254 = vmatprep.subr.bf16.mxu0 0
        %2255 = vmatpush1.bf16.msra.mxu0 0
        %2256 = vmatprep.subr.bf16.mxu0 0
        %2257 = vmatpush1.bf16.msra.mxu0 0
        %2258 = vmatprep.subr.bf16.mxu0 0
        %2259 = vmatpush1.bf16.msra.mxu0 0
        %2260 = vmatprep.subr.bf16.mxu0 0
        %2261 = vmatpush1.bf16.msra.mxu0 0
        %2262 = vmatprep.subr.bf16.mxu0 0
        %2263 = vmatpush1.bf16.msra.mxu0 0
        %2264 = vmatprep.mubr.bf16.mxu0 0
        %2265 = vmatmul.mubr.bf16.gmra.mrb[0].mxu0 %v2230
        %v2266 = vpop.f32.mrb[0].mxu0
        %v2267 = vadd.f32 0.0, %v2266
        %v2268 = vpop.f32.mrb[0].mxu0
        %v2269 = vpop.f32.mrb[0].mxu0
        %v2270 = vadd.f32 0.0, %v2269
        %v2271 = vpop.f32.mrb[0].mxu0
        %2272 = vdwg.mxu0
        %v2273 = vpack.c.bf16 %v2138, %v2135
        %v2274 = vpack.c.bf16 %v2182, %v2179
        %v2275 = vpack.c.bf16 %v2226, %v2223
        %v2276 = vpack.c.bf16 %v2270, %v2267
        %v2281 = vunpack.c.l.b16 %v1667
        %v2282 = vunpack.c.l.b16 %v1668
        %v2283 = vunpack.c.l.b16 %v1669
        %v2284 = vunpack.c.l.b16 %v1670
        %v2285 = vpack.c.b16 %v2282, %v2281
        %v2286 = vpack.c.b16 %v2284, %v2283
        %v2290 = vsel %vm1804, %v2273, 0
        %2292 = vmatprep.subr.bf16.mxu0 0
        %2293 = vmatpush1.bf16.msra.mxu0 %v2285
        %2294 = vmatprep.subr.bf16.mxu0 0
        %2295 = vmatpush1.bf16.msra.mxu0 %v2286
        %2296 = vmatprep.subr.bf16.mxu0 0
        %2297 = vmatpush1.bf16.msra.mxu0 0
        %2298 = vmatprep.subr.bf16.mxu0 0
        %2299 = vmatpush1.bf16.msra.mxu0 0
        %2300 = vmatprep.subr.bf16.mxu0 0
        %2301 = vmatpush1.bf16.msra.mxu0 0
        %2302 = vmatprep.subr.bf16.mxu0 0
        %2303 = vmatpush1.bf16.msra.mxu0 0
        %2304 = vmatprep.subr.bf16.mxu0 0
        %2305 = vmatpush1.bf16.msra.mxu0 0
        %2306 = vmatprep.subr.bf16.mxu0 0
        %2307 = vmatpush1.bf16.msra.mxu0 0
        %2308 = vmatprep.subr.bf16.mxu0 0
        %2309 = vmatpush1.bf16.msra.mxu0 0
        %2310 = vmatprep.subr.bf16.mxu0 0
        %2311 = vmatpush1.bf16.msra.mxu0 0
        %2312 = vmatprep.subr.bf16.mxu0 0
        %2313 = vmatpush1.bf16.msra.mxu0 0
        %2314 = vmatprep.subr.bf16.mxu0 0
        %2315 = vmatpush1.bf16.msra.mxu0 0
        %2316 = vmatprep.subr.bf16.mxu0 0
        %2317 = vmatpush1.bf16.msra.mxu0 0
        %2318 = vmatprep.subr.bf16.mxu0 0
        %2319 = vmatpush1.bf16.msra.mxu0 0
        %2320 = vmatprep.subr.bf16.mxu0 0
        %2321 = vmatpush1.bf16.msra.mxu0 0
        %2322 = vmatprep.subr.bf16.mxu0 0
        %2323 = vmatpush1.bf16.msra.mxu0 0
        %2324 = vmatprep.mubr.bf16.mxu0 0
        %2325 = vmatmul.mubr.bf16.gmra.mrb[0].mxu0 %v2290
        %v2326 = vpop.f32.mrb[0].mxu0
        %v2327 = vadd.f32 0.0, %v2326
        %v2328 = vpop.f32.mrb[0].mxu0
        %v2329 = vpop.f32.mrb[0].mxu0
        %v2330 = vadd.f32 0.0, %v2329
        %v2331 = vpop.f32.mrb[0].mxu0
        %2332 = vdwg.mxu0
        %v2337 = vunpack.c.l.b16 %v1671
        %v2338 = vunpack.c.l.b16 %v1672
        %v2339 = vunpack.c.l.b16 %v1673
        %v2340 = vunpack.c.l.b16 %v1674
        %v2341 = vpack.c.b16 %v2338, %v2337
        %v2342 = vpack.c.b16 %v2340, %v2339
        %v2346 = vsel %vm1804, %v2274, 0
        %2348 = vmatprep.subr.bf16.mxu0 0
        %2349 = vmatpush1.bf16.msra.mxu0 %v2341
        %2350 = vmatprep.subr.bf16.mxu0 0
        %2351 = vmatpush1.bf16.msra.mxu0 %v2342
        %2352 = vmatprep.subr.bf16.mxu0 0
        %2353 = vmatpush1.bf16.msra.mxu0 0
        %2354 = vmatprep.subr.bf16.mxu0 0
        %2355 = vmatpush1.bf16.msra.mxu0 0
        %2356 = vmatprep.subr.bf16.mxu0 0
        %2357 = vmatpush1.bf16.msra.mxu0 0
        %2358 = vmatprep.subr.bf16.mxu0 0
        %2359 = vmatpush1.bf16.msra.mxu0 0
        %2360 = vmatprep.subr.bf16.mxu0 0
        %2361 = vmatpush1.bf16.msra.mxu0 0
        %2362 = vmatprep.subr.bf16.mxu0 0
        %2363 = vmatpush1.bf16.msra.mxu0 0
        %2364 = vmatprep.subr.bf16.mxu0 0
        %2365 = vmatpush1.bf16.msra.mxu0 0
        %2366 = vmatprep.subr.bf16.mxu0 0
        %2367 = vmatpush1.bf16.msra.mxu0 0
        %2368 = vmatprep.subr.bf16.mxu0 0
        %2369 = vmatpush1.bf16.msra.mxu0 0
        %2370 = vmatprep.subr.bf16.mxu0 0
        %2371 = vmatpush1.bf16.msra.mxu0 0
        %2372 = vmatprep.subr.bf16.mxu0 0
        %2373 = vmatpush1.bf16.msra.mxu0 0
        %2374 = vmatprep.subr.bf16.mxu0 0
        %2375 = vmatpush1.bf16.msra.mxu0 0
        %2376 = vmatprep.subr.bf16.mxu0 0
        %2377 = vmatpush1.bf16.msra.mxu0 0
        %2378 = vmatprep.subr.bf16.mxu0 0
        %2379 = vmatpush1.bf16.msra.mxu0 0
        %2380 = vmatprep.mubr.bf16.mxu0 0
        %2381 = vmatmul.mubr.bf16.gmra.mrb[0].mxu0 %v2346
        %v2382 = vpop.f32.mrb[0].mxu0
        %v2383 = vadd.f32 0.0, %v2382
        %v2384 = vpop.f32.mrb[0].mxu0
        %v2385 = vpop.f32.mrb[0].mxu0
        %v2386 = vadd.f32 0.0, %v2385
        %v2387 = vpop.f32.mrb[0].mxu0
        %2388 = vdwg.mxu0
        %v2393 = vunpack.c.l.b16 %v1675
        %v2394 = vunpack.c.l.b16 %v1676
        %v2395 = vunpack.c.l.b16 %v1677
        %v2396 = vunpack.c.l.b16 %v1678
        %v2397 = vpack.c.b16 %v2394, %v2393
        %v2398 = vpack.c.b16 %v2396, %v2395
        %v2402 = vsel %vm1804, %v2275, 0
        %2404 = vmatprep.subr.bf16.mxu0 0
        %2405 = vmatpush1.bf16.msra.mxu0 %v2397
        %2406 = vmatprep.subr.bf16.mxu0 0
        %2407 = vmatpush1.bf16.msra.mxu0 %v2398
        %2408 = vmatprep.subr.bf16.mxu0 0
        %2409 = vmatpush1.bf16.msra.mxu0 0
        %2410 = vmatprep.subr.bf16.mxu0 0
        %2411 = vmatpush1.bf16.msra.mxu0 0
        %2412 = vmatprep.subr.bf16.mxu0 0
        %2413 = vmatpush1.bf16.msra.mxu0 0
        %2414 = vmatprep.subr.bf16.mxu0 0
        %2415 = vmatpush1.bf16.msra.mxu0 0
        %2416 = vmatprep.subr.bf16.mxu0 0
        %2417 = vmatpush1.bf16.msra.mxu0 0
        %2418 = vmatprep.subr.bf16.mxu0 0
        %2419 = vmatpush1.bf16.msra.mxu0 0
        %2420 = vmatprep.subr.bf16.mxu0 0
        %2421 = vmatpush1.bf16.msra.mxu0 0
        %2422 = vmatprep.subr.bf16.mxu0 0
        %2423 = vmatpush1.bf16.msra.mxu0 0
        %2424 = vmatprep.subr.bf16.mxu0 0
        %2425 = vmatpush1.bf16.msra.mxu0 0
        %2426 = vmatprep.subr.bf16.mxu0 0
        %2427 = vmatpush1.bf16.msra.mxu0 0
        %2428 = vmatprep.subr.bf16.mxu0 0
        %2429 = vmatpush1.bf16.msra.mxu0 0
        %2430 = vmatprep.subr.bf16.mxu0 0
        %2431 = vmatpush1.bf16.msra.mxu0 0
        %2432 = vmatprep.subr.bf16.mxu0 0
        %2433 = vmatpush1.bf16.msra.mxu0 0
        %2434 = vmatprep.subr.bf16.mxu0 0
        %2435 = vmatpush1.bf16.msra.mxu0 0
        %2436 = vmatprep.mubr.bf16.mxu0 0
        %2437 = vmatmul.mubr.bf16.gmra.mrb[0].mxu0 %v2402
        %v2438 = vpop.f32.mrb[0].mxu0
        %v2439 = vadd.f32 0.0, %v2438
        %v2440 = vpop.f32.mrb[0].mxu0
        %v2441 = vpop.f32.mrb[0].mxu0
        %v2442 = vadd.f32 0.0, %v2441
        %v2443 = vpop.f32.mrb[0].mxu0
        %2444 = vdwg.mxu0
        %v2449 = vunpack.c.l.b16 %v1679
        %v2450 = vunpack.c.l.b16 %v1680
        %v2451 = vunpack.c.l.b16 %v1681
        %v2452 = vunpack.c.l.b16 %v1682
        %v2453 = vpack.c.b16 %v2450, %v2449
        %v2454 = vpack.c.b16 %v2452, %v2451
        %v2458 = vsel %vm1804, %v2276, 0
        %2460 = vmatprep.subr.bf16.mxu0 0
        %2461 = vmatpush1.bf16.msra.mxu0 %v2453
        %2462 = vmatprep.subr.bf16.mxu0 0
        %2463 = vmatpush1.bf16.msra.mxu0 %v2454
        %2464 = vmatprep.subr.bf16.mxu0 0
        %2465 = vmatpush1.bf16.msra.mxu0 0
        %2466 = vmatprep.subr.bf16.mxu0 0
        %2467 = vmatpush1.bf16.msra.mxu0 0
        %2468 = vmatprep.subr.bf16.mxu0 0
        %2469 = vmatpush1.bf16.msra.mxu0 0
        %2470 = vmatprep.subr.bf16.mxu0 0
        %2471 = vmatpush1.bf16.msra.mxu0 0
        %2472 = vmatprep.subr.bf16.mxu0 0
        %2473 = vmatpush1.bf16.msra.mxu0 0
        %2474 = vmatprep.subr.bf16.mxu0 0
        %2475 = vmatpush1.bf16.msra.mxu0 0
        %2476 = vmatprep.subr.bf16.mxu0 0
        %2477 = vmatpush1.bf16.msra.mxu0 0
        %2478 = vmatprep.subr.bf16.mxu0 0
        %2479 = vmatpush1.bf16.msra.mxu0 0
        %2480 = vmatprep.subr.bf16.mxu0 0
        %2481 = vmatpush1.bf16.msra.mxu0 0
        %2482 = vmatprep.subr.bf16.mxu0 0
        %2483 = vmatpush1.bf16.msra.mxu0 0
        %2484 = vmatprep.subr.bf16.mxu0 0
        %2485 = vmatpush1.bf16.msra.mxu0 0
        %2486 = vmatprep.subr.bf16.mxu0 0
        %2487 = vmatpush1.bf16.msra.mxu0 0
        %2488 = vmatprep.subr.bf16.mxu0 0
        %2489 = vmatpush1.bf16.msra.mxu0 0
        %2490 = vmatprep.subr.bf16.mxu0 0
        %2491 = vmatpush1.bf16.msra.mxu0 0
        %2492 = vmatprep.mubr.bf16.mxu0 0
        %2493 = vmatmul.mubr.bf16.gmra.mrb[0].mxu0 %v2458
        %v2494 = vpop.f32.mrb[0].mxu0
        %v2495 = vadd.f32 0.0, %v2494
        %v2496 = vpop.f32.mrb[0].mxu0
        %v2497 = vpop.f32.mrb[0].mxu0
        %v2498 = vadd.f32 0.0, %v2497
        %v2499 = vpop.f32.mrb[0].mxu0
        %2500 = vdwg.mxu0
        %v2501 = vadd.f32 %v2327, %v2383
        %v2502 = vadd.f32 %v2501, %v2439
        %v2503 = vadd.f32 %v2502, %v2495
        %v2504 = vadd.f32 %v2330, %v2386
        %v2505 = vadd.f32 %v2504, %v2442
        %v2506 = vadd.f32 %v2505, %v2498
        %v2508 = vlaneseq
        %v2509 = vshrl.u32 %v2508, 7
        %v2510 = vsub.s32 0, %v2509
        %v2511 = vrot.slane %v1683, %v2510
        %v2513 = vadd.f32 %v2503, %v2511
        %v2514 = vadd.f32 %v2506, %v2511
        %v2515 = vadd.f32 %v1632, %v2513
        %v2516 = vadd.f32 %v1633, %v2514
        %v2517 = vld [vmem:[%s19] sm:$0x1]
        %v2518 = vld [vmem:[%s20] sm:$0x1]
        %2519 = vadd.xlane.f32.xlu0 %v2515
        %v2520 = vpop.xlane.xlu0 %2519
        %2521 = vadd.xlane.f32.xlu0 %v2516
        %v2522 = vpop.xlane.xlu0 %2521
        %v2523 = vrcp.pop 128.0
        %v2524 = vmul.f32 %v2520, %v2523
        %v2525 = vmul.f32 %v2522, %v2523
        %v2526 = vsub.f32 %v2515, %v2524
        %v2527 = vsub.f32 %v2516, %v2525
        %v2528 = vmul.f32 %v2526, %v2526
        %v2529 = vmul.f32 %v2527, %v2527
        %2530 = vadd.xlane.f32.xlu0 %v2528
        %v2531 = vpop.xlane.xlu0 %2530
        %2532 = vadd.xlane.f32.xlu0 %v2529
        %v2533 = vpop.xlane.xlu0 %2532
        %v2534 = vmul.f32 %v2531, %v2523
        %v2535 = vmul.f32 %v2533, %v2523
        %v2536 = vadd.f32 %v2534, 1e-05
        %v2537 = vadd.f32 %v2535, 1e-05
        %v2538 = vrsqrt.pop %v2536
        %v2539 = vrsqrt.pop %v2537
        %v2540 = vmul.f32 %v2526, %v2538
        %v2541 = vmul.f32 %v2527, %v2539
        %v2543 = vlaneseq
        %v2544 = vshrl.u32 %v2543, 7
        %v2545 = vsub.s32 0, %v2544
        %v2546 = vrot.slane %v2517, %v2545
        %v2548 = vmul.f32 %v2540, %v2546
        %v2549 = vmul.f32 %v2541, %v2546
        %v2551 = vlaneseq
        %v2552 = vshrl.u32 %v2551, 7
        %v2553 = vsub.s32 0, %v2552
        %v2554 = vrot.slane %v2518, %v2553
        %v2556 = vadd.f32 %v2548, %v2554
        %v2557 = vadd.f32 %v2549, %v2554
        %v2558 = vld [vmem:[#allocation4] sm:$0xf]
        %v2559 = vld [vmem:[#allocation4 + $0x4] sm:$0xf]
        %v2560 = vld [vmem:[#allocation4 + $0x8] sm:$0xf]
        %v2561 = vld [vmem:[#allocation4 + $0xc] sm:$0xf]
        %v2562 = vld [vmem:[#allocation4 + $0x10] sm:$0xf]
        %v2563 = vld [vmem:[#allocation4 + $0x14] sm:$0xf]
        %v2564 = vld [vmem:[#allocation4 + $0x18] sm:$0xf]
        %v2565 = vld [vmem:[#allocation4 + $0x1c] sm:$0xf]
        %v2566 = vld [vmem:[#allocation4 + $0x20] sm:$0xf]
        %v2567 = vld [vmem:[#allocation4 + $0x24] sm:$0xf]
        %v2568 = vld [vmem:[#allocation4 + $0x28] sm:$0xf]
        %v2569 = vld [vmem:[#allocation4 + $0x2c] sm:$0xf]
        %v2570 = vld [vmem:[#allocation5] sm:$0xf]
        %v2571 = vld [vmem:[#allocation5 + $0x4] sm:$0xf]
        %v2572 = vld [vmem:[#allocation5 + $0x8] sm:$0xf]
        %v2573 = vld [vmem:[#allocation5 + $0xc] sm:$0xf]
        %v2574 = vld [vmem:[#allocation5 + $0x10] sm:$0xf]
        %v2575 = vld [vmem:[#allocation5 + $0x14] sm:$0xf]
        %v2576 = vld [vmem:[#allocation5 + $0x18] sm:$0xf]
        %v2577 = vld [vmem:[#allocation5 + $0x1c] sm:$0xf]
        %v2578 = vld [vmem:[#allocation5 + $0x20] sm:$0xf]
        %v2579 = vld [vmem:[#allocation5 + $0x24] sm:$0xf]
        %v2580 = vld [vmem:[#allocation5 + $0x28] sm:$0xf]
        %v2581 = vld [vmem:[#allocation5 + $0x2c] sm:$0xf]
        %v2582 = vld [vmem:[#allocation17] sm:$0xf]
        %v2583 = vld [vmem:[#allocation17 + $0x4] sm:$0xf]
        %v2584 = vld [vmem:[#allocation17 + $0x8] sm:$0xf]
        %v2585 = vld [vmem:[#allocation17 + $0xc] sm:$0xf]
        %v2586 = vld [vmem:[#allocation17 + $0x10] sm:$0xf]
        %v2587 = vld [vmem:[#allocation17 + $0x14] sm:$0xf]
        %v2588 = vld [vmem:[#allocation17 + $0x18] sm:$0xf]
        %v2589 = vld [vmem:[#allocation17 + $0x1c] sm:$0xf]
        %v2590 = vld [vmem:[#allocation17 + $0x20] sm:$0xf]
        %v2591 = vld [vmem:[#allocation17 + $0x24] sm:$0xf]
        %v2592 = vld [vmem:[#allocation17 + $0x28] sm:$0xf]
        %v2593 = vld [vmem:[#allocation17 + $0x2c] sm:$0xf]
        %v2594 = vld [vmem:[#allocation17 + $0x30] sm:$0xf]
        %v2595 = vld [vmem:[#allocation17 + $0x34] sm:$0xf]
        %v2596 = vld [vmem:[#allocation17 + $0x38] sm:$0xf]
        %v2597 = vld [vmem:[#allocation17 + $0x3c] sm:$0xf]
        %v2598 = vld [vmem:[%s10] sm:$0x1]
        %v2599 = vld [vmem:[#allocation20] sm:$0xf]
        %v2600 = vld [vmem:[#allocation20 + $0x4] sm:$0xf]
        %v2601 = vld [vmem:[#allocation20 + $0x8] sm:$0xf]
        %v2602 = vld [vmem:[#allocation20 + $0xc] sm:$0xf]
        %v2603 = vld [vmem:[#allocation20 + $0x10] sm:$0xf]
        %v2604 = vld [vmem:[#allocation20 + $0x14] sm:$0xf]
        %v2605 = vld [vmem:[#allocation20 + $0x18] sm:$0xf]
        %v2606 = vld [vmem:[#allocation20 + $0x1c] sm:$0xf]
        %v2607 = vld [vmem:[#allocation20 + $0x20] sm:$0xf]
        %v2608 = vld [vmem:[#allocation20 + $0x24] sm:$0xf]
        %v2609 = vld [vmem:[#allocation20 + $0x28] sm:$0xf]
        %v2610 = vld [vmem:[#allocation20 + $0x2c] sm:$0xf]
        %v2611 = vld [vmem:[#allocation20 + $0x30] sm:$0xf]
        %v2612 = vld [vmem:[#allocation20 + $0x34] sm:$0xf]
        %v2613 = vld [vmem:[#allocation20 + $0x38] sm:$0xf]
        %v2614 = vld [vmem:[#allocation20 + $0x3c] sm:$0xf]
        %v2615 = vld [vmem:[%s14] sm:$0x1]
        %v2616 = vpack.c.bf16 %v2557, %v2556
        %v2618 = vlaneseq
        %v2619 = vshrl.u32 %v2618, 7
        %v2620 = vsub.s32 0, %v2619
        %v2621 = vrot.slane %v2598, %v2620
        %v2639 = vunpack.c.l.b16 %v2582
        %v2640 = vunpack.c.l.b16 %v2583
        %v2641 = vunpack.c.l.b16 %v2584
        %v2642 = vunpack.c.l.b16 %v2585
        %v2643 = vunpack.c.l.b16 %v2586
        %v2644 = vunpack.c.l.b16 %v2587
        %v2645 = vunpack.c.l.b16 %v2588
        %v2646 = vunpack.c.l.b16 %v2589
        %v2647 = vunpack.c.l.b16 %v2590
        %v2648 = vunpack.c.l.b16 %v2591
        %v2649 = vunpack.c.l.b16 %v2592
        %v2650 = vunpack.c.l.b16 %v2593
        %v2651 = vunpack.c.l.b16 %v2594
        %v2652 = vunpack.c.l.b16 %v2595
        %v2653 = vunpack.c.l.b16 %v2596
        %v2654 = vunpack.c.l.b16 %v2597
        %v2655 = vpack.c.b16 %v2640, %v2639
        %v2656 = vpack.c.b16 %v2642, %v2641
        %v2657 = vpack.c.b16 %v2644, %v2643
        %v2658 = vpack.c.b16 %v2646, %v2645
        %v2659 = vpack.c.b16 %v2648, %v2647
        %v2660 = vpack.c.b16 %v2650, %v2649
        %v2661 = vpack.c.b16 %v2652, %v2651
        %v2662 = vpack.c.b16 %v2654, %v2653
        %2671 = vmatprep.subr.bf16.mxu0 0
        %2672 = vmatpush1.bf16.msra.mxu0 %v2655
        %2673 = vmatprep.subr.bf16.mxu0 0
        %2674 = vmatpush1.bf16.msra.mxu0 %v2656
        %2675 = vmatprep.subr.bf16.mxu0 0
        %2676 = vmatpush1.bf16.msra.mxu0 %v2657
        %2677 = vmatprep.subr.bf16.mxu0 0
        %2678 = vmatpush1.bf16.msra.mxu0 %v2658
        %2679 = vmatprep.subr.bf16.mxu0 0
        %2680 = vmatpush1.bf16.msra.mxu0 %v2659
        %2681 = vmatprep.subr.bf16.mxu0 0
        %2682 = vmatpush1.bf16.msra.mxu0 %v2660
        %2683 = vmatprep.subr.bf16.mxu0 0
        %2684 = vmatpush1.bf16.msra.mxu0 %v2661
        %2685 = vmatprep.subr.bf16.mxu0 0
        %2686 = vmatpush1.bf16.msra.mxu0 %v2662
        %2687 = vmatprep.subr.bf16.mxu0 0
        %2688 = vmatpush1.bf16.msra.mxu0 0
        %2689 = vmatprep.subr.bf16.mxu0 0
        %2690 = vmatpush1.bf16.msra.mxu0 0
        %2691 = vmatprep.subr.bf16.mxu0 0
        %2692 = vmatpush1.bf16.msra.mxu0 0
        %2693 = vmatprep.subr.bf16.mxu0 0
        %2694 = vmatpush1.bf16.msra.mxu0 0
        %2695 = vmatprep.subr.bf16.mxu0 0
        %2696 = vmatpush1.bf16.msra.mxu0 0
        %2697 = vmatprep.subr.bf16.mxu0 0
        %2698 = vmatpush1.bf16.msra.mxu0 0
        %2699 = vmatprep.subr.bf16.mxu0 0
        %2700 = vmatpush1.bf16.msra.mxu0 0
        %2701 = vmatprep.subr.bf16.mxu0 0
        %2702 = vmatpush1.bf16.msra.mxu0 0
        %2703 = vmatprep.mubr.bf16.mxu0 0
        %2704 = vmatmul.mubr.bf16.gmra.mrb[0].mxu0 %v2616
        %v2705 = vpop.f32.mrb[0].mxu0
        %v2706 = vadd.f32 %v2621, %v2705
        %v2707 = vpop.f32.mrb[0].mxu0
        %v2708 = vpop.f32.mrb[0].mxu0
        %v2709 = vadd.f32 %v2621, %v2708
        %v2710 = vpop.f32.mrb[0].mxu0
        %2711 = vdwg.mxu0
        %2714 = vrot.lane.b32.xlu0 %v2706, 96
        %v2715 = vpop.permute.xlu0 %2714
        %2716 = vrot.lane.b32.xlu0 %v2709, 96
        %v2717 = vpop.permute.xlu0 %2716
        %2720 = vrot.lane.b32.xlu0 %v2706, 64
        %v2721 = vpop.permute.xlu0 %2720
        %2722 = vrot.lane.b32.xlu0 %v2709, 64
        %v2723 = vpop.permute.xlu0 %2722
        %2726 = vrot.lane.b32.xlu0 %v2706, 32
        %v2727 = vpop.permute.xlu0 %2726
        %2728 = vrot.lane.b32.xlu0 %v2709, 32
        %v2729 = vpop.permute.xlu0 %2728
        %v2732 = vpack.c.bf16 %v2709, %v2706
        %v2733 = vpack.c.bf16 %v2717, %v2715
        %v2734 = vpack.c.bf16 %v2723, %v2721
        %v2735 = vpack.c.bf16 %v2729, %v2727
        %v2739 = vunpack.c.l.b16 %v2558
        %v2740 = vunpack.c.l.b16 %v2559
        %v2741 = vunpack.c.l.b16 %v2560
        %v2742 = vpack.c.b16 %v2740, %v2739
        %v2743 = vpack.c.b16 %v2741, %v2741
        %v2745 = vsel %vm1804, %v2732, 0
        %v2748 = vsel %vm1804, %v2742, 0
        %v2751 = vsel %vm1804, %v2743, 0
        %2753 = vmatprep.subr.bf16.mxu0 0
        %2754 = vmatpush1.bf16.xpose.msra.mxu0 %v2748
        %2755 = vmatprep.subr.bf16.mxu0 0
        %2756 = vmatpush1.bf16.xpose.msra.mxu0 %v2751
        %2757 = vmatprep.subr.bf16.mxu0 0
        %2758 = vmatpush1.bf16.xpose.msra.mxu0 0
        %2759 = vmatprep.subr.bf16.mxu0 0
        %2760 = vmatpush1.bf16.xpose.msra.mxu0 0
        %2761 = vmatprep.subr.bf16.mxu0 0
        %2762 = vmatpush1.bf16.xpose.msra.mxu0 0
        %2763 = vmatprep.subr.bf16.mxu0 0
        %2764 = vmatpush1.bf16.xpose.msra.mxu0 0
        %2765 = vmatprep.subr.bf16.mxu0 0
        %2766 = vmatpush1.bf16.xpose.msra.mxu0 0
        %2767 = vmatprep.subr.bf16.mxu0 0
        %2768 = vmatpush1.bf16.xpose.msra.mxu0 0
        %2769 = vmatprep.subr.bf16.mxu0 0
        %2770 = vmatpush1.bf16.xpose.msra.mxu0 0
        %2771 = vmatprep.subr.bf16.mxu0 0
        %2772 = vmatpush1.bf16.xpose.msra.mxu0 0
        %2773 = vmatprep.subr.bf16.mxu0 0
        %2774 = vmatpush1.bf16.xpose.msra.mxu0 0
        %2775 = vmatprep.subr.bf16.mxu0 0
        %2776 = vmatpush1.bf16.xpose.msra.mxu0 0
        %2777 = vmatprep.subr.bf16.mxu0 0
        %2778 = vmatpush1.bf16.xpose.msra.mxu0 0
        %2779 = vmatprep.subr.bf16.mxu0 0
        %2780 = vmatpush1.bf16.xpose.msra.mxu0 0
        %2781 = vmatprep.subr.bf16.mxu0 0
        %2782 = vmatpush1.bf16.xpose.msra.mxu0 0
        %2783 = vmatprep.subr.bf16.mxu0 0
        %2784 = vmatpush1.bf16.xpose.msra.mxu0 0
        %2785 = vmatprep.mubr.bf16.mxu0 0
        %2786 = vmatmul.mubr.bf16.gmra.mrb[0].mxu0 %v2745
        %v2787 = vpop.f32.mrb[0].mxu0
        %v2788 = vadd.f32 0.0, %v2787
        %v2789 = vpop.f32.mrb[0].mxu0
        %v2790 = vpop.f32.mrb[0].mxu0
        %v2791 = vadd.f32 0.0, %v2790
        %v2792 = vpop.f32.mrb[0].mxu0
        %2793 = vdwg.mxu0
        %v2797 = vunpack.c.l.b16 %v2561
        %v2798 = vunpack.c.l.b16 %v2562
        %v2799 = vunpack.c.l.b16 %v2563
        %v2800 = vpack.c.b16 %v2798, %v2797
        %v2801 = vpack.c.b16 %v2799, %v2799
        %v2803 = vsel %vm1804, %v2733, 0
        %v2806 = vsel %vm1804, %v2800, 0
        %v2809 = vsel %vm1804, %v2801, 0
        %2811 = vmatprep.subr.bf16.mxu0 0
        %2812 = vmatpush1.bf16.xpose.msra.mxu0 %v2806
        %2813 = vmatprep.subr.bf16.mxu0 0
        %2814 = vmatpush1.bf16.xpose.msra.mxu0 %v2809
        %2815 = vmatprep.subr.bf16.mxu0 0
        %2816 = vmatpush1.bf16.xpose.msra.mxu0 0
        %2817 = vmatprep.subr.bf16.mxu0 0
        %2818 = vmatpush1.bf16.xpose.msra.mxu0 0
        %2819 = vmatprep.subr.bf16.mxu0 0
        %2820 = vmatpush1.bf16.xpose.msra.mxu0 0
        %2821 = vmatprep.subr.bf16.mxu0 0
        %2822 = vmatpush1.bf16.xpose.msra.mxu0 0
        %2823 = vmatprep.subr.bf16.mxu0 0
        %2824 = vmatpush1.bf16.xpose.msra.mxu0 0
        %2825 = vmatprep.subr.bf16.mxu0 0
        %2826 = vmatpush1.bf16.xpose.msra.mxu0 0
        %2827 = vmatprep.subr.bf16.mxu0 0
        %2828 = vmatpush1.bf16.xpose.msra.mxu0 0
        %2829 = vmatprep.subr.bf16.mxu0 0
        %2830 = vmatpush1.bf16.xpose.msra.mxu0 0
        %2831 = vmatprep.subr.bf16.mxu0 0
        %2832 = vmatpush1.bf16.xpose.msra.mxu0 0
        %2833 = vmatprep.subr.bf16.mxu0 0
        %2834 = vmatpush1.bf16.xpose.msra.mxu0 0
        %2835 = vmatprep.subr.bf16.mxu0 0
        %2836 = vmatpush1.bf16.xpose.msra.mxu0 0
        %2837 = vmatprep.subr.bf16.mxu0 0
        %2838 = vmatpush1.bf16.xpose.msra.mxu0 0
        %2839 = vmatprep.subr.bf16.mxu0 0
        %2840 = vmatpush1.bf16.xpose.msra.mxu0 0
        %2841 = vmatprep.subr.bf16.mxu0 0
        %2842 = vmatpush1.bf16.xpose.msra.mxu0 0
        %2843 = vmatprep.mubr.bf16.mxu0 0
        %2844 = vmatmul.mubr.bf16.gmra.mrb[0].mxu0 %v2803
        %v2845 = vpop.f32.mrb[0].mxu0
        %v2846 = vadd.f32 0.0, %v2845
        %v2847 = vpop.f32.mrb[0].mxu0
        %v2848 = vpop.f32.mrb[0].mxu0
        %v2849 = vadd.f32 0.0, %v2848
        %v2850 = vpop.f32.mrb[0].mxu0
        %2851 = vdwg.mxu0
        %v2855 = vunpack.c.l.b16 %v2564
        %v2856 = vunpack.c.l.b16 %v2565
        %v2857 = vunpack.c.l.b16 %v2566
        %v2858 = vpack.c.b16 %v2856, %v2855
        %v2859 = vpack.c.b16 %v2857, %v2857
        %v2861 = vsel %vm1804, %v2734, 0
        %v2864 = vsel %vm1804, %v2858, 0
        %v2867 = vsel %vm1804, %v2859, 0
        %2869 = vmatprep.subr.bf16.mxu0 0
        %2870 = vmatpush1.bf16.xpose.msra.mxu0 %v2864
        %2871 = vmatprep.subr.bf16.mxu0 0
        %2872 = vmatpush1.bf16.xpose.msra.mxu0 %v2867
        %2873 = vmatprep.subr.bf16.mxu0 0
        %2874 = vmatpush1.bf16.xpose.msra.mxu0 0
        %2875 = vmatprep.subr.bf16.mxu0 0
        %2876 = vmatpush1.bf16.xpose.msra.mxu0 0
        %2877 = vmatprep.subr.bf16.mxu0 0
        %2878 = vmatpush1.bf16.xpose.msra.mxu0 0
        %2879 = vmatprep.subr.bf16.mxu0 0
        %2880 = vmatpush1.bf16.xpose.msra.mxu0 0
        %2881 = vmatprep.subr.bf16.mxu0 0
        %2882 = vmatpush1.bf16.xpose.msra.mxu0 0
        %2883 = vmatprep.subr.bf16.mxu0 0
        %2884 = vmatpush1.bf16.xpose.msra.mxu0 0
        %2885 = vmatprep.subr.bf16.mxu0 0
        %2886 = vmatpush1.bf16.xpose.msra.mxu0 0
        %2887 = vmatprep.subr.bf16.mxu0 0
        %2888 = vmatpush1.bf16.xpose.msra.mxu0 0
        %2889 = vmatprep.subr.bf16.mxu0 0
        %2890 = vmatpush1.bf16.xpose.msra.mxu0 0
        %2891 = vmatprep.subr.bf16.mxu0 0
        %2892 = vmatpush1.bf16.xpose.msra.mxu0 0
        %2893 = vmatprep.subr.bf16.mxu0 0
        %2894 = vmatpush1.bf16.xpose.msra.mxu0 0
        %2895 = vmatprep.subr.bf16.mxu0 0
        %2896 = vmatpush1.bf16.xpose.msra.mxu0 0
        %2897 = vmatprep.subr.bf16.mxu0 0
        %2898 = vmatpush1.bf16.xpose.msra.mxu0 0
        %2899 = vmatprep.subr.bf16.mxu0 0
        %2900 = vmatpush1.bf16.xpose.msra.mxu0 0
        %2901 = vmatprep.mubr.bf16.mxu0 0
        %2902 = vmatmul.mubr.bf16.gmra.mrb[0].mxu0 %v2861
        %v2903 = vpop.f32.mrb[0].mxu0
        %v2904 = vadd.f32 0.0, %v2903
        %v2905 = vpop.f32.mrb[0].mxu0
        %v2906 = vpop.f32.mrb[0].mxu0
        %v2907 = vadd.f32 0.0, %v2906
        %v2908 = vpop.f32.mrb[0].mxu0
        %2909 = vdwg.mxu0
        %v2913 = vunpack.c.l.b16 %v2567
        %v2914 = vunpack.c.l.b16 %v2568
        %v2915 = vunpack.c.l.b16 %v2569
        %v2916 = vpack.c.b16 %v2914, %v2913
        %v2917 = vpack.c.b16 %v2915, %v2915
        %v2919 = vsel %vm1804, %v2735, 0
        %v2922 = vsel %vm1804, %v2916, 0
        %v2925 = vsel %vm1804, %v2917, 0
        %2927 = vmatprep.subr.bf16.mxu0 0
        %2928 = vmatpush1.bf16.xpose.msra.mxu0 %v2922
        %2929 = vmatprep.subr.bf16.mxu0 0
        %2930 = vmatpush1.bf16.xpose.msra.mxu0 %v2925
        %2931 = vmatprep.subr.bf16.mxu0 0
        %2932 = vmatpush1.bf16.xpose.msra.mxu0 0
        %2933 = vmatprep.subr.bf16.mxu0 0
        %2934 = vmatpush1.bf16.xpose.msra.mxu0 0
        %2935 = vmatprep.subr.bf16.mxu0 0
        %2936 = vmatpush1.bf16.xpose.msra.mxu0 0
        %2937 = vmatprep.subr.bf16.mxu0 0
        %2938 = vmatpush1.bf16.xpose.msra.mxu0 0
        %2939 = vmatprep.subr.bf16.mxu0 0
        %2940 = vmatpush1.bf16.xpose.msra.mxu0 0
        %2941 = vmatprep.subr.bf16.mxu0 0
        %2942 = vmatpush1.bf16.xpose.msra.mxu0 0
        %2943 = vmatprep.subr.bf16.mxu0 0
        %2944 = vmatpush1.bf16.xpose.msra.mxu0 0
        %2945 = vmatprep.subr.bf16.mxu0 0
        %2946 = vmatpush1.bf16.xpose.msra.mxu0 0
        %2947 = vmatprep.subr.bf16.mxu0 0
        %2948 = vmatpush1.bf16.xpose.msra.mxu0 0
        %2949 = vmatprep.subr.bf16.mxu0 0
        %2950 = vmatpush1.bf16.xpose.msra.mxu0 0
        %2951 = vmatprep.subr.bf16.mxu0 0
        %2952 = vmatpush1.bf16.xpose.msra.mxu0 0
        %2953 = vmatprep.subr.bf16.mxu0 0
        %2954 = vmatpush1.bf16.xpose.msra.mxu0 0
        %2955 = vmatprep.subr.bf16.mxu0 0
        %2956 = vmatpush1.bf16.xpose.msra.mxu0 0
        %2957 = vmatprep.subr.bf16.mxu0 0
        %2958 = vmatpush1.bf16.xpose.msra.mxu0 0
        %2959 = vmatprep.mubr.bf16.mxu0 0
        %2960 = vmatmul.mubr.bf16.gmra.mrb[0].mxu0 %v2919
        %v2961 = vpop.f32.mrb[0].mxu0
        %v2962 = vadd.f32 0.0, %v2961
        %v2963 = vpop.f32.mrb[0].mxu0
        %v2964 = vpop.f32.mrb[0].mxu0
        %v2965 = vadd.f32 0.0, %v2964
        %v2966 = vpop.f32.mrb[0].mxu0
        %2967 = vdwg.mxu0
        %vm2968 = vcmask 195584
        %v2969 = vsel %vm2968, %v2788, -inf
        %2970 = vmax.xlane.f32.xlu0 %v2969
        %v2971 = vpop.xlane.xlu0 %2970
        %v2972 = vsel %vm2968, %v2791, -inf
        %2973 = vmax.xlane.f32.xlu0 %v2972
        %v2974 = vpop.xlane.xlu0 %2973
        %v2975 = vsel %vm2968, %v2846, -inf
        %2976 = vmax.xlane.f32.xlu0 %v2975
        %v2977 = vpop.xlane.xlu0 %2976
        %v2978 = vsel %vm2968, %v2849, -inf
        %2979 = vmax.xlane.f32.xlu0 %v2978
        %v2980 = vpop.xlane.xlu0 %2979
        %v2981 = vsel %vm2968, %v2904, -inf
        %2982 = vmax.xlane.f32.xlu0 %v2981
        %v2983 = vpop.xlane.xlu0 %2982
        %v2984 = vsel %vm2968, %v2907, -inf
        %2985 = vmax.xlane.f32.xlu0 %v2984
        %v2986 = vpop.xlane.xlu0 %2985
        %v2987 = vsel %vm2968, %v2962, -inf
        %2988 = vmax.xlane.f32.xlu0 %v2987
        %v2989 = vpop.xlane.xlu0 %2988
        %v2990 = vsel %vm2968, %v2965, -inf
        %2991 = vmax.xlane.f32.xlu0 %v2990
        %v2992 = vpop.xlane.xlu0 %2991
        %v2993 = vsub.f32 %v2788, %v2971
        %v2994 = vsub.f32 %v2791, %v2974
        %v2995 = vsub.f32 %v2846, %v2977
        %v2996 = vsub.f32 %v2849, %v2980
        %v2997 = vsub.f32 %v2904, %v2983
        %v2998 = vsub.f32 %v2907, %v2986
        %v2999 = vsub.f32 %v2962, %v2989
        %v3000 = vsub.f32 %v2965, %v2992
        %v3001 = vmul.f32 %v2993, 1.442695
        %v3002 = vpow.pop %v3001
        %v3003 = vmul.f32 %v2994, 1.442695
        %v3004 = vpow.pop %v3003
        %v3005 = vmul.f32 %v2995, 1.442695
        %v3006 = vpow.pop %v3005
        %v3007 = vmul.f32 %v2996, 1.442695
        %v3008 = vpow.pop %v3007
        %v3009 = vmul.f32 %v2997, 1.442695
        %v3010 = vpow.pop %v3009
        %v3011 = vmul.f32 %v2998, 1.442695
        %v3012 = vpow.pop %v3011
        %v3013 = vmul.f32 %v2999, 1.442695
        %v3014 = vpow.pop %v3013
        %v3015 = vmul.f32 %v3000, 1.442695
        %v3016 = vpow.pop %v3015
        %v3017 = vsel %vm2968, %v3002, 0.0
        %3018 = vadd.xlane.f32.xlu0 %v3017
        %v3019 = vpop.xlane.xlu0 %3018
        %v3020 = vsel %vm2968, %v3004, 0.0
        %3021 = vadd.xlane.f32.xlu0 %v3020
        %v3022 = vpop.xlane.xlu0 %3021
        %v3023 = vsel %vm2968, %v3006, 0.0
        %3024 = vadd.xlane.f32.xlu0 %v3023
        %v3025 = vpop.xlane.xlu0 %3024
        %v3026 = vsel %vm2968, %v3008, 0.0
        %3027 = vadd.xlane.f32.xlu0 %v3026
        %v3028 = vpop.xlane.xlu0 %3027
        %v3029 = vsel %vm2968, %v3010, 0.0
        %3030 = vadd.xlane.f32.xlu0 %v3029
        %v3031 = vpop.xlane.xlu0 %3030
        %v3032 = vsel %vm2968, %v3012, 0.0
        %3033 = vadd.xlane.f32.xlu0 %v3032
        %v3034 = vpop.xlane.xlu0 %3033
        %v3035 = vsel %vm2968, %v3014, 0.0
        %3036 = vadd.xlane.f32.xlu0 %v3035
        %v3037 = vpop.xlane.xlu0 %3036
        %v3038 = vsel %vm2968, %v3016, 0.0
        %3039 = vadd.xlane.f32.xlu0 %v3038
        %v3040 = vpop.xlane.xlu0 %3039
        %v3041 = vrcp.pop %v3019
        %v3042 = vrcp.pop %v3022
        %v3043 = vrcp.pop %v3025
        %v3044 = vrcp.pop %v3028
        %v3045 = vrcp.pop %v3031
        %v3046 = vrcp.pop %v3034
        %v3047 = vrcp.pop %v3037
        %v3048 = vrcp.pop %v3040
        %v3049 = vmul.f32 %v3002, %v3041
        %v3050 = vmul.f32 %v3004, %v3042
        %v3051 = vmul.f32 %v3006, %v3043
        %v3052 = vmul.f32 %v3008, %v3044
        %v3053 = vmul.f32 %v3010, %v3045
        %v3054 = vmul.f32 %v3012, %v3046
        %v3055 = vmul.f32 %v3014, %v3047
        %v3056 = vmul.f32 %v3016, %v3048
        %v3057 = vpack.c.bf16 %v3050, %v3049
        %v3058 = vpack.c.bf16 %v3052, %v3051
        %v3059 = vpack.c.bf16 %v3054, %v3053
        %v3060 = vpack.c.bf16 %v3056, %v3055
        %v3064 = vunpack.c.l.b16 %v2570
        %v3065 = vunpack.c.l.b16 %v2571
        %v3066 = vunpack.c.l.b16 %v2572
        %v3067 = vpack.c.b16 %v3065, %v3064
        %v3068 = vpack.c.b16 %v3066, %v3066
        %v3071 = vsel %vm2968, %v3057, 0
        %vm3073 = vcmask 1043456
        %v3075 = vsel %vm3073, %v3068, 0
        %3077 = vmatprep.subr.bf16.mxu0 0
        %3078 = vmatpush1.bf16.msra.mxu0 %v3067
        %3079 = vmatprep.subr.bf16.mxu0 0
        %3080 = vmatpush1.bf16.msra.mxu0 %v3075
        %3081 = vmatprep.subr.bf16.mxu0 0
        %3082 = vmatpush1.bf16.msra.mxu0 0
        %3083 = vmatprep.subr.bf16.mxu0 0
        %3084 = vmatpush1.bf16.msra.mxu0 0
        %3085 = vmatprep.subr.bf16.mxu0 0
        %3086 = vmatpush1.bf16.msra.mxu0 0
        %3087 = vmatprep.subr.bf16.mxu0 0
        %3088 = vmatpush1.bf16.msra.mxu0 0
        %3089 = vmatprep.subr.bf16.mxu0 0
        %3090 = vmatpush1.bf16.msra.mxu0 0
        %3091 = vmatprep.subr.bf16.mxu0 0
        %3092 = vmatpush1.bf16.msra.mxu0 0
        %3093 = vmatprep.subr.bf16.mxu0 0
        %3094 = vmatpush1.bf16.msra.mxu0 0
        %3095 = vmatprep.subr.bf16.mxu0 0
        %3096 = vmatpush1.bf16.msra.mxu0 0
        %3097 = vmatprep.subr.bf16.mxu0 0
        %3098 = vmatpush1.bf16.msra.mxu0 0
        %3099 = vmatprep.subr.bf16.mxu0 0
        %3100 = vmatpush1.bf16.msra.mxu0 0
        %3101 = vmatprep.subr.bf16.mxu0 0
        %3102 = vmatpush1.bf16.msra.mxu0 0
        %3103 = vmatprep.subr.bf16.mxu0 0
        %3104 = vmatpush1.bf16.msra.mxu0 0
        %3105 = vmatprep.subr.bf16.mxu0 0
        %3106 = vmatpush1.bf16.msra.mxu0 0
        %3107 = vmatprep.subr.bf16.mxu0 0
        %3108 = vmatpush1.bf16.msra.mxu0 0
        %3109 = vmatprep.mubr.bf16.mxu0 0
        %3110 = vmatmul.mubr.bf16.gmra.mrb[0].mxu0 %v3071
        %v3111 = vpop.f32.mrb[0].mxu0
        %v3112 = vadd.f32 0.0, %v3111
        %v3113 = vpop.f32.mrb[0].mxu0
        %v3114 = vpop.f32.mrb[0].mxu0
        %v3115 = vadd.f32 0.0, %v3114
        %v3116 = vpop.f32.mrb[0].mxu0
        %3117 = vdwg.mxu0
        %v3121 = vunpack.c.l.b16 %v2573
        %v3122 = vunpack.c.l.b16 %v2574
        %v3123 = vunpack.c.l.b16 %v2575
        %v3124 = vpack.c.b16 %v3122, %v3121
        %v3125 = vpack.c.b16 %v3123, %v3123
        %v3128 = vsel %vm2968, %v3058, 0
        %v3131 = vsel %vm3073, %v3125, 0
        %3133 = vmatprep.subr.bf16.mxu0 0
        %3134 = vmatpush1.bf16.msra.mxu0 %v3124
        %3135 = vmatprep.subr.bf16.mxu0 0
        %3136 = vmatpush1.bf16.msra.mxu0 %v3131
        %3137 = vmatprep.subr.bf16.mxu0 0
        %3138 = vmatpush1.bf16.msra.mxu0 0
        %3139 = vmatprep.subr.bf16.mxu0 0
        %3140 = vmatpush1.bf16.msra.mxu0 0
        %3141 = vmatprep.subr.bf16.mxu0 0
        %3142 = vmatpush1.bf16.msra.mxu0 0
        %3143 = vmatprep.subr.bf16.mxu0 0
        %3144 = vmatpush1.bf16.msra.mxu0 0
        %3145 = vmatprep.subr.bf16.mxu0 0
        %3146 = vmatpush1.bf16.msra.mxu0 0
        %3147 = vmatprep.subr.bf16.mxu0 0
        %3148 = vmatpush1.bf16.msra.mxu0 0
        %3149 = vmatprep.subr.bf16.mxu0 0
        %3150 = vmatpush1.bf16.msra.mxu0 0
        %3151 = vmatprep.subr.bf16.mxu0 0
        %3152 = vmatpush1.bf16.msra.mxu0 0
        %3153 = vmatprep.subr.bf16.mxu0 0
        %3154 = vmatpush1.bf16.msra.mxu0 0
        %3155 = vmatprep.subr.bf16.mxu0 0
        %3156 = vmatpush1.bf16.msra.mxu0 0
        %3157 = vmatprep.subr.bf16.mxu0 0
        %3158 = vmatpush1.bf16.msra.mxu0 0
        %3159 = vmatprep.subr.bf16.mxu0 0
        %3160 = vmatpush1.bf16.msra.mxu0 0
        %3161 = vmatprep.subr.bf16.mxu0 0
        %3162 = vmatpush1.bf16.msra.mxu0 0
        %3163 = vmatprep.subr.bf16.mxu0 0
        %3164 = vmatpush1.bf16.msra.mxu0 0
        %3165 = vmatprep.mubr.bf16.mxu0 0
        %3166 = vmatmul.mubr.bf16.gmra.mrb[0].mxu0 %v3128
        %v3167 = vpop.f32.mrb[0].mxu0
        %v3168 = vadd.f32 0.0, %v3167
        %v3169 = vpop.f32.mrb[0].mxu0
        %v3170 = vpop.f32.mrb[0].mxu0
        %v3171 = vadd.f32 0.0, %v3170
        %v3172 = vpop.f32.mrb[0].mxu0
        %3173 = vdwg.mxu0
        %v3177 = vunpack.c.l.b16 %v2576
        %v3178 = vunpack.c.l.b16 %v2577
        %v3179 = vunpack.c.l.b16 %v2578
        %v3180 = vpack.c.b16 %v3178, %v3177
        %v3181 = vpack.c.b16 %v3179, %v3179
        %v3184 = vsel %vm2968, %v3059, 0
        %v3187 = vsel %vm3073, %v3181, 0
        %3189 = vmatprep.subr.bf16.mxu0 0
        %3190 = vmatpush1.bf16.msra.mxu0 %v3180
        %3191 = vmatprep.subr.bf16.mxu0 0
        %3192 = vmatpush1.bf16.msra.mxu0 %v3187
        %3193 = vmatprep.subr.bf16.mxu0 0
        %3194 = vmatpush1.bf16.msra.mxu0 0
        %3195 = vmatprep.subr.bf16.mxu0 0
        %3196 = vmatpush1.bf16.msra.mxu0 0
        %3197 = vmatprep.subr.bf16.mxu0 0
        %3198 = vmatpush1.bf16.msra.mxu0 0
        %3199 = vmatprep.subr.bf16.mxu0 0
        %3200 = vmatpush1.bf16.msra.mxu0 0
        %3201 = vmatprep.subr.bf16.mxu0 0
        %3202 = vmatpush1.bf16.msra.mxu0 0
        %3203 = vmatprep.subr.bf16.mxu0 0
        %3204 = vmatpush1.bf16.msra.mxu0 0
        %3205 = vmatprep.subr.bf16.mxu0 0
        %3206 = vmatpush1.bf16.msra.mxu0 0
        %3207 = vmatprep.subr.bf16.mxu0 0
        %3208 = vmatpush1.bf16.msra.mxu0 0
        %3209 = vmatprep.subr.bf16.mxu0 0
        %3210 = vmatpush1.bf16.msra.mxu0 0
        %3211 = vmatprep.subr.bf16.mxu0 0
        %3212 = vmatpush1.bf16.msra.mxu0 0
        %3213 = vmatprep.subr.bf16.mxu0 0
        %3214 = vmatpush1.bf16.msra.mxu0 0
        %3215 = vmatprep.subr.bf16.mxu0 0
        %3216 = vmatpush1.bf16.msra.mxu0 0
        %3217 = vmatprep.subr.bf16.mxu0 0
        %3218 = vmatpush1.bf16.msra.mxu0 0
        %3219 = vmatprep.subr.bf16.mxu0 0
        %3220 = vmatpush1.bf16.msra.mxu0 0
        %3221 = vmatprep.mubr.bf16.mxu0 0
        %3222 = vmatmul.mubr.bf16.gmra.mrb[0].mxu0 %v3184
        %v3223 = vpop.f32.mrb[0].mxu0
        %v3224 = vadd.f32 0.0, %v3223
        %v3225 = vpop.f32.mrb[0].mxu0
        %v3226 = vpop.f32.mrb[0].mxu0
        %v3227 = vadd.f32 0.0, %v3226
        %v3228 = vpop.f32.mrb[0].mxu0
        %3229 = vdwg.mxu0
        %v3233 = vunpack.c.l.b16 %v2579
        %v3234 = vunpack.c.l.b16 %v2580
        %v3235 = vunpack.c.l.b16 %v2581
        %v3236 = vpack.c.b16 %v3234, %v3233
        %v3237 = vpack.c.b16 %v3235, %v3235
        %v3240 = vsel %vm2968, %v3060, 0
        %v3243 = vsel %vm3073, %v3237, 0
        %3245 = vmatprep.subr.bf16.mxu0 0
        %3246 = vmatpush1.bf16.msra.mxu0 %v3236
        %3247 = vmatprep.subr.bf16.mxu0 0
        %3248 = vmatpush1.bf16.msra.mxu0 %v3243
        %3249 = vmatprep.subr.bf16.mxu0 0
        %3250 = vmatpush1.bf16.msra.mxu0 0
        %3251 = vmatprep.subr.bf16.mxu0 0
        %3252 = vmatpush1.bf16.msra.mxu0 0
        %3253 = vmatprep.subr.bf16.mxu0 0
        %3254 = vmatpush1.bf16.msra.mxu0 0
        %3255 = vmatprep.subr.bf16.mxu0 0
        %3256 = vmatpush1.bf16.msra.mxu0 0
        %3257 = vmatprep.subr.bf16.mxu0 0
        %3258 = vmatpush1.bf16.msra.mxu0 0
        %3259 = vmatprep.subr.bf16.mxu0 0
        %3260 = vmatpush1.bf16.msra.mxu0 0
        %3261 = vmatprep.subr.bf16.mxu0 0
        %3262 = vmatpush1.bf16.msra.mxu0 0
        %3263 = vmatprep.subr.bf16.mxu0 0
        %3264 = vmatpush1.bf16.msra.mxu0 0
        %3265 = vmatprep.subr.bf16.mxu0 0
        %3266 = vmatpush1.bf16.msra.mxu0 0
        %3267 = vmatprep.subr.bf16.mxu0 0
        %3268 = vmatpush1.bf16.msra.mxu0 0
        %3269 = vmatprep.subr.bf16.mxu0 0
        %3270 = vmatpush1.bf16.msra.mxu0 0
        %3271 = vmatprep.subr.bf16.mxu0 0
        %3272 = vmatpush1.bf16.msra.mxu0 0
        %3273 = vmatprep.subr.bf16.mxu0 0
        %3274 = vmatpush1.bf16.msra.mxu0 0
        %3275 = vmatprep.subr.bf16.mxu0 0
        %3276 = vmatpush1.bf16.msra.mxu0 0
        %3277 = vmatprep.mubr.bf16.mxu0 0
        %3278 = vmatmul.mubr.bf16.gmra.mrb[0].mxu0 %v3240
        %v3279 = vpop.f32.mrb[0].mxu0
        %v3280 = vadd.f32 0.0, %v3279
        %v3281 = vpop.f32.mrb[0].mxu0
        %v3282 = vpop.f32.mrb[0].mxu0
        %v3283 = vadd.f32 0.0, %v3282
        %v3284 = vpop.f32.mrb[0].mxu0
        %3285 = vdwg.mxu0
        %v3286 = vpack.c.bf16 %v3115, %v3112
        %v3287 = vpack.c.bf16 %v3171, %v3168
        %v3288 = vpack.c.bf16 %v3227, %v3224
        %v3289 = vpack.c.bf16 %v3283, %v3280
        %v3294 = vunpack.c.l.b16 %v2599
        %v3295 = vunpack.c.l.b16 %v2600
        %v3296 = vunpack.c.l.b16 %v2601
        %v3297 = vunpack.c.l.b16 %v2602
        %v3298 = vpack.c.b16 %v3295, %v3294
        %v3299 = vpack.c.b16 %v3297, %v3296
        %v3303 = vsel %vm1804, %v3286, 0
        %3305 = vmatprep.subr.bf16.mxu0 0
        %3306 = vmatpush1.bf16.msra.mxu0 %v3298
        %3307 = vmatprep.subr.bf16.mxu0 0
        %3308 = vmatpush1.bf16.msra.mxu0 %v3299
        %3309 = vmatprep.subr.bf16.mxu0 0
        %3310 = vmatpush1.bf16.msra.mxu0 0
        %3311 = vmatprep.subr.bf16.mxu0 0
        %3312 = vmatpush1.bf16.msra.mxu0 0
        %3313 = vmatprep.subr.bf16.mxu0 0
        %3314 = vmatpush1.bf16.msra.mxu0 0
        %3315 = vmatprep.subr.bf16.mxu0 0
        %3316 = vmatpush1.bf16.msra.mxu0 0
        %3317 = vmatprep.subr.bf16.mxu0 0
        %3318 = vmatpush1.bf16.msra.mxu0 0
        %3319 = vmatprep.subr.bf16.mxu0 0
        %3320 = vmatpush1.bf16.msra.mxu0 0
        %3321 = vmatprep.subr.bf16.mxu0 0
        %3322 = vmatpush1.bf16.msra.mxu0 0
        %3323 = vmatprep.subr.bf16.mxu0 0
        %3324 = vmatpush1.bf16.msra.mxu0 0
        %3325 = vmatprep.subr.bf16.mxu0 0
        %3326 = vmatpush1.bf16.msra.mxu0 0
        %3327 = vmatprep.subr.bf16.mxu0 0
        %3328 = vmatpush1.bf16.msra.mxu0 0
        %3329 = vmatprep.subr.bf16.mxu0 0
        %3330 = vmatpush1.bf16.msra.mxu0 0
        %3331 = vmatprep.subr.bf16.mxu0 0
        %3332 = vmatpush1.bf16.msra.mxu0 0
        %3333 = vmatprep.subr.bf16.mxu0 0
        %3334 = vmatpush1.bf16.msra.mxu0 0
        %3335 = vmatprep.subr.bf16.mxu0 0
        %3336 = vmatpush1.bf16.msra.mxu0 0
        %3337 = vmatprep.mubr.bf16.mxu0 0
        %3338 = vmatmul.mubr.bf16.gmra.mrb[0].mxu0 %v3303
        %v3339 = vpop.f32.mrb[0].mxu0
        %v3340 = vadd.f32 0.0, %v3339
        %v3341 = vpop.f32.mrb[0].mxu0
        %v3342 = vpop.f32.mrb[0].mxu0
        %v3343 = vadd.f32 0.0, %v3342
        %v3344 = vpop.f32.mrb[0].mxu0
        %3345 = vdwg.mxu0
        %v3350 = vunpack.c.l.b16 %v2603
        %v3351 = vunpack.c.l.b16 %v2604
        %v3352 = vunpack.c.l.b16 %v2605
        %v3353 = vunpack.c.l.b16 %v2606
        %v3354 = vpack.c.b16 %v3351, %v3350
        %v3355 = vpack.c.b16 %v3353, %v3352
        %v3359 = vsel %vm1804, %v3287, 0
        %3361 = vmatprep.subr.bf16.mxu0 0
        %3362 = vmatpush1.bf16.msra.mxu0 %v3354
        %3363 = vmatprep.subr.bf16.mxu0 0
        %3364 = vmatpush1.bf16.msra.mxu0 %v3355
        %3365 = vmatprep.subr.bf16.mxu0 0
        %3366 = vmatpush1.bf16.msra.mxu0 0
        %3367 = vmatprep.subr.bf16.mxu0 0
        %3368 = vmatpush1.bf16.msra.mxu0 0
        %3369 = vmatprep.subr.bf16.mxu0 0
        %3370 = vmatpush1.bf16.msra.mxu0 0
        %3371 = vmatprep.subr.bf16.mxu0 0
        %3372 = vmatpush1.bf16.msra.mxu0 0
        %3373 = vmatprep.subr.bf16.mxu0 0
        %3374 = vmatpush1.bf16.msra.mxu0 0
        %3375 = vmatprep.subr.bf16.mxu0 0
        %3376 = vmatpush1.bf16.msra.mxu0 0
        %3377 = vmatprep.subr.bf16.mxu0 0
        %3378 = vmatpush1.bf16.msra.mxu0 0
        %3379 = vmatprep.subr.bf16.mxu0 0
        %3380 = vmatpush1.bf16.msra.mxu0 0
        %3381 = vmatprep.subr.bf16.mxu0 0
        %3382 = vmatpush1.bf16.msra.mxu0 0
        %3383 = vmatprep.subr.bf16.mxu0 0
        %3384 = vmatpush1.bf16.msra.mxu0 0
        %3385 = vmatprep.subr.bf16.mxu0 0
        %3386 = vmatpush1.bf16.msra.mxu0 0
        %3387 = vmatprep.subr.bf16.mxu0 0
        %3388 = vmatpush1.bf16.msra.mxu0 0
        %3389 = vmatprep.subr.bf16.mxu0 0
        %3390 = vmatpush1.bf16.msra.mxu0 0
        %3391 = vmatprep.subr.bf16.mxu0 0
        %3392 = vmatpush1.bf16.msra.mxu0 0
        %3393 = vmatprep.mubr.bf16.mxu0 0
        %3394 = vmatmul.mubr.bf16.gmra.mrb[0].mxu0 %v3359
        %v3395 = vpop.f32.mrb[0].mxu0
        %v3396 = vadd.f32 0.0, %v3395
        %v3397 = vpop.f32.mrb[0].mxu0
        %v3398 = vpop.f32.mrb[0].mxu0
        %v3399 = vadd.f32 0.0, %v3398
        %v3400 = vpop.f32.mrb[0].mxu0
        %3401 = vdwg.mxu0
        %v3406 = vunpack.c.l.b16 %v2607
        %v3407 = vunpack.c.l.b16 %v2608
        %v3408 = vunpack.c.l.b16 %v2609
        %v3409 = vunpack.c.l.b16 %v2610
        %v3410 = vpack.c.b16 %v3407, %v3406
        %v3411 = vpack.c.b16 %v3409, %v3408
        %v3415 = vsel %vm1804, %v3288, 0
        %3417 = vmatprep.subr.bf16.mxu0 0
        %3418 = vmatpush1.bf16.msra.mxu0 %v3410
        %3419 = vmatprep.subr.bf16.mxu0 0
        %3420 = vmatpush1.bf16.msra.mxu0 %v3411
        %3421 = vmatprep.subr.bf16.mxu0 0
        %3422 = vmatpush1.bf16.msra.mxu0 0
        %3423 = vmatprep.subr.bf16.mxu0 0
        %3424 = vmatpush1.bf16.msra.mxu0 0
        %3425 = vmatprep.subr.bf16.mxu0 0
        %3426 = vmatpush1.bf16.msra.mxu0 0
        %3427 = vmatprep.subr.bf16.mxu0 0
        %3428 = vmatpush1.bf16.msra.mxu0 0
        %3429 = vmatprep.subr.bf16.mxu0 0
        %3430 = vmatpush1.bf16.msra.mxu0 0
        %3431 = vmatprep.subr.bf16.mxu0 0
        %3432 = vmatpush1.bf16.msra.mxu0 0
        %3433 = vmatprep.subr.bf16.mxu0 0
        %3434 = vmatpush1.bf16.msra.mxu0 0
        %3435 = vmatprep.subr.bf16.mxu0 0
        %3436 = vmatpush1.bf16.msra.mxu0 0
        %3437 = vmatprep.subr.bf16.mxu0 0
        %3438 = vmatpush1.bf16.msra.mxu0 0
        %3439 = vmatprep.subr.bf16.mxu0 0
        %3440 = vmatpush1.bf16.msra.mxu0 0
        %3441 = vmatprep.subr.bf16.mxu0 0
        %3442 = vmatpush1.bf16.msra.mxu0 0
        %3443 = vmatprep.subr.bf16.mxu0 0
        %3444 = vmatpush1.bf16.msra.mxu0 0
        %3445 = vmatprep.subr.bf16.mxu0 0
        %3446 = vmatpush1.bf16.msra.mxu0 0
        %3447 = vmatprep.subr.bf16.mxu0 0
        %3448 = vmatpush1.bf16.msra.mxu0 0
        %3449 = vmatprep.mubr.bf16.mxu0 0
        %3450 = vmatmul.mubr.bf16.gmra.mrb[0].mxu0 %v3415
        %v3451 = vpop.f32.mrb[0].mxu0
        %v3452 = vadd.f32 0.0, %v3451
        %v3453 = vpop.f32.mrb[0].mxu0
        %v3454 = vpop.f32.mrb[0].mxu0
        %v3455 = vadd.f32 0.0, %v3454
        %v3456 = vpop.f32.mrb[0].mxu0
        %3457 = vdwg.mxu0
        %v3462 = vunpack.c.l.b16 %v2611
        %v3463 = vunpack.c.l.b16 %v2612
        %v3464 = vunpack.c.l.b16 %v2613
        %v3465 = vunpack.c.l.b16 %v2614
        %v3466 = vpack.c.b16 %v3463, %v3462
        %v3467 = vpack.c.b16 %v3465, %v3464
        %v3471 = vsel %vm1804, %v3289, 0
        %3473 = vmatprep.subr.bf16.mxu0 0
        %3474 = vmatpush1.bf16.msra.mxu0 %v3466
        %3475 = vmatprep.subr.bf16.mxu0 0
        %3476 = vmatpush1.bf16.msra.mxu0 %v3467
        %3477 = vmatprep.subr.bf16.mxu0 0
        %3478 = vmatpush1.bf16.msra.mxu0 0
        %3479 = vmatprep.subr.bf16.mxu0 0
        %3480 = vmatpush1.bf16.msra.mxu0 0
        %3481 = vmatprep.subr.bf16.mxu0 0
        %3482 = vmatpush1.bf16.msra.mxu0 0
        %3483 = vmatprep.subr.bf16.mxu0 0
        %3484 = vmatpush1.bf16.msra.mxu0 0
        %3485 = vmatprep.subr.bf16.mxu0 0
        %3486 = vmatpush1.bf16.msra.mxu0 0
        %3487 = vmatprep.subr.bf16.mxu0 0
        %3488 = vmatpush1.bf16.msra.mxu0 0
        %3489 = vmatprep.subr.bf16.mxu0 0
        %3490 = vmatpush1.bf16.msra.mxu0 0
        %3491 = vmatprep.subr.bf16.mxu0 0
        %3492 = vmatpush1.bf16.msra.mxu0 0
        %3493 = vmatprep.subr.bf16.mxu0 0
        %3494 = vmatpush1.bf16.msra.mxu0 0
        %3495 = vmatprep.subr.bf16.mxu0 0
        %3496 = vmatpush1.bf16.msra.mxu0 0
        %3497 = vmatprep.subr.bf16.mxu0 0
        %3498 = vmatpush1.bf16.msra.mxu0 0
        %3499 = vmatprep.subr.bf16.mxu0 0
        %3500 = vmatpush1.bf16.msra.mxu0 0
        %3501 = vmatprep.subr.bf16.mxu0 0
        %3502 = vmatpush1.bf16.msra.mxu0 0
        %3503 = vmatprep.subr.bf16.mxu0 0
        %3504 = vmatpush1.bf16.msra.mxu0 0
        %3505 = vmatprep.mubr.bf16.mxu0 0
        %3506 = vmatmul.mubr.bf16.gmra.mrb[0].mxu0 %v3471
        %v3507 = vpop.f32.mrb[0].mxu0
        %v3508 = vadd.f32 0.0, %v3507
        %v3509 = vpop.f32.mrb[0].mxu0
        %v3510 = vpop.f32.mrb[0].mxu0
        %v3511 = vadd.f32 0.0, %v3510
        %v3512 = vpop.f32.mrb[0].mxu0
        %3513 = vdwg.mxu0
        %v3514 = vadd.f32 %v3340, %v3396
        %v3515 = vadd.f32 %v3514, %v3452
        %v3516 = vadd.f32 %v3515, %v3508
        %v3517 = vadd.f32 %v3343, %v3399
        %v3518 = vadd.f32 %v3517, %v3455
        %v3519 = vadd.f32 %v3518, %v3511
        %v3521 = vlaneseq
        %v3522 = vshrl.u32 %v3521, 7
        %v3523 = vsub.s32 0, %v3522
        %v3524 = vrot.slane %v2615, %v3523
        %v3526 = vadd.f32 %v3516, %v3524
        %v3527 = vadd.f32 %v3519, %v3524
        %v3528 = vadd.f32 %v2556, %v3526
        %v3529 = vadd.f32 %v2557, %v3527
        %v3530 = vld [vmem:[%s21] sm:$0x1]
        %v3531 = vld [vmem:[%s22] sm:$0x1]
        %3532 = vadd.xlane.f32.xlu0 %v3528
        %v3533 = vpop.xlane.xlu0 %3532
        %3534 = vadd.xlane.f32.xlu0 %v3529
        %v3535 = vpop.xlane.xlu0 %3534
        %v3536 = vmul.f32 %v3533, %v2523
        %v3537 = vmul.f32 %v3535, %v2523
        %v3538 = vsub.f32 %v3528, %v3536
        %v3539 = vsub.f32 %v3529, %v3537
        %v3540 = vmul.f32 %v3538, %v3538
        %v3541 = vmul.f32 %v3539, %v3539
        %3542 = vadd.xlane.f32.xlu0 %v3540
        %v3543 = vpop.xlane.xlu0 %3542
        %3544 = vadd.xlane.f32.xlu0 %v3541
        %v3545 = vpop.xlane.xlu0 %3544
        %v3546 = vmul.f32 %v3543, %v2523
        %v3547 = vmul.f32 %v3545, %v2523
        %v3548 = vadd.f32 %v3546, 1e-05
        %v3549 = vadd.f32 %v3547, 1e-05
        %v3550 = vrsqrt.pop %v3548
        %v3551 = vrsqrt.pop %v3549
        %v3552 = vmul.f32 %v3538, %v3550
        %v3553 = vmul.f32 %v3539, %v3551
        %v3555 = vlaneseq
        %v3556 = vshrl.u32 %v3555, 7
        %v3557 = vsub.s32 0, %v3556
        %v3558 = vrot.slane %v3530, %v3557
        %v3560 = vmul.f32 %v3552, %v3558
        %v3561 = vmul.f32 %v3553, %v3558
        %v3563 = vlaneseq
        %v3564 = vshrl.u32 %v3563, 7
        %v3565 = vsub.s32 0, %v3564
        %v3566 = vrot.slane %v3531, %v3565
        %v3568 = vadd.f32 %v3560, %v3566
        %v3569 = vadd.f32 %v3561, %v3566
        %v3570 = vld [vmem:[#allocation21] sm:$0xff]
        %v3571 = vld [vmem:[#allocation21 + $0x8] sm:$0xff]
        %v3572 = vld [vmem:[#allocation21 + $0x10] sm:$0xff]
        %v3573 = vld [vmem:[#allocation21 + $0x18] sm:$0xff]
        %v3574 = vld [vmem:[#allocation21 + $0x20] sm:$0xff]
        %v3575 = vld [vmem:[#allocation21 + $0x28] sm:$0xff]
        %v3576 = vld [vmem:[#allocation21 + $0x30] sm:$0xff]
        %v3577 = vld [vmem:[#allocation21 + $0x38] sm:$0xff]
        %v3578 = vld [vmem:[#allocation21 + $0x40] sm:$0xff]
        %v3579 = vld [vmem:[#allocation21 + $0x48] sm:$0xff]
        %v3580 = vld [vmem:[#allocation21 + $0x50] sm:$0xff]
        %v3581 = vld [vmem:[#allocation21 + $0x58] sm:$0xff]
        %v3582 = vld [vmem:[#allocation21 + $0x60] sm:$0xff]
        %v3583 = vld [vmem:[#allocation21 + $0x68] sm:$0xff]
        %v3584 = vld [vmem:[#allocation21 + $0x70] sm:$0xff]
        %v3585 = vld [vmem:[#allocation21 + $0x78] sm:$0xff]
        %v3586 = vld [vmem:[%s16] sm:$0x3]
        %v3587 = vld [vmem:[#allocation23] sm:$0xf]
        %v3588 = vld [vmem:[#allocation23 + $0x4] sm:$0xf]
        %v3589 = vld [vmem:[#allocation23 + $0x8] sm:$0xf]
        %v3590 = vld [vmem:[#allocation23 + $0xc] sm:$0xf]
        %v3591 = vld [vmem:[#allocation23 + $0x10] sm:$0xf]
        %v3592 = vld [vmem:[#allocation23 + $0x14] sm:$0xf]
        %v3593 = vld [vmem:[#allocation23 + $0x18] sm:$0xf]
        %v3594 = vld [vmem:[#allocation23 + $0x1c] sm:$0xf]
        %v3595 = vld [vmem:[#allocation23 + $0x20] sm:$0xf]
        %v3596 = vld [vmem:[#allocation23 + $0x24] sm:$0xf]
        %v3597 = vld [vmem:[#allocation23 + $0x28] sm:$0xf]
        %v3598 = vld [vmem:[#allocation23 + $0x2c] sm:$0xf]
        %v3599 = vld [vmem:[#allocation23 + $0x30] sm:$0xf]
        %v3600 = vld [vmem:[#allocation23 + $0x34] sm:$0xf]
        %v3601 = vld [vmem:[#allocation23 + $0x38] sm:$0xf]
        %v3602 = vld [vmem:[#allocation23 + $0x3c] sm:$0xf]
        %v3603 = vld [vmem:[#allocation23 + $0x40] sm:$0xf]
        %v3604 = vld [vmem:[#allocation23 + $0x44] sm:$0xf]
        %v3605 = vld [vmem:[#allocation23 + $0x48] sm:$0xf]
        %v3606 = vld [vmem:[#allocation23 + $0x4c] sm:$0xf]
        %v3607 = vld [vmem:[#allocation23 + $0x50] sm:$0xf]
        %v3608 = vld [vmem:[#allocation23 + $0x54] sm:$0xf]
        %v3609 = vld [vmem:[#allocation23 + $0x58] sm:$0xf]
        %v3610 = vld [vmem:[#allocation23 + $0x5c] sm:$0xf]
        %v3611 = vld [vmem:[#allocation23 + $0x60] sm:$0xf]
        %v3612 = vld [vmem:[#allocation23 + $0x64] sm:$0xf]
        %v3613 = vld [vmem:[#allocation23 + $0x68] sm:$0xf]
        %v3614 = vld [vmem:[#allocation23 + $0x6c] sm:$0xf]
        %v3615 = vld [vmem:[#allocation23 + $0x70] sm:$0xf]
        %v3616 = vld [vmem:[#allocation23 + $0x74] sm:$0xf]
        %v3617 = vld [vmem:[#allocation23 + $0x78] sm:$0xf]
        %v3618 = vld [vmem:[#allocation23 + $0x7c] sm:$0xf]
        %v3619 = vld [vmem:[%s18] sm:$0x1]
        %v3620 = vpack.c.bf16 %v3569, %v3568
        %v3622 = vlaneseq
        %v3623 = vshrl.u32 %v3622, 7
        %v3624 = vsub.s32 0, %v3623
        %v3625 = vrot.slane %v3586, %v3624
        %v3626 = vlaneseq
        %v3627 = vshrl.u32 %v3626, 7
        %v3628 = vsub.s32 1, %v3627
        %v3629 = vrot.slane %v3586, %v3628
        %v3648 = vunpack.c.l.b16 %v3570
        %v3649 = vunpack.c.h.b16 %v3570
        %v3650 = vunpack.c.l.b16 %v3571
        %v3651 = vunpack.c.h.b16 %v3571
        %v3652 = vunpack.c.l.b16 %v3572
        %v3653 = vunpack.c.h.b16 %v3572
        %v3654 = vunpack.c.l.b16 %v3573
        %v3655 = vunpack.c.h.b16 %v3573
        %v3656 = vunpack.c.l.b16 %v3574
        %v3657 = vunpack.c.h.b16 %v3574
        %v3658 = vunpack.c.l.b16 %v3575
        %v3659 = vunpack.c.h.b16 %v3575
        %v3660 = vunpack.c.l.b16 %v3576
        %v3661 = vunpack.c.h.b16 %v3576
        %v3662 = vunpack.c.l.b16 %v3577
        %v3663 = vunpack.c.h.b16 %v3577
        %v3664 = vunpack.c.l.b16 %v3578
        %v3665 = vunpack.c.h.b16 %v3578
        %v3666 = vunpack.c.l.b16 %v3579
        %v3667 = vunpack.c.h.b16 %v3579
        %v3668 = vunpack.c.l.b16 %v3580
        %v3669 = vunpack.c.h.b16 %v3580
        %v3670 = vunpack.c.l.b16 %v3581
        %v3671 = vunpack.c.h.b16 %v3581
        %v3672 = vunpack.c.l.b16 %v3582
        %v3673 = vunpack.c.h.b16 %v3582
        %v3674 = vunpack.c.l.b16 %v3583
        %v3675 = vunpack.c.h.b16 %v3583
        %v3676 = vunpack.c.l.b16 %v3584
        %v3677 = vunpack.c.h.b16 %v3584
        %v3678 = vunpack.c.l.b16 %v3585
        %v3679 = vunpack.c.h.b16 %v3585
        %v3680 = vpack.c.b16 %v3650, %v3648
        %v3681 = vpack.c.b16 %v3651, %v3649
        %v3682 = vpack.c.b16 %v3654, %v3652
        %v3683 = vpack.c.b16 %v3655, %v3653
        %v3684 = vpack.c.b16 %v3658, %v3656
        %v3685 = vpack.c.b16 %v3659, %v3657
        %v3686 = vpack.c.b16 %v3662, %v3660
        %v3687 = vpack.c.b16 %v3663, %v3661
        %v3688 = vpack.c.b16 %v3666, %v3664
        %v3689 = vpack.c.b16 %v3667, %v3665
        %v3690 = vpack.c.b16 %v3670, %v3668
        %v3691 = vpack.c.b16 %v3671, %v3669
        %v3692 = vpack.c.b16 %v3674, %v3672
        %v3693 = vpack.c.b16 %v3675, %v3673
        %v3694 = vpack.c.b16 %v3678, %v3676
        %v3695 = vpack.c.b16 %v3679, %v3677
        %3712 = vmatprep.subr.bf16.mxu0 %v3681
        %3713 = vmatpush1.bf16.msra.mxu0 %v3680
        %3714 = vmatprep.subr.bf16.mxu0 %v3683
        %3715 = vmatpush1.bf16.msra.mxu0 %v3682
        %3716 = vmatprep.subr.bf16.mxu0 %v3685
        %3717 = vmatpush1.bf16.msra.mxu0 %v3684
        %3718 = vmatprep.subr.bf16.mxu0 %v3687
        %3719 = vmatpush1.bf16.msra.mxu0 %v3686
        %3720 = vmatprep.subr.bf16.mxu0 %v3689
        %3721 = vmatpush1.bf16.msra.mxu0 %v3688
        %3722 = vmatprep.subr.bf16.mxu0 %v3691
        %3723 = vmatpush1.bf16.msra.mxu0 %v3690
        %3724 = vmatprep.subr.bf16.mxu0 %v3693
        %3725 = vmatpush1.bf16.msra.mxu0 %v3692
        %3726 = vmatprep.subr.bf16.mxu0 %v3695
        %3727 = vmatpush1.bf16.msra.mxu0 %v3694
        %3728 = vmatprep.subr.bf16.mxu0 0
        %3729 = vmatpush1.bf16.msra.mxu0 0
        %3730 = vmatprep.subr.bf16.mxu0 0
        %3731 = vmatpush1.bf16.msra.mxu0 0
        %3732 = vmatprep.subr.bf16.mxu0 0
        %3733 = vmatpush1.bf16.msra.mxu0 0
        %3734 = vmatprep.subr.bf16.mxu0 0
        %3735 = vmatpush1.bf16.msra.mxu0 0
        %3736 = vmatprep.subr.bf16.mxu0 0
        %3737 = vmatpush1.bf16.msra.mxu0 0
        %3738 = vmatprep.subr.bf16.mxu0 0
        %3739 = vmatpush1.bf16.msra.mxu0 0
        %3740 = vmatprep.subr.bf16.mxu0 0
        %3741 = vmatpush1.bf16.msra.mxu0 0
        %3742 = vmatprep.subr.bf16.mxu0 0
        %3743 = vmatpush1.bf16.msra.mxu0 0
        %3744 = vmatprep.mubr.bf16.mxu0 0
        %3745 = vmatmul.mubr.bf16.gmra.mrb[0].mxu0 %v3620
        %v3746 = vpop.f32.mrb[0].mxu0
        %v3747 = vadd.f32 %v3625, %v3746
        %v3748 = vpop.f32.mrb[0].mxu0
        %v3749 = vadd.f32 %v3629, %v3748
        %v3750 = vpop.f32.mrb[0].mxu0
        %v3751 = vadd.f32 %v3625, %v3750
        %v3752 = vpop.f32.mrb[0].mxu0
        %v3753 = vadd.f32 %v3629, %v3752
        %3754 = vdwg.mxu0
        %v3755 = vmax.f32 %v3747, 0.0
        %v3756 = vmax.f32 %v3749, 0.0
        %v3757 = vmax.f32 %v3751, 0.0
        %v3758 = vmax.f32 %v3753, 0.0
        %v3759 = vpack.c.bf16 %v3757, %v3755
        %v3760 = vpack.c.bf16 %v3758, %v3756
        %v3762 = vlaneseq
        %v3763 = vshrl.u32 %v3762, 7
        %v3764 = vsub.s32 0, %v3763
        %v3765 = vrot.slane %v3619, %v3764
        %v3799 = vunpack.c.l.b16 %v3587
        %v3800 = vunpack.c.l.b16 %v3588
        %v3801 = vunpack.c.l.b16 %v3589
        %v3802 = vunpack.c.l.b16 %v3590
        %v3803 = vunpack.c.l.b16 %v3591
        %v3804 = vunpack.c.l.b16 %v3592
        %v3805 = vunpack.c.l.b16 %v3593
        %v3806 = vunpack.c.l.b16 %v3594
        %v3807 = vunpack.c.l.b16 %v3595
        %v3808 = vunpack.c.l.b16 %v3596
        %v3809 = vunpack.c.l.b16 %v3597
        %v3810 = vunpack.c.l.b16 %v3598
        %v3811 = vunpack.c.l.b16 %v3599
        %v3812 = vunpack.c.l.b16 %v3600
        %v3813 = vunpack.c.l.b16 %v3601
        %v3814 = vunpack.c.l.b16 %v3602
        %v3815 = vunpack.c.l.b16 %v3603
        %v3816 = vunpack.c.l.b16 %v3604
        %v3817 = vunpack.c.l.b16 %v3605
        %v3818 = vunpack.c.l.b16 %v3606
        %v3819 = vunpack.c.l.b16 %v3607
        %v3820 = vunpack.c.l.b16 %v3608
        %v3821 = vunpack.c.l.b16 %v3609
        %v3822 = vunpack.c.l.b16 %v3610
        %v3823 = vunpack.c.l.b16 %v3611
        %v3824 = vunpack.c.l.b16 %v3612
        %v3825 = vunpack.c.l.b16 %v3613
        %v3826 = vunpack.c.l.b16 %v3614
        %v3827 = vunpack.c.l.b16 %v3615
        %v3828 = vunpack.c.l.b16 %v3616
        %v3829 = vunpack.c.l.b16 %v3617
        %v3830 = vunpack.c.l.b16 %v3618
        %v3831 = vpack.c.b16 %v3800, %v3799
        %v3832 = vpack.c.b16 %v3802, %v3801
        %v3833 = vpack.c.b16 %v3804, %v3803
        %v3834 = vpack.c.b16 %v3806, %v3805
        %v3835 = vpack.c.b16 %v3808, %v3807
        %v3836 = vpack.c.b16 %v3810, %v3809
        %v3837 = vpack.c.b16 %v3812, %v3811
        %v3838 = vpack.c.b16 %v3814, %v3813
        %v3839 = vpack.c.b16 %v3816, %v3815
        %v3840 = vpack.c.b16 %v3818, %v3817
        %v3841 = vpack.c.b16 %v3820, %v3819
        %v3842 = vpack.c.b16 %v3822, %v3821
        %v3843 = vpack.c.b16 %v3824, %v3823
        %v3844 = vpack.c.b16 %v3826, %v3825
        %v3845 = vpack.c.b16 %v3828, %v3827
        %v3846 = vpack.c.b16 %v3830, %v3829
        %3863 = vmatprep.subr.bf16.mxu0 0
        %3864 = vmatpush1.bf16.msra.mxu0 %v3831
        %3865 = vmatprep.subr.bf16.mxu0 0
        %3866 = vmatpush1.bf16.msra.mxu0 %v3832
        %3867 = vmatprep.subr.bf16.mxu0 0
        %3868 = vmatpush1.bf16.msra.mxu0 %v3833
        %3869 = vmatprep.subr.bf16.mxu0 0
        %3870 = vmatpush1.bf16.msra.mxu0 %v3834
        %3871 = vmatprep.subr.bf16.mxu0 0
        %3872 = vmatpush1.bf16.msra.mxu0 %v3835
        %3873 = vmatprep.subr.bf16.mxu0 0
        %3874 = vmatpush1.bf16.msra.mxu0 %v3836
        %3875 = vmatprep.subr.bf16.mxu0 0
        %3876 = vmatpush1.bf16.msra.mxu0 %v3837
        %3877 = vmatprep.subr.bf16.mxu0 0
        %3878 = vmatpush1.bf16.msra.mxu0 %v3838
        %3879 = vmatprep.subr.bf16.mxu0 0
        %3880 = vmatpush1.bf16.msra.mxu0 %v3839
        %3881 = vmatprep.subr.bf16.mxu0 0
        %3882 = vmatpush1.bf16.msra.mxu0 %v3840
        %3883 = vmatprep.subr.bf16.mxu0 0
        %3884 = vmatpush1.bf16.msra.mxu0 %v3841
        %3885 = vmatprep.subr.bf16.mxu0 0
        %3886 = vmatpush1.bf16.msra.mxu0 %v3842
        %3887 = vmatprep.subr.bf16.mxu0 0
        %3888 = vmatpush1.bf16.msra.mxu0 %v3843
        %3889 = vmatprep.subr.bf16.mxu0 0
        %3890 = vmatpush1.bf16.msra.mxu0 %v3844
        %3891 = vmatprep.subr.bf16.mxu0 0
        %3892 = vmatpush1.bf16.msra.mxu0 %v3845
        %3893 = vmatprep.subr.bf16.mxu0 0
        %3894 = vmatpush1.bf16.msra.mxu0 %v3846
        %3895 = vmatprep.mubr.bf16.mxu0 %v3760
        %3896 = vmatmul.mubr.bf16.gmra.mrb[0].mxu0 %v3759
        %v3897 = vpop.f32.mrb[0].mxu0
        %v3898 = vadd.f32 %v3765, %v3897
        %v3899 = vpop.f32.mrb[0].mxu0
        %v3900 = vpop.f32.mrb[0].mxu0
        %v3901 = vadd.f32 %v3765, %v3900
        %v3902 = vpop.f32.mrb[0].mxu0
        %3903 = vdwg.mxu0
        %v3904 = vadd.f32 %v3568, %v3898
        %v3905 = vadd.f32 %v3569, %v3901
        %v3906 = vld [vmem:[%s23] sm:$0x1]
        %v3907 = vld [vmem:[%s24] sm:$0x1]
        %3908 = vadd.xlane.f32.xlu0 %v3904
        %v3909 = vpop.xlane.xlu0 %3908
        %3910 = vadd.xlane.f32.xlu0 %v3905
        %v3911 = vpop.xlane.xlu0 %3910
        %v3912 = vmul.f32 %v3909, %v2523
        %v3913 = vmul.f32 %v3911, %v2523
        %v3914 = vsub.f32 %v3904, %v3912
        %v3915 = vsub.f32 %v3905, %v3913
        %v3916 = vmul.f32 %v3914, %v3914
        %v3917 = vmul.f32 %v3915, %v3915
        %3918 = vadd.xlane.f32.xlu0 %v3916
        %v3919 = vpop.xlane.xlu0 %3918
        %3920 = vadd.xlane.f32.xlu0 %v3917
        %v3921 = vpop.xlane.xlu0 %3920
        %v3922 = vmul.f32 %v3919, %v2523
        %v3923 = vmul.f32 %v3921, %v2523
        %v3924 = vadd.f32 %v3922, 1e-05
        %v3925 = vadd.f32 %v3923, 1e-05
        %v3926 = vrsqrt.pop %v3924
        %v3927 = vrsqrt.pop %v3925
        %v3928 = vmul.f32 %v3914, %v3926
        %v3929 = vmul.f32 %v3915, %v3927
        %v3931 = vlaneseq
        %v3932 = vshrl.u32 %v3931, 7
        %v3933 = vsub.s32 0, %v3932
        %v3934 = vrot.slane %v3906, %v3933
        %v3936 = vmul.f32 %v3928, %v3934
        %v3937 = vmul.f32 %v3929, %v3934
        %v3939 = vlaneseq
        %v3940 = vshrl.u32 %v3939, 7
        %v3941 = vsub.s32 0, %v3940
        %v3942 = vrot.slane %v3907, %v3941
        %v3944 = vadd.f32 %v3936, %v3942
        %v3945 = vadd.f32 %v3937, %v3942
        %3946 = vst [vmem:[%s991] sm:$0xff] %v3944
        %3947 = vst [vmem:[%s991 + $0x8] sm:$0xff] %v3945
        %s3948 = sand.u32 %s613, 1
        %s3949 = scalar_lea.sflag [#allocation8], %s3948
        %s3950 = sand.u32 %s613, 1
        %s3951 = smul.addr %s3950, 16
        %s3952 = scalar_lea.vmem [#allocation24], %s3951
        // Predicated region
        $region169: #{tpu_custom_call.1} parent=119 // pred_check
          %p3953 = pneg %p623
        $region170: #{tpu_custom_call.1} parent=119 // pred_check_branch
          %3955 = sbr.rel (%p3953) target = $region172
        $region171: #{tpu_custom_call.1} parent=119 // pred_region
          %s3956 = smul.u32 2, %s54
          %s3958 = ssub.s32 256, 256
          %3959 = vsyncadd %s3949, %s3958
          %s3960 = smul.addr %s3956, 2
          %s3961 = sadd.s32 %s53, %s3960
          %s3962 = smul.addr %s3961, 128
          %s3963 = scalar_lea.hbm %s25, %s3962
          %s3964 = sshll.u32 %s3952, 4
          %s3965 = int_to_ptr.vmem [resolvable:$true] %s3964
          %3970 = dma.vmem_to_hbm [thread:$0]  %s3965, 256, %s3963, %s3949, 128, 256, 8
        $region172: #{tpu_custom_call.1} parent=119 // pred_fallthru
          _
      $region120: #{tpu_custom_call.1} parent=5 // pred_fallthru
        _
      %p3971 = scmp.le.s32.totalorder 2, %s44
      // Predicated region
      $region173: #{tpu_custom_call.1} parent=5 // pred_check
        %p3972 = pneg %p3971
      $region174: #{tpu_custom_call.1} parent=5 // pred_check_branch
        %3974 = sbr.rel (%p3972) target = $region176
      $region175: #{tpu_custom_call.1} parent=5 // pred_region
        %s3975 = ssub.s32 %s44, 2
        // Predicated region
        $region177: #{tpu_custom_call.1} parent=175 // pred_check
          %p3976 = pneg %p629
        $region178: #{tpu_custom_call.1} parent=175 // pred_check_branch
          %3978 = sbr.rel (%p3976) target = $region180
        $region179: #{tpu_custom_call.1} parent=175 // pred_region
          %s3979 = sand.u32 %s614, 1
          %s3980 = scalar_lea.sflag [#allocation8], %s3979
          %s3981 = sand.u32 %s614, 1
          %s3982 = smul.addr %s3981, 16
          %s3983 = scalar_lea.vmem [#allocation24], %s3982
          %3984 = dma.done %s3980, 256
        $region180: #{tpu_custom_call.1} parent=175 // pred_fallthru
          _
      $region176: #{tpu_custom_call.1} parent=5 // pred_fallthru
        _
    $region6: #{tpu_custom_call.1} parent=1 // loop_footer
      %s48 = sadd.s32 1, %s44
    $region7: #{tpu_custom_call.1} parent=1 // loop_footer_branch
      %43 = sbr.rel target = $region3
    $region8: #{tpu_custom_call.1} parent=1 // loop_exit
      _
    %3985 = vsyncpa [#allocation7], 1
    %s3986 = scalar_lea.sflag [#allocation7], 1
    %3987 = vsyncpa %s3986, 1
    %3988 = vsyncpa [#allocation10], 1
    %s3989 = scalar_lea.sflag [#allocation10], 1
    %3990 = vsyncpa %s3989, 1
    %3991 = vsyncpa [#allocation13], 1
    %3992 = vsyncpa [#allocation16], 1
    %3993 = vsyncpa [#allocation19], 1
    %3994 = vsyncpa [#allocation22], 1
    %3995 = vsyncpa [#allocation8], 1
    %s3996 = scalar_lea.sflag [#allocation8], 1
    %3997 = vsyncpa %s3996, 1

</llo_original>
